<compile_context>
chip_gen: v7x
topology: tpu7x:2x2x1
jax: 0.10.0
libtpu: 0.0.40
codegen_flags: <defaults>
</compile_context>

<pallas_src>
import functools
import math

import jax
import jax.numpy as jnp
import numpy as np
from jax.experimental import pallas as pl
from jax.experimental.pallas import tpu as pltpu

_LANE = 128     # feature (lane) padding
_SUBLANE = 8    # batch (sublane) padding


def _round_up(n, m):
    return ((n + m - 1) // m) * m


# ---------------- fused MLP kernel (all weights VMEM-resident) ----------------

def _mlp_fused_kernel(x_ref, *refs, num_layers, act):
    """Fused MLP over one batch tile.

    refs = (w0, b0, ..., w_{L-1}, b_{L-1}, o_ref)
      x_ref: (tile_b, in_pad)    w_i: (in_i_pad, out_i_pad)
      b_i:   (1, out_i_pad)      o_ref: (tile_b, out_pad)
    """
    o_ref = refs[2 * num_layers]
    h = x_ref[...]
    for i in range(num_layers):                       # unrolled at trace time
        w_ref = refs[2 * i]
        b_ref = refs[2 * i + 1]
        # bf16 x bf16 MXU matmul, f32 accumulation; intermediate activations
        # stay on-chip (values) -- no HBM round-trip between layers.
        y = jnp.dot(h.astype(w_ref.dtype), w_ref[...],
                    preferred_element_type=jnp.float32)
        y = y + b_ref[...].astype(jnp.float32)        # f32 bias add (broadcast)
        if act == "sigmoid":
            h = jax.nn.sigmoid(y)                     # EUP, f32
        else:
            h = jnp.maximum(y, 0.0)
    o_ref[...] = h.astype(o_ref.dtype)


# ------- K-tiled single-layer kernel (fallback when weights overflow VMEM) ----

def _layer_ktiled_kernel(x_ref, w_ref, b_ref, o_ref, acc_ref, *, act):
    k = pl.program_id(1)

    @pl.when(k == 0)
    def _():
        acc_ref[...] = jnp.zeros_like(acc_ref)

    acc_ref[...] += jnp.dot(x_ref[...], w_ref[...],
                            preferred_element_type=jnp.float32)

    @pl.when(k == pl.num_programs(1) - 1)
    def _():
        y = acc_ref[...] + b_ref[...].astype(jnp.float32)
        if act == "sigmoid":
            y = jax.nn.sigmoid(y)
        else:
            y = jnp.maximum(y, 0.0)
        o_ref[...] = y.astype(o_ref.dtype)


class SlipModelPallas:
    """JAX/Pallas port of the PyTorch SlipModel (single fused forward kernel)."""

    def __init__(self, sizes, activate_function="sigmoid", mean=0.0, std=1.0,
                 key=None, param_dtype=jnp.bfloat16):
        act = activate_function.lower()
        if act not in ("sigmoid", "relu"):
            raise ValueError("Unknown activate function specified.")
        self.act = act
        self.mean = float(mean)
        self.std = float(std)
        self.sizes = list(sizes)
        self.param_dtype = param_dtype
        self.padded_sizes = [_round_up(s, _LANE) for s in self.sizes]

        if key is None:
            key = jax.random.PRNGKey(42)

        # Original (unfolded, unpadded, f32) params -- kept for the reference.
        self._orig_weights = []   # (in, out)  (nn.Linear weight, transposed)
        self._orig_biases = []    # (out,)
        # Kernel params: normalization folded into layer 0, zero-padded.
        self.weights = []         # (in_pad, out_pad)
        self.biases = []          # (1, out_pad)
        for i in range(len(sizes) - 1):
            fan_in, fan_out = sizes[i], sizes[i + 1]
            key, wk, bk = jax.random.split(key, 3)
            bound = 1.0 / math.sqrt(fan_in)           # nn.Linear default init
            w = jax.random.uniform(wk, (fan_in, fan_out), jnp.float32,
                                   minval=-bound, maxval=bound)
            b = jax.random.uniform(bk, (fan_out,), jnp.float32,
                                   minval=-bound, maxval=bound)
            self._orig_weights.append(w)
            self._orig_biases.append(b)

            w_k, b_k = w, b
            if i == 0:
                # ((x-mean)/std) @ W + b == x @ (W/std) + (b - mean*sum(W/std))
                w_k = w / self.std
                b_k = b - self.mean * jnp.sum(w_k, axis=0)

            in_pad = self.padded_sizes[i]
            out_pad = self.padded_sizes[i + 1]
            w_pad = jnp.zeros((in_pad, out_pad), jnp.float32)
            w_pad = w_pad.at[:fan_in, :fan_out].set(w_k)
            b_pad = jnp.zeros((1, out_pad), jnp.float32)
            b_pad = b_pad.at[:, :fan_out].set(b_k)
            self.weights.append(w_pad.astype(param_dtype))
            self.biases.append(b_pad.astype(param_dtype))

    # -- hardware / VMEM accounting -------------------------------------------

    @staticmethod
    def _tpu_vmem_budget():
        """Returns (budget, limit_cap, is_v7x), generation-aware."""
        try:
            cap = int(pltpu.get_tpu_info().vmem_capacity_bytes)
        except Exception:
            cap = 128 << 20
        if cap <= (80 << 20):            # v7x: 64 MiB per TensorCore
            return 48 << 20, 56 << 20, True
        return 96 << 20, 100 << 20, False   # v5e / v6e: 128 MiB physical

    def _param_bytes(self, start=0):
        """Resident parameter bytes (counted ONCE: single-buffered specs)."""
        total = 0
        for w, b in zip(self.weights[start:], self.biases[start:]):
            total += int(w.size) * w.dtype.itemsize
            total += int(b.size) * b.dtype.itemsize
        return total

    def _pick_batch_tile(self, batch, first_idx, budget, resident_param_bytes):
        """Largest batch tile (<=1024, MXU-friendly multiple) fitting VMEM."""
        in_pad = self.padded_sizes[first_idx]
        out_pad = self.padded_sizes[-1]
        max_pad = max(self.padded_sizes[first_idx:])
        in_item = np.dtype(self.param_dtype).itemsize
        bytes_per_row = (
            3 * in_pad * in_item          # input tile (up to triple-buffered)
            + 2 * out_pad * 4             # output tile (double-buffered, f32)
            + 2 * max_pad * 4)            # two live f32 intermediates
        avail = max(budget - resident_param_bytes, _SUBLANE * bytes_per_row)
        tile = min(1024, int(avail // bytes_per_row))
        if tile >= 512:
            tile = (tile // 256) * 256    # fill MXU passes on v6e/v7x
        elif tile >= 128:
            tile = (tile // 128) * 128
        else:
            tile = max(_SUBLANE, (tile // _SUBLANE) * _SUBLANE)
        return int(min(tile, _round_up(batch, _SUBLANE)))

    # -- fallback K-tiled layer (parameters do not fit VMEM) --------------------

    def _layer_ktiled(self, h, layer_idx, b_pad, limit_cap):
        in_pad = self.padded_sizes[layer_idx]
        out_pad = self.padded_sizes[layer_idx + 1]
        w = self.weights[layer_idx]
        b = self.biases[layer_idx]

        tile_b = b_pad
        for cand in (512, 256, 128, 64, 32, 16, 8):
            if b_pad % cand == 0:
                tile_b = cand
                break
        tile_k = 128
        for cand in (1024, 512, 256):
            if in_pad % cand == 0:
                tile_k = cand
                break

        kernel = functools.partial(_layer_ktiled_kernel, act=self.act)
        return pl.pallas_call(
            kernel,
            grid=(b_pad // tile_b, in_pad // tile_k),
            in_specs=[
                pl.BlockSpec((tile_b, tile_k), lambda i, k: (i, k)),
                pl.BlockSpec((tile_k, out_pad), lambda i, k: (k, 0)),
                pl.BlockSpec((1, out_pad), lambda i, k: (0, 0)),
            ],
            out_specs=pl.BlockSpec((tile_b, out_pad), lambda i, k: (i, 0)),
            out_shape=jax.ShapeDtypeStruct((b_pad, out_pad), self.param_dtype),
            scratch_shapes=[pltpu.VMEM((tile_b, out_pad), jnp.float32)],
            compiler_params=pltpu.CompilerParams(
                dimension_semantics=("parallel", "arbitrary"),
                vmem_limit_bytes=int(min(limit_cap, 64 << 20))),
        )(h, w, b)

    # -- fused tail (all remaining weights VMEM-resident) -----------------------

    def _fused_tail(self, h, head, tile_b, b_pad, limit_cap, is_v7x):
        num_layers = len(self.weights) - head
        in_pad = self.padded_sizes[head]
        out_pad = self.padded_sizes[-1]
        max_pad = max(self.padded_sizes[head:])
        num_tiles = b_pad // tile_b
        in_item = np.dtype(self.param_dtype).itemsize

        args = [h]
        wb_shapes = []
        for w, b in zip(self.weights[head:], self.biases[head:]):
            args.append(w)
            args.append(b)
            wb_shapes.append((w.shape, b.shape))

        act_bytes = tile_b * (3 * in_pad * in_item + 2 * out_pad * 4
                              + 2 * max_pad * 4)
        vmem_limit = int(min(limit_cap,
                             max(self._param_bytes(head) + act_bytes + (4 << 20),
                                 16 << 20)))

        kernel = functools.partial(_mlp_fused_kernel, num_layers=num_layers,
                                   act=self.act)
        out_shape = jax.ShapeDtypeStruct((b_pad, out_pad), jnp.float32)
        out_spec = pl.BlockSpec((tile_b, out_pad), lambda i: (i, 0))

        def build_in_specs(use_pipeline_mode):
            if use_pipeline_mode and num_tiles > 2:
                # Deepen the input pipeline when many batch tiles stream in.
                specs = [pl.BlockSpec((tile_b, in_pad), lambda i: (i, 0),
                                      pipeline_mode=pl.Buffered(3))]
            else:
                specs = [pl.BlockSpec((tile_b, in_pad), lambda i: (i, 0))]
            for ws, bs in wb_shapes:
                if use_pipeline_mode:
                    # Constant index_map -> single-buffered resident params.
                    specs.append(pl.BlockSpec(ws, lambda i: (0, 0),
                                              pipeline_mode=pl.Buffered(1)))
                    specs.append(pl.BlockSpec(bs, lambda i: (0, 0),
                                              pipeline_mode=pl.Buffered(1)))
                else:
                    specs.append(pl.BlockSpec(ws, lambda i: (0, 0)))
                    specs.append(pl.BlockSpec(bs, lambda i: (0, 0)))
            return specs

        # v7x: CORE_PARALLEL actually splits batch tiles across the 2 TCs.
        if is_v7x and num_tiles > 1:
            sem_candidates = ((getattr(pltpu, "CORE_PARALLEL", "parallel"),),
                              ("parallel",), ("arbitrary",))
        else:
            sem_candidates = (("parallel",), ("arbitrary",))

        configs = [(True, s) for s in sem_candidates]
        configs += [(False, s) for s in sem_candidates]

        last_err = None
        for use_pm, sem in configs:
            try:
                call = pl.pallas_call(
                    kernel,
                    grid=(num_tiles,),
                    in_specs=build_in_specs(use_pm),
                    out_specs=out_spec,
                    out_shape=out_shape,
                    compiler_params=pltpu.CompilerParams(
                        dimension_semantics=sem,
                        vmem_limit_bytes=vmem_limit),
                )
                return jax.block_until_ready(call(*args))
            except Exception as e:   # fall back to a plainer configuration
                last_err = e
        raise last_err

    # -- forward ---------------------------------------------------------------

    def __call__(self, x):
        batch = x.shape[0]
        # nn.Flatten(): keep batch dim, flatten NCHW row-major.
        h = jnp.reshape(x, (batch, -1)).astype(jnp.float32)
        assert h.shape[1] == self.sizes[0], (h.shape, self.sizes)

        budget, limit_cap, is_v7x = self._tpu_vmem_budget()
        num_layers = len(self.weights)

        # Peel head layers into the K-tiled path while the remaining resident
        # parameters do not fit the fused-kernel VMEM budget (v7x bites first).
        fused_param_budget = max(budget - (16 << 20), budget // 2)
        head = 0
        while head < num_layers and self._param_bytes(head) > fused_param_budget:
            head += 1
        tail_layers = num_layers - head

        if tail_layers > 0:
            tile_b = self._pick_batch_tile(batch, head, budget,
                                           self._param_bytes(head))
        else:
            tile_b = min(256, _round_up(batch, _SUBLANE))
        b_pad = _round_up(batch, tile_b)

        # Zero-pad batch rows + input feature columns (padded weight rows/cols
        # are zero, so padding never leaks into real outputs), then cast the
        # slab to the MXU operand dtype (bf16 default) to halve HBM DMA bytes.
        in_pad0 = self.padded_sizes[0]
        h = jnp.pad(h, ((0, b_pad - batch), (0, in_pad0 - self.sizes[0])))
        h = h.astype(self.param_dtype)

        for i in range(head):     # only taken when weights overflow VMEM
            h = self._layer_ktiled(h, i, b_pad, limit_cap)

        if tail_layers == 0:
            return h[:batch, :self.sizes[-1]].astype(jnp.float32)

        out = self._fused_tail(h, head, tile_b, b_pad, limit_cap, is_v7x)
        return out[:batch, :self.sizes[-1]]


def _reference_numpy(model, x):
    """Accurate f32 reference of the original (unfolded, unpadded) forward."""
    h = np.asarray(x, dtype=np.float32).reshape(x.shape[0], -1)
    h = (h - model.mean) / model.std
    for w, b in zip(model._orig_weights, model._orig_biases):
        y = h @ np.asarray(w, dtype=np.float32) + np.asarray(b, dtype=np.float32)
        h = 1.0 / (1.0 + np.exp(-y)) if model.act == "sigmoid" else np.maximum(y, 0.0)
    return h


if __name__ == "__main__":
    # NCHW input: batch=2, channels=4, spatial=16x16 -> 1024 flattened features.
    B, C, H, W = 2, 4, 16, 16
    x = jax.random.normal(jax.random.PRNGKey(0), (B, C, H, W), dtype=jnp.float32)

    sizes = [C * H * W, 256, 64]   # Flatten -> Linear+sigmoid -> Linear+sigmoid
    model = SlipModelPallas(sizes, activate_function="sigmoid", mean=0.5, std=2.0,
                            key=jax.random.PRNGKey(1))

    out = jax.block_until_ready(model(x))
    assert out.shape == (B, sizes[-1]), out.shape

    ref = _reference_numpy(model, x)
    # bf16 MXU operands loosen the tolerance vs the pure-f32 reference.
    tol = 2e-2 if np.dtype(model.param_dtype) == np.dtype(jnp.bfloat16) else 2e-3
    err = float(np.max(np.abs(np.asarray(out, dtype=np.float32) - ref)))
    assert err <= tol, err

    print("KERNEL_OK")
</pallas_src>

<mosaic_0001>
module attributes {stable_mosaic.version = 11 : i64} {
  func.func @_mlp_fused_kernel(%arg0: i32, %arg1: memref<8x1024xbf16, #tpu.memory_space<vmem>>, %arg2: memref<1024x256xbf16, #tpu.memory_space<vmem>>, %arg3: memref<1x256xbf16, #tpu.memory_space<vmem>>, %arg4: memref<256x128xbf16, #tpu.memory_space<vmem>>, %arg5: memref<1x128xbf16, #tpu.memory_space<vmem>>, %arg6: memref<8x128xf32, #tpu.memory_space<vmem>>) attributes {dimension_semantics = [#tpu.dimension_semantics<parallel>], iteration_bounds = array<i64: 1>, scalar_prefetch = 0 : i64, scratch_operands = 0 : i64, tpu.core_type = #tpu.core_type<tc>, window_params = [{transform_indices = @transform_0, window_bounds = array<i64: 8, 1024>}, {pipeline_mode = #tpu.pipeline_mode<synchronous>, transform_indices = @transform_1, window_bounds = array<i64: 1024, 256>}, {pipeline_mode = #tpu.pipeline_mode<synchronous>, transform_indices = @transform_2, window_bounds = array<i64: 1, 256>}, {pipeline_mode = #tpu.pipeline_mode<synchronous>, transform_indices = @transform_3, window_bounds = array<i64: 256, 128>}, {pipeline_mode = #tpu.pipeline_mode<synchronous>, transform_indices = @transform_4, window_bounds = array<i64: 1, 128>}, {transform_indices = @transform_5, window_bounds = array<i64: 8, 128>}]} {
    %c0 = arith.constant 0 : index
    %c0_0 = arith.constant 0 : index
    %0 = vector.load %arg1[%c0, %c0_0] : memref<8x1024xbf16, #tpu.memory_space<vmem>>, vector<8x1024xbf16>
    %c0_1 = arith.constant 0 : index
    %c0_2 = arith.constant 0 : index
    %1 = vector.load %arg2[%c0_1, %c0_2] : memref<1024x256xbf16, #tpu.memory_space<vmem>>, vector<1024x256xbf16>
    %cst = arith.constant dense<0.000000e+00> : vector<8x256xf32>
    %2 = tpu.matmul %0, %1, %cst {dimension_numbers = #tpu.dot_dimension_numbers<[1], [0], [0], [1], [0, 0, 1, 1], [], []>} : vector<8x1024xbf16>, vector<1024x256xbf16>, vector<8x256xf32> -> vector<8x256xf32>
    %c0_3 = arith.constant 0 : index
    %c0_4 = arith.constant 0 : index
    %3 = vector.load %arg3[%c0_3, %c0_4] : memref<1x256xbf16, #tpu.memory_space<vmem>>, vector<1x256xbf16>
    %4 = arith.extf %3 : vector<1x256xbf16> to vector<1x256xf32>
    %5 = vector.broadcast %4 : vector<1x256xf32> to vector<8x256xf32>
    %6 = arith.addf %2, %5 : vector<8x256xf32>
    %7 = arith.negf %6 : vector<8x256xf32>
    %8 = math.exp %7 : vector<8x256xf32>
    %cst_5 = arith.constant 1.000000e+00 : f32
    %9 = vector.broadcast %cst_5 : f32 to vector<8x256xf32>
    %10 = arith.addf %9, %8 : vector<8x256xf32>
    %11 = arith.divf %9, %10 : vector<8x256xf32>
    %12 = arith.truncf %11 : vector<8x256xf32> to vector<8x256xbf16>
    %c0_6 = arith.constant 0 : index
    %c0_7 = arith.constant 0 : index
    %13 = vector.load %arg4[%c0_6, %c0_7] : memref<256x128xbf16, #tpu.memory_space<vmem>>, vector<256x128xbf16>
    %cst_8 = arith.constant dense<0.000000e+00> : vector<8x128xf32>
    %14 = tpu.matmul %12, %13, %cst_8 {dimension_numbers = #tpu.dot_dimension_numbers<[1], [0], [0], [1], [0, 0, 1, 1], [], []>} : vector<8x256xbf16>, vector<256x128xbf16>, vector<8x128xf32> -> vector<8x128xf32>
    %c0_9 = arith.constant 0 : index
    %c0_10 = arith.constant 0 : index
    %15 = vector.load %arg5[%c0_9, %c0_10] : memref<1x128xbf16, #tpu.memory_space<vmem>>, vector<1x128xbf16>
    %16 = arith.extf %15 : vector<1x128xbf16> to vector<1x128xf32>
    %17 = vector.broadcast %16 : vector<1x128xf32> to vector<8x128xf32>
    %18 = arith.addf %14, %17 : vector<8x128xf32>
    %19 = arith.negf %18 : vector<8x128xf32>
    %20 = math.exp %19 : vector<8x128xf32>
    %cst_11 = arith.constant 1.000000e+00 : f32
    %21 = vector.broadcast %cst_11 : f32 to vector<8x128xf32>
    %22 = arith.addf %21, %20 : vector<8x128xf32>
    %23 = arith.divf %21, %22 : vector<8x128xf32>
    %c0_12 = arith.constant 0 : index
    %c0_13 = arith.constant 0 : index
    %24 = vector.load %arg6[%c0_12, %c0_13] : memref<8x128xf32, #tpu.memory_space<vmem>>, vector<8x128xf32>
    tpu.vector_store %arg6[%c0_12, %c0_13], %23 {strides = array<i32>} : memref<8x128xf32, #tpu.memory_space<vmem>>, vector<8x128xf32>,
    return
  }
  func.func @transform_0(%arg0: i32) -> (i32, i32) {
    %c0_i32 = arith.constant 0 : i32
    %c0_i32_0 = arith.constant 0 : i32
    return %arg0, %c0_i32 : i32, i32
  }
  func.func @transform_1(%arg0: i32) -> (i32, i32) {
    %c0_i32 = arith.constant 0 : i32
    %c0_i32_0 = arith.constant 0 : i32
    %c0_i32_1 = arith.constant 0 : i32
    return %c0_i32, %c0_i32_0 : i32, i32
  }
  func.func @transform_2(%arg0: i32) -> (i32, i32) {
    %c0_i32 = arith.constant 0 : i32
    %c0_i32_0 = arith.constant 0 : i32
    %c0_i32_1 = arith.constant 0 : i32
    return %c0_i32, %c0_i32_0 : i32, i32
  }
  func.func @transform_3(%arg0: i32) -> (i32, i32) {
    %c0_i32 = arith.constant 0 : i32
    %c0_i32_0 = arith.constant 0 : i32
    %c0_i32_1 = arith.constant 0 : i32
    return %c0_i32, %c0_i32_0 : i32, i32
  }
  func.func @transform_4(%arg0: i32) -> (i32, i32) {
    %c0_i32 = arith.constant 0 : i32
    %c0_i32_0 = arith.constant 0 : i32
    %c0_i32_1 = arith.constant 0 : i32
    return %c0_i32, %c0_i32_0 : i32, i32
  }
  func.func @transform_5(%arg0: i32) -> (i32, i32) {
    %c0_i32 = arith.constant 0 : i32
    %c0_i32_0 = arith.constant 0 : i32
    return %arg0, %c0_i32 : i32, i32
  }
}

module attributes {stable_mosaic.version = 11 : i64} {
  func.func @_mlp_fused_kernel(%arg0: i32, %arg1: memref<8x1024xbf16, #tpu.memory_space<vmem>>, %arg2: memref<1024x256xbf16, #tpu.memory_space<vmem>>, %arg3: memref<1x256xbf16, #tpu.memory_space<vmem>>, %arg4: memref<256x128xbf16, #tpu.memory_space<vmem>>, %arg5: memref<1x128xbf16, #tpu.memory_space<vmem>>, %arg6: memref<8x128xf32, #tpu.memory_space<vmem>>) attributes {dimension_semantics = [#tpu.dimension_semantics<arbitrary>], iteration_bounds = array<i64: 1>, scalar_prefetch = 0 : i64, scratch_operands = 0 : i64, tpu.core_type = #tpu.core_type<tc>, window_params = [{transform_indices = @transform_0, window_bounds = array<i64: 8, 1024>}, {pipeline_mode = #tpu.pipeline_mode<synchronous>, transform_indices = @transform_1, window_bounds = array<i64: 1024, 256>}, {pipeline_mode = #tpu.pipeline_mode<synchronous>, transform_indices = @transform_2, window_bounds = array<i64: 1, 256>}, {pipeline_mode = #tpu.pipeline_mode<synchronous>, transform_indices = @transform_3, window_bounds = array<i64: 256, 128>}, {pipeline_mode = #tpu.pipeline_mode<synchronous>, transform_indices = @transform_4, window_bounds = array<i64: 1, 128>}, {transform_indices = @transform_5, window_bounds = array<i64: 8, 128>}]} {
    %c0 = arith.constant 0 : index
    %c0_0 = arith.constant 0 : index
    %0 = vector.load %arg1[%c0, %c0_0] : memref<8x1024xbf16, #tpu.memory_space<vmem>>, vector<8x1024xbf16>
    %c0_1 = arith.constant 0 : index
    %c0_2 = arith.constant 0 : index
    %1 = vector.load %arg2[%c0_1, %c0_2] : memref<1024x256xbf16, #tpu.memory_space<vmem>>, vector<1024x256xbf16>
    %cst = arith.constant dense<0.000000e+00> : vector<8x256xf32>
    %2 = tpu.matmul %0, %1, %cst {dimension_numbers = #tpu.dot_dimension_numbers<[1], [0], [0], [1], [0, 0, 1, 1], [], []>} : vector<8x1024xbf16>, vector<1024x256xbf16>, vector<8x256xf32> -> vector<8x256xf32>
    %c0_3 = arith.constant 0 : index
    %c0_4 = arith.constant 0 : index
    %3 = vector.load %arg3[%c0_3, %c0_4] : memref<1x256xbf16, #tpu.memory_space<vmem>>, vector<1x256xbf16>
    %4 = arith.extf %3 : vector<1x256xbf16> to vector<1x256xf32>
    %5 = vector.broadcast %4 : vector<1x256xf32> to vector<8x256xf32>
    %6 = arith.addf %2, %5 : vector<8x256xf32>
    %7 = arith.negf %6 : vector<8x256xf32>
    %8 = math.exp %7 : vector<8x256xf32>
    %cst_5 = arith.constant 1.000000e+00 : f32
    %9 = vector.broadcast %cst_5 : f32 to vector<8x256xf32>
    %10 = arith.addf %9, %8 : vector<8x256xf32>
    %11 = arith.divf %9, %10 : vector<8x256xf32>
    %12 = arith.truncf %11 : vector<8x256xf32> to vector<8x256xbf16>
    %c0_6 = arith.constant 0 : index
    %c0_7 = arith.constant 0 : index
    %13 = vector.load %arg4[%c0_6, %c0_7] : memref<256x128xbf16, #tpu.memory_space<vmem>>, vector<256x128xbf16>
    %cst_8 = arith.constant dense<0.000000e+00> : vector<8x128xf32>
    %14 = tpu.matmul %12, %13, %cst_8 {dimension_numbers = #tpu.dot_dimension_numbers<[1], [0], [0], [1], [0, 0, 1, 1], [], []>} : vector<8x256xbf16>, vector<256x128xbf16>, vector<8x128xf32> -> vector<8x128xf32>
    %c0_9 = arith.constant 0 : index
    %c0_10 = arith.constant 0 : index
    %15 = vector.load %arg5[%c0_9, %c0_10] : memref<1x128xbf16, #tpu.memory_space<vmem>>, vector<1x128xbf16>
    %16 = arith.extf %15 : vector<1x128xbf16> to vector<1x128xf32>
    %17 = vector.broadcast %16 : vector<1x128xf32> to vector<8x128xf32>
    %18 = arith.addf %14, %17 : vector<8x128xf32>
    %19 = arith.negf %18 : vector<8x128xf32>
    %20 = math.exp %19 : vector<8x128xf32>
    %cst_11 = arith.constant 1.000000e+00 : f32
    %21 = vector.broadcast %cst_11 : f32 to vector<8x128xf32>
    %22 = arith.addf %21, %20 : vector<8x128xf32>
    %23 = arith.divf %21, %22 : vector<8x128xf32>
    %c0_12 = arith.constant 0 : index
    %c0_13 = arith.constant 0 : index
    %24 = vector.load %arg6[%c0_12, %c0_13] : memref<8x128xf32, #tpu.memory_space<vmem>>, vector<8x128xf32>
    tpu.vector_store %arg6[%c0_12, %c0_13], %23 {strides = array<i32>} : memref<8x128xf32, #tpu.memory_space<vmem>>, vector<8x128xf32>,
    return
  }
  func.func @transform_0(%arg0: i32) -> (i32, i32) {
    %c0_i32 = arith.constant 0 : i32
    %c0_i32_0 = arith.constant 0 : i32
    return %arg0, %c0_i32 : i32, i32
  }
  func.func @transform_1(%arg0: i32) -> (i32, i32) {
    %c0_i32 = arith.constant 0 : i32
    %c0_i32_0 = arith.constant 0 : i32
    %c0_i32_1 = arith.constant 0 : i32
    return %c0_i32, %c0_i32_0 : i32, i32
  }
  func.func @transform_2(%arg0: i32) -> (i32, i32) {
    %c0_i32 = arith.constant 0 : i32
    %c0_i32_0 = arith.constant 0 : i32
    %c0_i32_1 = arith.constant 0 : i32
    return %c0_i32, %c0_i32_0 : i32, i32
  }
  func.func @transform_3(%arg0: i32) -> (i32, i32) {
    %c0_i32 = arith.constant 0 : i32
    %c0_i32_0 = arith.constant 0 : i32
    %c0_i32_1 = arith.constant 0 : i32
    return %c0_i32, %c0_i32_0 : i32, i32
  }
  func.func @transform_4(%arg0: i32) -> (i32, i32) {
    %c0_i32 = arith.constant 0 : i32
    %c0_i32_0 = arith.constant 0 : i32
    %c0_i32_1 = arith.constant 0 : i32
    return %c0_i32, %c0_i32_0 : i32, i32
  }
  func.func @transform_5(%arg0: i32) -> (i32, i32) {
    %c0_i32 = arith.constant 0 : i32
    %c0_i32_0 = arith.constant 0 : i32
    return %arg0, %c0_i32 : i32, i32
  }
}

module attributes {stable_mosaic.version = 11 : i64} {
  func.func @_mlp_fused_kernel(%arg0: i32, %arg1: memref<8x1024xbf16, #tpu.memory_space<vmem>>, %arg2: memref<1024x256xbf16, #tpu.memory_space<vmem>>, %arg3: memref<1x256xbf16, #tpu.memory_space<vmem>>, %arg4: memref<256x128xbf16, #tpu.memory_space<vmem>>, %arg5: memref<1x128xbf16, #tpu.memory_space<vmem>>, %arg6: memref<8x128xf32, #tpu.memory_space<vmem>>) attributes {dimension_semantics = [#tpu.dimension_semantics<parallel>], iteration_bounds = array<i64: 1>, scalar_prefetch = 0 : i64, scratch_operands = 0 : i64, tpu.core_type = #tpu.core_type<tc>, window_params = [{transform_indices = @transform_0, window_bounds = array<i64: 8, 1024>}, {pipeline_mode = #tpu.pipeline_mode<synchronous>, transform_indices = @transform_1, window_bounds = array<i64: 1024, 256>}, {pipeline_mode = #tpu.pipeline_mode<synchronous>, transform_indices = @transform_2, window_bounds = array<i64: 1, 256>}, {pipeline_mode = #tpu.pipeline_mode<synchronous>, transform_indices = @transform_3, window_bounds = array<i64: 256, 128>}, {pipeline_mode = #tpu.pipeline_mode<synchronous>, transform_indices = @transform_4, window_bounds = array<i64: 1, 128>}, {transform_indices = @transform_5, window_bounds = array<i64: 8, 128>}]} {
    %c0 = arith.constant 0 : index
    %c0_0 = arith.constant 0 : index
    %0 = vector.load %arg1[%c0, %c0_0] : memref<8x1024xbf16, #tpu.memory_space<vmem>>, vector<8x1024xbf16>
    %c0_1 = arith.constant 0 : index
    %c0_2 = arith.constant 0 : index
    %1 = vector.load %arg2[%c0_1, %c0_2] : memref<1024x256xbf16, #tpu.memory_space<vmem>>, vector<1024x256xbf16>
    %cst = arith.constant dense<0.000000e+00> : vector<8x256xf32>
    %2 = tpu.matmul %0, %1, %cst {dimension_numbers = #tpu.dot_dimension_numbers<[1], [0], [0], [1], [0, 0, 1, 1], [], []>} : vector<8x1024xbf16>, vector<1024x256xbf16>, vector<8x256xf32> -> vector<8x256xf32>
    %c0_3 = arith.constant 0 : index
    %c0_4 = arith.constant 0 : index
    %3 = vector.load %arg3[%c0_3, %c0_4] : memref<1x256xbf16, #tpu.memory_space<vmem>>, vector<1x256xbf16>
    %4 = arith.extf %3 : vector<1x256xbf16> to vector<1x256xf32>
    %5 = vector.broadcast %4 : vector<1x256xf32> to vector<8x256xf32>
    %6 = arith.addf %2, %5 : vector<8x256xf32>
    %7 = arith.negf %6 : vector<8x256xf32>
    %8 = math.exp %7 : vector<8x256xf32>
    %cst_5 = arith.constant 1.000000e+00 : f32
    %9 = vector.broadcast %cst_5 : f32 to vector<8x256xf32>
    %10 = arith.addf %9, %8 : vector<8x256xf32>
    %11 = arith.divf %9, %10 : vector<8x256xf32>
    %12 = arith.truncf %11 : vector<8x256xf32> to vector<8x256xbf16>
    %c0_6 = arith.constant 0 : index
    %c0_7 = arith.constant 0 : index
    %13 = vector.load %arg4[%c0_6, %c0_7] : memref<256x128xbf16, #tpu.memory_space<vmem>>, vector<256x128xbf16>
    %cst_8 = arith.constant dense<0.000000e+00> : vector<8x128xf32>
    %14 = tpu.matmul %12, %13, %cst_8 {dimension_numbers = #tpu.dot_dimension_numbers<[1], [0], [0], [1], [0, 0, 1, 1], [], []>} : vector<8x256xbf16>, vector<256x128xbf16>, vector<8x128xf32> -> vector<8x128xf32>
    %c0_9 = arith.constant 0 : index
    %c0_10 = arith.constant 0 : index
    %15 = vector.load %arg5[%c0_9, %c0_10] : memref<1x128xbf16, #tpu.memory_space<vmem>>, vector<1x128xbf16>
    %16 = arith.extf %15 : vector<1x128xbf16> to vector<1x128xf32>
    %17 = vector.broadcast %16 : vector<1x128xf32> to vector<8x128xf32>
    %18 = arith.addf %14, %17 : vector<8x128xf32>
    %19 = arith.negf %18 : vector<8x128xf32>
    %20 = math.exp %19 : vector<8x128xf32>
    %cst_11 = arith.constant 1.000000e+00 : f32
    %21 = vector.broadcast %cst_11 : f32 to vector<8x128xf32>
    %22 = arith.addf %21, %20 : vector<8x128xf32>
    %23 = arith.divf %21, %22 : vector<8x128xf32>
    %c0_12 = arith.constant 0 : index
    %c0_13 = arith.constant 0 : index
    %24 = vector.load %arg6[%c0_12, %c0_13] : memref<8x128xf32, #tpu.memory_space<vmem>>, vector<8x128xf32>
    tpu.vector_store %arg6[%c0_12, %c0_13], %23 {strides = array<i32>} : memref<8x128xf32, #tpu.memory_space<vmem>>, vector<8x128xf32>,
    return
  }
  func.func @transform_0(%arg0: i32) -> (i32, i32) {
    %c0_i32 = arith.constant 0 : i32
    %c0_i32_0 = arith.constant 0 : i32
    return %arg0, %c0_i32 : i32, i32
  }
  func.func @transform_1(%arg0: i32) -> (i32, i32) {
    %c0_i32 = arith.constant 0 : i32
    %c0_i32_0 = arith.constant 0 : i32
    %c0_i32_1 = arith.constant 0 : i32
    return %c0_i32, %c0_i32_0 : i32, i32
  }
  func.func @transform_2(%arg0: i32) -> (i32, i32) {
    %c0_i32 = arith.constant 0 : i32
    %c0_i32_0 = arith.constant 0 : i32
    %c0_i32_1 = arith.constant 0 : i32
    return %c0_i32, %c0_i32_0 : i32, i32
  }
  func.func @transform_3(%arg0: i32) -> (i32, i32) {
    %c0_i32 = arith.constant 0 : i32
    %c0_i32_0 = arith.constant 0 : i32
    %c0_i32_1 = arith.constant 0 : i32
    return %c0_i32, %c0_i32_0 : i32, i32
  }
  func.func @transform_4(%arg0: i32) -> (i32, i32) {
    %c0_i32 = arith.constant 0 : i32
    %c0_i32_0 = arith.constant 0 : i32
    %c0_i32_1 = arith.constant 0 : i32
    return %c0_i32, %c0_i32_0 : i32, i32
  }
  func.func @transform_5(%arg0: i32) -> (i32, i32) {
    %c0_i32 = arith.constant 0 : i32
    %c0_i32_0 = arith.constant 0 : i32
    return %arg0, %c0_i32 : i32, i32
  }
}

module attributes {stable_mosaic.version = 11 : i64} {
  func.func @_mlp_fused_kernel(%arg0: i32, %arg1: memref<8x1024xbf16, #tpu.memory_space<vmem>>, %arg2: memref<1024x256xbf16, #tpu.memory_space<vmem>>, %arg3: memref<1x256xbf16, #tpu.memory_space<vmem>>, %arg4: memref<256x128xbf16, #tpu.memory_space<vmem>>, %arg5: memref<1x128xbf16, #tpu.memory_space<vmem>>, %arg6: memref<8x128xf32, #tpu.memory_space<vmem>>) attributes {dimension_semantics = [#tpu.dimension_semantics<arbitrary>], iteration_bounds = array<i64: 1>, scalar_prefetch = 0 : i64, scratch_operands = 0 : i64, tpu.core_type = #tpu.core_type<tc>, window_params = [{transform_indices = @transform_0, window_bounds = array<i64: 8, 1024>}, {pipeline_mode = #tpu.pipeline_mode<synchronous>, transform_indices = @transform_1, window_bounds = array<i64: 1024, 256>}, {pipeline_mode = #tpu.pipeline_mode<synchronous>, transform_indices = @transform_2, window_bounds = array<i64: 1, 256>}, {pipeline_mode = #tpu.pipeline_mode<synchronous>, transform_indices = @transform_3, window_bounds = array<i64: 256, 128>}, {pipeline_mode = #tpu.pipeline_mode<synchronous>, transform_indices = @transform_4, window_bounds = array<i64: 1, 128>}, {transform_indices = @transform_5, window_bounds = array<i64: 8, 128>}]} {
    %c0 = arith.constant 0 : index
    %c0_0 = arith.constant 0 : index
    %0 = vector.load %arg1[%c0, %c0_0] : memref<8x1024xbf16, #tpu.memory_space<vmem>>, vector<8x1024xbf16>
    %c0_1 = arith.constant 0 : index
    %c0_2 = arith.constant 0 : index
    %1 = vector.load %arg2[%c0_1, %c0_2] : memref<1024x256xbf16, #tpu.memory_space<vmem>>, vector<1024x256xbf16>
    %cst = arith.constant dense<0.000000e+00> : vector<8x256xf32>
    %2 = tpu.matmul %0, %1, %cst {dimension_numbers = #tpu.dot_dimension_numbers<[1], [0], [0], [1], [0, 0, 1, 1], [], []>} : vector<8x1024xbf16>, vector<1024x256xbf16>, vector<8x256xf32> -> vector<8x256xf32>
    %c0_3 = arith.constant 0 : index
    %c0_4 = arith.constant 0 : index
    %3 = vector.load %arg3[%c0_3, %c0_4] : memref<1x256xbf16, #tpu.memory_space<vmem>>, vector<1x256xbf16>
    %4 = arith.extf %3 : vector<1x256xbf16> to vector<1x256xf32>
    %5 = vector.broadcast %4 : vector<1x256xf32> to vector<8x256xf32>
    %6 = arith.addf %2, %5 : vector<8x256xf32>
    %7 = arith.negf %6 : vector<8x256xf32>
    %8 = math.exp %7 : vector<8x256xf32>
    %cst_5 = arith.constant 1.000000e+00 : f32
    %9 = vector.broadcast %cst_5 : f32 to vector<8x256xf32>
    %10 = arith.addf %9, %8 : vector<8x256xf32>
    %11 = arith.divf %9, %10 : vector<8x256xf32>
    %12 = arith.truncf %11 : vector<8x256xf32> to vector<8x256xbf16>
    %c0_6 = arith.constant 0 : index
    %c0_7 = arith.constant 0 : index
    %13 = vector.load %arg4[%c0_6, %c0_7] : memref<256x128xbf16, #tpu.memory_space<vmem>>, vector<256x128xbf16>
    %cst_8 = arith.constant dense<0.000000e+00> : vector<8x128xf32>
    %14 = tpu.matmul %12, %13, %cst_8 {dimension_numbers = #tpu.dot_dimension_numbers<[1], [0], [0], [1], [0, 0, 1, 1], [], []>} : vector<8x256xbf16>, vector<256x128xbf16>, vector<8x128xf32> -> vector<8x128xf32>
    %c0_9 = arith.constant 0 : index
    %c0_10 = arith.constant 0 : index
    %15 = vector.load %arg5[%c0_9, %c0_10] : memref<1x128xbf16, #tpu.memory_space<vmem>>, vector<1x128xbf16>
    %16 = arith.extf %15 : vector<1x128xbf16> to vector<1x128xf32>
    %17 = vector.broadcast %16 : vector<1x128xf32> to vector<8x128xf32>
    %18 = arith.addf %14, %17 : vector<8x128xf32>
    %19 = arith.negf %18 : vector<8x128xf32>
    %20 = math.exp %19 : vector<8x128xf32>
    %cst_11 = arith.constant 1.000000e+00 : f32
    %21 = vector.broadcast %cst_11 : f32 to vector<8x128xf32>
    %22 = arith.addf %21, %20 : vector<8x128xf32>
    %23 = arith.divf %21, %22 : vector<8x128xf32>
    %c0_12 = arith.constant 0 : index
    %c0_13 = arith.constant 0 : index
    %24 = vector.load %arg6[%c0_12, %c0_13] : memref<8x128xf32, #tpu.memory_space<vmem>>, vector<8x128xf32>
    tpu.vector_store %arg6[%c0_12, %c0_13], %23 {strides = array<i32>} : memref<8x128xf32, #tpu.memory_space<vmem>>, vector<8x128xf32>,
    return
  }
  func.func @transform_0(%arg0: i32) -> (i32, i32) {
    %c0_i32 = arith.constant 0 : i32
    %c0_i32_0 = arith.constant 0 : i32
    return %arg0, %c0_i32 : i32, i32
  }
  func.func @transform_1(%arg0: i32) -> (i32, i32) {
    %c0_i32 = arith.constant 0 : i32
    %c0_i32_0 = arith.constant 0 : i32
    %c0_i32_1 = arith.constant 0 : i32
    return %c0_i32, %c0_i32_0 : i32, i32
  }
  func.func @transform_2(%arg0: i32) -> (i32, i32) {
    %c0_i32 = arith.constant 0 : i32
    %c0_i32_0 = arith.constant 0 : i32
    %c0_i32_1 = arith.constant 0 : i32
    return %c0_i32, %c0_i32_0 : i32, i32
  }
  func.func @transform_3(%arg0: i32) -> (i32, i32) {
    %c0_i32 = arith.constant 0 : i32
    %c0_i32_0 = arith.constant 0 : i32
    %c0_i32_1 = arith.constant 0 : i32
    return %c0_i32, %c0_i32_0 : i32, i32
  }
  func.func @transform_4(%arg0: i32) -> (i32, i32) {
    %c0_i32 = arith.constant 0 : i32
    %c0_i32_0 = arith.constant 0 : i32
    %c0_i32_1 = arith.constant 0 : i32
    return %c0_i32, %c0_i32_0 : i32, i32
  }
  func.func @transform_5(%arg0: i32) -> (i32, i32) {
    %c0_i32 = arith.constant 0 : i32
    %c0_i32_0 = arith.constant 0 : i32
    return %arg0, %c0_i32 : i32, i32
  }
}

</mosaic_0001>

<llo_original>
// kernel: tpu_custom_call.1
$region0: #{tpu_custom_call.1}
  #allocation0 [shape = 'u32[]', space=smem, size = 0x4, offset = 0x4, fixed_abs, tag = 'smem constant byte address 0x4 - core index']
  #allocation1 [shape = 'u32[144,128]{1,0:T(1,128)}', space=vmem, size = 0x12000, scoped, tag = 'internal scratch']
  %s0 = inlined_call_operand.hbm [shape: bf16[8,1024], index: 0, kind: input, shape index: {}]
  %s1 = inlined_call_operand.hbm [shape: bf16[1024,256], index: 1, kind: input, shape index: {}]
  %s2 = inlined_call_operand.vmem [shape: bf16[1,256], index: 2, kind: input, shape index: {}]
  %s3 = inlined_call_operand.hbm [shape: bf16[256,128], index: 3, kind: input, shape index: {}]
  %s4 = inlined_call_operand.vmem [shape: bf16[1,128], index: 4, kind: input, shape index: {}]
  %s5 = inlined_call_operand.hbm [shape: f32[8,128], index: 5, kind: output, shape index: {}]
  %s6 = sld [smem:[#allocation0]]
  $region42: #{tpu_custom_call.1} parent=0
    _
  %s8 = ssub.s32 1, %s6
  %s9 = scalar_select 0, %s8, %s6
  $region1: #{tpu_custom_call.1} parent=0
    #allocation2 [shape = 'u8[16384]{0}', space=vmem, size = 0x4000, scoped, tag = 'input window, operand 0, single buffered']
    #allocation3 [shape = 's32[1]{0}', space=sflag, size = 0x4, scoped, tag = 'scoped memory for tpu_custom_call.1']
    #allocation4 [shape = 's32[1]{0}', space=sflag, size = 0x4, scoped, tag = 'scoped memory for tpu_custom_call.1']
    #allocation5 [shape = 'u8[524288]{0}', space=vmem, size = 0x80000, scoped, tag = 'input window, operand 1, single buffered']
    #allocation6 [shape = 's32[1]{0}', space=sflag, size = 0x4, scoped, tag = 'scoped memory for tpu_custom_call.1']
    #allocation7 [shape = 'u8[65536]{0}', space=vmem, size = 0x10000, scoped, tag = 'input window, operand 3, single buffered']
    #allocation8 [shape = 'u8[4096]{0}', space=vmem, size = 0x1000, scoped, tag = 'output window, operand 0, single buffered']
    %10 = vsyncpa [#allocation3], 0
    %11 = vsyncpa [#allocation6], 0
    %12 = vsyncpa [#allocation4], 0
    // Predicated region
    $region2: #{tpu_custom_call.1} parent=1 // pred_check
      _
    $region3: #{tpu_custom_call.1} parent=1 // pred_check_branch
      %14 = sbr.rel (0) target = $region5
    $region4: #{tpu_custom_call.1} parent=1 // pred_region
      %s16 = ssub.s32 512, 512
      %17 = vsyncadd [#allocation3], %s16
      %s19 = sshll.u32 [#allocation2], 4
      %s20 = int_to_ptr.vmem [resolvable:$true] %s19
      %22 = dma.hbm_to_vmem [thread:$0]  %s0, 512, %s20, [#allocation3]
    $region5: #{tpu_custom_call.1} parent=1 // pred_fallthru
      _
    // Predicated region
    $region6: #{tpu_custom_call.1} parent=1 // pred_check
      _
    $region7: #{tpu_custom_call.1} parent=1 // pred_check_branch
      %24 = sbr.rel (0) target = $region9
    $region8: #{tpu_custom_call.1} parent=1 // pred_region
      %s26 = ssub.s32 16384, 16384
      %27 = vsyncadd [#allocation6], %s26
      %s28 = sshll.u32 [#allocation5], 4
      %s29 = int_to_ptr.vmem [resolvable:$true] %s28
      %34 = dma.hbm_to_vmem [thread:$0]  %s1, 16384, %s29, [#allocation6], 128, 128, 8
    $region9: #{tpu_custom_call.1} parent=1 // pred_fallthru
      _
    // Predicated region
    $region10: #{tpu_custom_call.1} parent=1 // pred_check
      _
    $region11: #{tpu_custom_call.1} parent=1 // pred_check_branch
      %36 = sbr.rel (0) target = $region13
    $region12: #{tpu_custom_call.1} parent=1 // pred_region
      _
    $region13: #{tpu_custom_call.1} parent=1 // pred_fallthru
      _
    // Predicated region
    $region14: #{tpu_custom_call.1} parent=1 // pred_check
      _
    $region15: #{tpu_custom_call.1} parent=1 // pred_check_branch
      %38 = sbr.rel (0) target = $region17
    $region16: #{tpu_custom_call.1} parent=1 // pred_region
      %s40 = ssub.s32 2048, 2048
      %41 = vsyncadd [#allocation6], %s40
      %s42 = sshll.u32 [#allocation7], 4
      %s43 = int_to_ptr.vmem [resolvable:$true] %s42
      %48 = dma.hbm_to_vmem [thread:$0]  %s3, 2048, %s43, [#allocation6], 64, 64, 4
    $region17: #{tpu_custom_call.1} parent=1 // pred_fallthru
      _
    // Predicated region
    $region18: #{tpu_custom_call.1} parent=1 // pred_check
      _
    $region19: #{tpu_custom_call.1} parent=1 // pred_check_branch
      %50 = sbr.rel (0) target = $region21
    $region20: #{tpu_custom_call.1} parent=1 // pred_region
      _
    $region21: #{tpu_custom_call.1} parent=1 // pred_fallthru
      _
    // Predicated region
    $region22: #{tpu_custom_call.1} parent=1 // pred_check
      _
    $region23: #{tpu_custom_call.1} parent=1 // pred_check_branch
      %52 = sbr.rel (0) target = $region25
    $region24: #{tpu_custom_call.1} parent=1 // pred_region
      %53 = dma.done [#allocation3], 512
    $region25: #{tpu_custom_call.1} parent=1 // pred_fallthru
      _
    // Predicated region
    $region26: #{tpu_custom_call.1} parent=1 // pred_check
      _
    $region27: #{tpu_custom_call.1} parent=1 // pred_check_branch
      %55 = sbr.rel (0) target = $region29
    $region28: #{tpu_custom_call.1} parent=1 // pred_region
      %56 = dma.done [#allocation6], 16384
    $region29: #{tpu_custom_call.1} parent=1 // pred_fallthru
      _
    // Predicated region
    $region30: #{tpu_custom_call.1} parent=1 // pred_check
      _
    $region31: #{tpu_custom_call.1} parent=1 // pred_check_branch
      %58 = sbr.rel (0) target = $region33
    $region32: #{tpu_custom_call.1} parent=1 // pred_region
      %59 = dma.done [#allocation6], 2048
    $region33: #{tpu_custom_call.1} parent=1 // pred_fallthru
      _
    %v61 = vld [vmem:[#allocation2] sm:$0xff]
    %v62 = vld [vmem:[#allocation2 + $0x8] sm:$0xff]
    %v63 = vld [vmem:[#allocation2 + $0x10] sm:$0xff]
    %v64 = vld [vmem:[#allocation2 + $0x18] sm:$0xff]
    %v65 = vld [vmem:[#allocation5] sm:$0xff]
    %v66 = vld [vmem:[#allocation5 + $0x8] sm:$0xff]
    %v67 = vld [vmem:[#allocation5 + $0x10] sm:$0xff]
    %v68 = vld [vmem:[#allocation5 + $0x18] sm:$0xff]
    %v69 = vld [vmem:[#allocation5 + $0x20] sm:$0xff]
    %v70 = vld [vmem:[#allocation5 + $0x28] sm:$0xff]
    %v71 = vld [vmem:[#allocation5 + $0x30] sm:$0xff]
    %v72 = vld [vmem:[#allocation5 + $0x38] sm:$0xff]
    %v73 = vld [vmem:[#allocation5 + $0x40] sm:$0xff]
    %v74 = vld [vmem:[#allocation5 + $0x48] sm:$0xff]
    %v75 = vld [vmem:[#allocation5 + $0x50] sm:$0xff]
    %v76 = vld [vmem:[#allocation5 + $0x58] sm:$0xff]
    %v77 = vld [vmem:[#allocation5 + $0x60] sm:$0xff]
    %v78 = vld [vmem:[#allocation5 + $0x68] sm:$0xff]
    %v79 = vld [vmem:[#allocation5 + $0x70] sm:$0xff]
    %v80 = vld [vmem:[#allocation5 + $0x78] sm:$0xff]
    %v81 = vld [vmem:[#allocation5 + $0x80] sm:$0xff]
    %v82 = vld [vmem:[#allocation5 + $0x88] sm:$0xff]
    %v83 = vld [vmem:[#allocation5 + $0x90] sm:$0xff]
    %v84 = vld [vmem:[#allocation5 + $0x98] sm:$0xff]
    %v85 = vld [vmem:[#allocation5 + $0xa0] sm:$0xff]
    %v86 = vld [vmem:[#allocation5 + $0xa8] sm:$0xff]
    %v87 = vld [vmem:[#allocation5 + $0xb0] sm:$0xff]
    %v88 = vld [vmem:[#allocation5 + $0xb8] sm:$0xff]
    %v89 = vld [vmem:[#allocation5 + $0xc0] sm:$0xff]
    %v90 = vld [vmem:[#allocation5 + $0xc8] sm:$0xff]
    %v91 = vld [vmem:[#allocation5 + $0xd0] sm:$0xff]
    %v92 = vld [vmem:[#allocation5 + $0xd8] sm:$0xff]
    %v93 = vld [vmem:[#allocation5 + $0xe0] sm:$0xff]
    %v94 = vld [vmem:[#allocation5 + $0xe8] sm:$0xff]
    %v95 = vld [vmem:[#allocation5 + $0xf0] sm:$0xff]
    %v96 = vld [vmem:[#allocation5 + $0xf8] sm:$0xff]
    %v97 = vld [vmem:[#allocation5 + $0x100] sm:$0xff]
    %v98 = vld [vmem:[#allocation5 + $0x108] sm:$0xff]
    %v99 = vld [vmem:[#allocation5 + $0x110] sm:$0xff]
    %v100 = vld [vmem:[#allocation5 + $0x118] sm:$0xff]
    %v101 = vld [vmem:[#allocation5 + $0x120] sm:$0xff]
    %v102 = vld [vmem:[#allocation5 + $0x128] sm:$0xff]
    %v103 = vld [vmem:[#allocation5 + $0x130] sm:$0xff]
    %v104 = vld [vmem:[#allocation5 + $0x138] sm:$0xff]
    %v105 = vld [vmem:[#allocation5 + $0x140] sm:$0xff]
    %v106 = vld [vmem:[#allocation5 + $0x148] sm:$0xff]
    %v107 = vld [vmem:[#allocation5 + $0x150] sm:$0xff]
    %v108 = vld [vmem:[#allocation5 + $0x158] sm:$0xff]
    %v109 = vld [vmem:[#allocation5 + $0x160] sm:$0xff]
    %v110 = vld [vmem:[#allocation5 + $0x168] sm:$0xff]
    %v111 = vld [vmem:[#allocation5 + $0x170] sm:$0xff]
    %v112 = vld [vmem:[#allocation5 + $0x178] sm:$0xff]
    %v113 = vld [vmem:[#allocation5 + $0x180] sm:$0xff]
    %v114 = vld [vmem:[#allocation5 + $0x188] sm:$0xff]
    %v115 = vld [vmem:[#allocation5 + $0x190] sm:$0xff]
    %v116 = vld [vmem:[#allocation5 + $0x198] sm:$0xff]
    %v117 = vld [vmem:[#allocation5 + $0x1a0] sm:$0xff]
    %v118 = vld [vmem:[#allocation5 + $0x1a8] sm:$0xff]
    %v119 = vld [vmem:[#allocation5 + $0x1b0] sm:$0xff]
    %v120 = vld [vmem:[#allocation5 + $0x1b8] sm:$0xff]
    %v121 = vld [vmem:[#allocation5 + $0x1c0] sm:$0xff]
    %v122 = vld [vmem:[#allocation5 + $0x1c8] sm:$0xff]
    %v123 = vld [vmem:[#allocation5 + $0x1d0] sm:$0xff]
    %v124 = vld [vmem:[#allocation5 + $0x1d8] sm:$0xff]
    %v125 = vld [vmem:[#allocation5 + $0x1e0] sm:$0xff]
    %v126 = vld [vmem:[#allocation5 + $0x1e8] sm:$0xff]
    %v127 = vld [vmem:[#allocation5 + $0x1f0] sm:$0xff]
    %v128 = vld [vmem:[#allocation5 + $0x1f8] sm:$0xff]
    %v129 = vld [vmem:[#allocation5 + $0x200] sm:$0xff]
    %v130 = vld [vmem:[#allocation5 + $0x208] sm:$0xff]
    %v131 = vld [vmem:[#allocation5 + $0x210] sm:$0xff]
    %v132 = vld [vmem:[#allocation5 + $0x218] sm:$0xff]
    %v133 = vld [vmem:[#allocation5 + $0x220] sm:$0xff]
    %v134 = vld [vmem:[#allocation5 + $0x228] sm:$0xff]
    %v135 = vld [vmem:[#allocation5 + $0x230] sm:$0xff]
    %v136 = vld [vmem:[#allocation5 + $0x238] sm:$0xff]
    %v137 = vld [vmem:[#allocation5 + $0x240] sm:$0xff]
    %v138 = vld [vmem:[#allocation5 + $0x248] sm:$0xff]
    %v139 = vld [vmem:[#allocation5 + $0x250] sm:$0xff]
    %v140 = vld [vmem:[#allocation5 + $0x258] sm:$0xff]
    %v141 = vld [vmem:[#allocation5 + $0x260] sm:$0xff]
    %v142 = vld [vmem:[#allocation5 + $0x268] sm:$0xff]
    %v143 = vld [vmem:[#allocation5 + $0x270] sm:$0xff]
    %v144 = vld [vmem:[#allocation5 + $0x278] sm:$0xff]
    %v145 = vld [vmem:[#allocation5 + $0x280] sm:$0xff]
    %v146 = vld [vmem:[#allocation5 + $0x288] sm:$0xff]
    %v147 = vld [vmem:[#allocation5 + $0x290] sm:$0xff]
    %v148 = vld [vmem:[#allocation5 + $0x298] sm:$0xff]
    %v149 = vld [vmem:[#allocation5 + $0x2a0] sm:$0xff]
    %v150 = vld [vmem:[#allocation5 + $0x2a8] sm:$0xff]
    %v151 = vld [vmem:[#allocation5 + $0x2b0] sm:$0xff]
    %v152 = vld [vmem:[#allocation5 + $0x2b8] sm:$0xff]
    %v153 = vld [vmem:[#allocation5 + $0x2c0] sm:$0xff]
    %v154 = vld [vmem:[#allocation5 + $0x2c8] sm:$0xff]
    %v155 = vld [vmem:[#allocation5 + $0x2d0] sm:$0xff]
    %v156 = vld [vmem:[#allocation5 + $0x2d8] sm:$0xff]
    %v157 = vld [vmem:[#allocation5 + $0x2e0] sm:$0xff]
    %v158 = vld [vmem:[#allocation5 + $0x2e8] sm:$0xff]
    %v159 = vld [vmem:[#allocation5 + $0x2f0] sm:$0xff]
    %v160 = vld [vmem:[#allocation5 + $0x2f8] sm:$0xff]
    %v161 = vld [vmem:[#allocation5 + $0x300] sm:$0xff]
    %v162 = vld [vmem:[#allocation5 + $0x308] sm:$0xff]
    %v163 = vld [vmem:[#allocation5 + $0x310] sm:$0xff]
    %v164 = vld [vmem:[#allocation5 + $0x318] sm:$0xff]
    %v165 = vld [vmem:[#allocation5 + $0x320] sm:$0xff]
    %v166 = vld [vmem:[#allocation5 + $0x328] sm:$0xff]
    %v167 = vld [vmem:[#allocation5 + $0x330] sm:$0xff]
    %v168 = vld [vmem:[#allocation5 + $0x338] sm:$0xff]
    %v169 = vld [vmem:[#allocation5 + $0x340] sm:$0xff]
    %v170 = vld [vmem:[#allocation5 + $0x348] sm:$0xff]
    %v171 = vld [vmem:[#allocation5 + $0x350] sm:$0xff]
    %v172 = vld [vmem:[#allocation5 + $0x358] sm:$0xff]
    %v173 = vld [vmem:[#allocation5 + $0x360] sm:$0xff]
    %v174 = vld [vmem:[#allocation5 + $0x368] sm:$0xff]
    %v175 = vld [vmem:[#allocation5 + $0x370] sm:$0xff]
    %v176 = vld [vmem:[#allocation5 + $0x378] sm:$0xff]
    %v177 = vld [vmem:[#allocation5 + $0x380] sm:$0xff]
    %v178 = vld [vmem:[#allocation5 + $0x388] sm:$0xff]
    %v179 = vld [vmem:[#allocation5 + $0x390] sm:$0xff]
    %v180 = vld [vmem:[#allocation5 + $0x398] sm:$0xff]
    %v181 = vld [vmem:[#allocation5 + $0x3a0] sm:$0xff]
    %v182 = vld [vmem:[#allocation5 + $0x3a8] sm:$0xff]
    %v183 = vld [vmem:[#allocation5 + $0x3b0] sm:$0xff]
    %v184 = vld [vmem:[#allocation5 + $0x3b8] sm:$0xff]
    %v185 = vld [vmem:[#allocation5 + $0x3c0] sm:$0xff]
    %v186 = vld [vmem:[#allocation5 + $0x3c8] sm:$0xff]
    %v187 = vld [vmem:[#allocation5 + $0x3d0] sm:$0xff]
    %v188 = vld [vmem:[#allocation5 + $0x3d8] sm:$0xff]
    %v189 = vld [vmem:[#allocation5 + $0x3e0] sm:$0xff]
    %v190 = vld [vmem:[#allocation5 + $0x3e8] sm:$0xff]
    %v191 = vld [vmem:[#allocation5 + $0x3f0] sm:$0xff]
    %v192 = vld [vmem:[#allocation5 + $0x3f8] sm:$0xff]
    %v193 = vld [vmem:[%s2] sm:$0x3]
    %v194 = vunpack.c.l.bf16 %v193
    %v196 = vlaneseq
    %v197 = vshrl.u32 %v196, 7
    %v198 = vsub.s32 0, %v197
    %v199 = vrot.slane %v194, %v198
    %v200 = vlaneseq
    %v201 = vshrl.u32 %v200, 7
    %v202 = vsub.s32 2, %v201
    %v203 = vrot.slane %v194, %v202
    %v206 = vlaneseq
    %v207 = vshrl.u32 %v206, 7
    %v208 = vsub.s32 0, %v207
    %v209 = vrot.slane %v199, %v208
    %v210 = vlaneseq
    %v211 = vshrl.u32 %v210, 7
    %v212 = vsub.s32 0, %v211
    %v213 = vrot.slane %v203, %v212
    %v218 = vunpack.c.l.b16 %v61
    %v219 = vunpack.c.h.b16 %v61
    %v220 = vunpack.c.l.b16 %v62
    %v221 = vunpack.c.h.b16 %v62
    %v222 = vunpack.c.l.b16 %v63
    %v223 = vunpack.c.h.b16 %v63
    %v224 = vunpack.c.l.b16 %v64
    %v225 = vunpack.c.h.b16 %v64
    %v226 = vpack.c.b16 %v218, %v218
    %v227 = vpack.c.b16 %v219, %v219
    %v228 = vpack.c.b16 %v220, %v220
    %v229 = vpack.c.b16 %v221, %v221
    %v230 = vpack.c.b16 %v222, %v222
    %v231 = vpack.c.b16 %v223, %v223
    %v232 = vpack.c.b16 %v224, %v224
    %v233 = vpack.c.b16 %v225, %v225
    %v370 = vunpack.c.l.b16 %v65
    %v371 = vunpack.c.h.b16 %v65
    %v372 = vunpack.c.l.b16 %v66
    %v373 = vunpack.c.h.b16 %v66
    %v374 = vunpack.c.l.b16 %v67
    %v375 = vunpack.c.h.b16 %v67
    %v376 = vunpack.c.l.b16 %v68
    %v377 = vunpack.c.h.b16 %v68
    %v378 = vunpack.c.l.b16 %v69
    %v379 = vunpack.c.h.b16 %v69
    %v380 = vunpack.c.l.b16 %v70
    %v381 = vunpack.c.h.b16 %v70
    %v382 = vunpack.c.l.b16 %v71
    %v383 = vunpack.c.h.b16 %v71
    %v384 = vunpack.c.l.b16 %v72
    %v385 = vunpack.c.h.b16 %v72
    %v386 = vunpack.c.l.b16 %v73
    %v387 = vunpack.c.h.b16 %v73
    %v388 = vunpack.c.l.b16 %v74
    %v389 = vunpack.c.h.b16 %v74
    %v390 = vunpack.c.l.b16 %v75
    %v391 = vunpack.c.h.b16 %v75
    %v392 = vunpack.c.l.b16 %v76
    %v393 = vunpack.c.h.b16 %v76
    %v394 = vunpack.c.l.b16 %v77
    %v395 = vunpack.c.h.b16 %v77
    %v396 = vunpack.c.l.b16 %v78
    %v397 = vunpack.c.h.b16 %v78
    %v398 = vunpack.c.l.b16 %v79
    %v399 = vunpack.c.h.b16 %v79
    %v400 = vunpack.c.l.b16 %v80
    %v401 = vunpack.c.h.b16 %v80
    %v402 = vunpack.c.l.b16 %v81
    %v403 = vunpack.c.h.b16 %v81
    %v404 = vunpack.c.l.b16 %v82
    %v405 = vunpack.c.h.b16 %v82
    %v406 = vunpack.c.l.b16 %v83
    %v407 = vunpack.c.h.b16 %v83
    %v408 = vunpack.c.l.b16 %v84
    %v409 = vunpack.c.h.b16 %v84
    %v410 = vunpack.c.l.b16 %v85
    %v411 = vunpack.c.h.b16 %v85
    %v412 = vunpack.c.l.b16 %v86
    %v413 = vunpack.c.h.b16 %v86
    %v414 = vunpack.c.l.b16 %v87
    %v415 = vunpack.c.h.b16 %v87
    %v416 = vunpack.c.l.b16 %v88
    %v417 = vunpack.c.h.b16 %v88
    %v418 = vunpack.c.l.b16 %v89
    %v419 = vunpack.c.h.b16 %v89
    %v420 = vunpack.c.l.b16 %v90
    %v421 = vunpack.c.h.b16 %v90
    %v422 = vunpack.c.l.b16 %v91
    %v423 = vunpack.c.h.b16 %v91
    %v424 = vunpack.c.l.b16 %v92
    %v425 = vunpack.c.h.b16 %v92
    %v426 = vunpack.c.l.b16 %v93
    %v427 = vunpack.c.h.b16 %v93
    %v428 = vunpack.c.l.b16 %v94
    %v429 = vunpack.c.h.b16 %v94
    %v430 = vunpack.c.l.b16 %v95
    %v431 = vunpack.c.h.b16 %v95
    %v432 = vunpack.c.l.b16 %v96
    %v433 = vunpack.c.h.b16 %v96
    %v434 = vunpack.c.l.b16 %v97
    %v435 = vunpack.c.h.b16 %v97
    %v436 = vunpack.c.l.b16 %v98
    %v437 = vunpack.c.h.b16 %v98
    %v438 = vunpack.c.l.b16 %v99
    %v439 = vunpack.c.h.b16 %v99
    %v440 = vunpack.c.l.b16 %v100
    %v441 = vunpack.c.h.b16 %v100
    %v442 = vunpack.c.l.b16 %v101
    %v443 = vunpack.c.h.b16 %v101
    %v444 = vunpack.c.l.b16 %v102
    %v445 = vunpack.c.h.b16 %v102
    %v446 = vunpack.c.l.b16 %v103
    %v447 = vunpack.c.h.b16 %v103
    %v448 = vunpack.c.l.b16 %v104
    %v449 = vunpack.c.h.b16 %v104
    %v450 = vunpack.c.l.b16 %v105
    %v451 = vunpack.c.h.b16 %v105
    %v452 = vunpack.c.l.b16 %v106
    %v453 = vunpack.c.h.b16 %v106
    %v454 = vunpack.c.l.b16 %v107
    %v455 = vunpack.c.h.b16 %v107
    %v456 = vunpack.c.l.b16 %v108
    %v457 = vunpack.c.h.b16 %v108
    %v458 = vunpack.c.l.b16 %v109
    %v459 = vunpack.c.h.b16 %v109
    %v460 = vunpack.c.l.b16 %v110
    %v461 = vunpack.c.h.b16 %v110
    %v462 = vunpack.c.l.b16 %v111
    %v463 = vunpack.c.h.b16 %v111
    %v464 = vunpack.c.l.b16 %v112
    %v465 = vunpack.c.h.b16 %v112
    %v466 = vunpack.c.l.b16 %v113
    %v467 = vunpack.c.h.b16 %v113
    %v468 = vunpack.c.l.b16 %v114
    %v469 = vunpack.c.h.b16 %v114
    %v470 = vunpack.c.l.b16 %v115
    %v471 = vunpack.c.h.b16 %v115
    %v472 = vunpack.c.l.b16 %v116
    %v473 = vunpack.c.h.b16 %v116
    %v474 = vunpack.c.l.b16 %v117
    %v475 = vunpack.c.h.b16 %v117
    %v476 = vunpack.c.l.b16 %v118
    %v477 = vunpack.c.h.b16 %v118
    %v478 = vunpack.c.l.b16 %v119
    %v479 = vunpack.c.h.b16 %v119
    %v480 = vunpack.c.l.b16 %v120
    %v481 = vunpack.c.h.b16 %v120
    %v482 = vunpack.c.l.b16 %v121
    %v483 = vunpack.c.h.b16 %v121
    %v484 = vunpack.c.l.b16 %v122
    %v485 = vunpack.c.h.b16 %v122
    %v486 = vunpack.c.l.b16 %v123
    %v487 = vunpack.c.h.b16 %v123
    %v488 = vunpack.c.l.b16 %v124
    %v489 = vunpack.c.h.b16 %v124
    %v490 = vunpack.c.l.b16 %v125
    %v491 = vunpack.c.h.b16 %v125
    %v492 = vunpack.c.l.b16 %v126
    %v493 = vunpack.c.h.b16 %v126
    %v494 = vunpack.c.l.b16 %v127
    %v495 = vunpack.c.h.b16 %v127
    %v496 = vunpack.c.l.b16 %v128
    %v497 = vunpack.c.h.b16 %v128
    %v498 = vunpack.c.l.b16 %v129
    %v499 = vunpack.c.h.b16 %v129
    %v500 = vunpack.c.l.b16 %v130
    %v501 = vunpack.c.h.b16 %v130
    %v502 = vunpack.c.l.b16 %v131
    %v503 = vunpack.c.h.b16 %v131
    %v504 = vunpack.c.l.b16 %v132
    %v505 = vunpack.c.h.b16 %v132
    %v506 = vunpack.c.l.b16 %v133
    %v507 = vunpack.c.h.b16 %v133
    %v508 = vunpack.c.l.b16 %v134
    %v509 = vunpack.c.h.b16 %v134
    %v510 = vunpack.c.l.b16 %v135
    %v511 = vunpack.c.h.b16 %v135
    %v512 = vunpack.c.l.b16 %v136
    %v513 = vunpack.c.h.b16 %v136
    %v514 = vunpack.c.l.b16 %v137
    %v515 = vunpack.c.h.b16 %v137
    %v516 = vunpack.c.l.b16 %v138
    %v517 = vunpack.c.h.b16 %v138
    %v518 = vunpack.c.l.b16 %v139
    %v519 = vunpack.c.h.b16 %v139
    %v520 = vunpack.c.l.b16 %v140
    %v521 = vunpack.c.h.b16 %v140
    %v522 = vunpack.c.l.b16 %v141
    %v523 = vunpack.c.h.b16 %v141
    %v524 = vunpack.c.l.b16 %v142
    %v525 = vunpack.c.h.b16 %v142
    %v526 = vunpack.c.l.b16 %v143
    %v527 = vunpack.c.h.b16 %v143
    %v528 = vunpack.c.l.b16 %v144
    %v529 = vunpack.c.h.b16 %v144
    %v530 = vunpack.c.l.b16 %v145
    %v531 = vunpack.c.h.b16 %v145
    %v532 = vunpack.c.l.b16 %v146
    %v533 = vunpack.c.h.b16 %v146
    %v534 = vunpack.c.l.b16 %v147
    %v535 = vunpack.c.h.b16 %v147
    %v536 = vunpack.c.l.b16 %v148
    %v537 = vunpack.c.h.b16 %v148
    %v538 = vunpack.c.l.b16 %v149
    %v539 = vunpack.c.h.b16 %v149
    %v540 = vunpack.c.l.b16 %v150
    %v541 = vunpack.c.h.b16 %v150
    %v542 = vunpack.c.l.b16 %v151
    %v543 = vunpack.c.h.b16 %v151
    %v544 = vunpack.c.l.b16 %v152
    %v545 = vunpack.c.h.b16 %v152
    %v546 = vunpack.c.l.b16 %v153
    %v547 = vunpack.c.h.b16 %v153
    %v548 = vunpack.c.l.b16 %v154
    %v549 = vunpack.c.h.b16 %v154
    %v550 = vunpack.c.l.b16 %v155
    %v551 = vunpack.c.h.b16 %v155
    %v552 = vunpack.c.l.b16 %v156
    %v553 = vunpack.c.h.b16 %v156
    %v554 = vunpack.c.l.b16 %v157
    %v555 = vunpack.c.h.b16 %v157
    %v556 = vunpack.c.l.b16 %v158
    %v557 = vunpack.c.h.b16 %v158
    %v558 = vunpack.c.l.b16 %v159
    %v559 = vunpack.c.h.b16 %v159
    %v560 = vunpack.c.l.b16 %v160
    %v561 = vunpack.c.h.b16 %v160
    %v562 = vunpack.c.l.b16 %v161
    %v563 = vunpack.c.h.b16 %v161
    %v564 = vunpack.c.l.b16 %v162
    %v565 = vunpack.c.h.b16 %v162
    %v566 = vunpack.c.l.b16 %v163
    %v567 = vunpack.c.h.b16 %v163
    %v568 = vunpack.c.l.b16 %v164
    %v569 = vunpack.c.h.b16 %v164
    %v570 = vunpack.c.l.b16 %v165
    %v571 = vunpack.c.h.b16 %v165
    %v572 = vunpack.c.l.b16 %v166
    %v573 = vunpack.c.h.b16 %v166
    %v574 = vunpack.c.l.b16 %v167
    %v575 = vunpack.c.h.b16 %v167
    %v576 = vunpack.c.l.b16 %v168
    %v577 = vunpack.c.h.b16 %v168
    %v578 = vunpack.c.l.b16 %v169
    %v579 = vunpack.c.h.b16 %v169
    %v580 = vunpack.c.l.b16 %v170
    %v581 = vunpack.c.h.b16 %v170
    %v582 = vunpack.c.l.b16 %v171
    %v583 = vunpack.c.h.b16 %v171
    %v584 = vunpack.c.l.b16 %v172
    %v585 = vunpack.c.h.b16 %v172
    %v586 = vunpack.c.l.b16 %v173
    %v587 = vunpack.c.h.b16 %v173
    %v588 = vunpack.c.l.b16 %v174
    %v589 = vunpack.c.h.b16 %v174
    %v590 = vunpack.c.l.b16 %v175
    %v591 = vunpack.c.h.b16 %v175
    %v592 = vunpack.c.l.b16 %v176
    %v593 = vunpack.c.h.b16 %v176
    %v594 = vunpack.c.l.b16 %v177
    %v595 = vunpack.c.h.b16 %v177
    %v596 = vunpack.c.l.b16 %v178
    %v597 = vunpack.c.h.b16 %v178
    %v598 = vunpack.c.l.b16 %v179
    %v599 = vunpack.c.h.b16 %v179
    %v600 = vunpack.c.l.b16 %v180
    %v601 = vunpack.c.h.b16 %v180
    %v602 = vunpack.c.l.b16 %v181
    %v603 = vunpack.c.h.b16 %v181
    %v604 = vunpack.c.l.b16 %v182
    %v605 = vunpack.c.h.b16 %v182
    %v606 = vunpack.c.l.b16 %v183
    %v607 = vunpack.c.h.b16 %v183
    %v608 = vunpack.c.l.b16 %v184
    %v609 = vunpack.c.h.b16 %v184
    %v610 = vunpack.c.l.b16 %v185
    %v611 = vunpack.c.h.b16 %v185
    %v612 = vunpack.c.l.b16 %v186
    %v613 = vunpack.c.h.b16 %v186
    %v614 = vunpack.c.l.b16 %v187
    %v615 = vunpack.c.h.b16 %v187
    %v616 = vunpack.c.l.b16 %v188
    %v617 = vunpack.c.h.b16 %v188
    %v618 = vunpack.c.l.b16 %v189
    %v619 = vunpack.c.h.b16 %v189
    %v620 = vunpack.c.l.b16 %v190
    %v621 = vunpack.c.h.b16 %v190
    %v622 = vunpack.c.l.b16 %v191
    %v623 = vunpack.c.h.b16 %v191
    %v624 = vunpack.c.l.b16 %v192
    %v625 = vunpack.c.h.b16 %v192
    %v626 = vpack.c.b16 %v372, %v370
    %v627 = vpack.c.b16 %v373, %v371
    %v628 = vpack.c.b16 %v376, %v374
    %v629 = vpack.c.b16 %v377, %v375
    %v630 = vpack.c.b16 %v380, %v378
    %v631 = vpack.c.b16 %v381, %v379
    %v632 = vpack.c.b16 %v384, %v382
    %v633 = vpack.c.b16 %v385, %v383
    %v634 = vpack.c.b16 %v388, %v386
    %v635 = vpack.c.b16 %v389, %v387
    %v636 = vpack.c.b16 %v392, %v390
    %v637 = vpack.c.b16 %v393, %v391
    %v638 = vpack.c.b16 %v396, %v394
    %v639 = vpack.c.b16 %v397, %v395
    %v640 = vpack.c.b16 %v400, %v398
    %v641 = vpack.c.b16 %v401, %v399
    %v642 = vpack.c.b16 %v404, %v402
    %v643 = vpack.c.b16 %v405, %v403
    %v644 = vpack.c.b16 %v408, %v406
    %v645 = vpack.c.b16 %v409, %v407
    %v646 = vpack.c.b16 %v412, %v410
    %v647 = vpack.c.b16 %v413, %v411
    %v648 = vpack.c.b16 %v416, %v414
    %v649 = vpack.c.b16 %v417, %v415
    %v650 = vpack.c.b16 %v420, %v418
    %v651 = vpack.c.b16 %v421, %v419
    %v652 = vpack.c.b16 %v424, %v422
    %v653 = vpack.c.b16 %v425, %v423
    %v654 = vpack.c.b16 %v428, %v426
    %v655 = vpack.c.b16 %v429, %v427
    %v656 = vpack.c.b16 %v432, %v430
    %v657 = vpack.c.b16 %v433, %v431
    %v658 = vpack.c.b16 %v436, %v434
    %v659 = vpack.c.b16 %v437, %v435
    %v660 = vpack.c.b16 %v440, %v438
    %v661 = vpack.c.b16 %v441, %v439
    %v662 = vpack.c.b16 %v444, %v442
    %v663 = vpack.c.b16 %v445, %v443
    %v664 = vpack.c.b16 %v448, %v446
    %v665 = vpack.c.b16 %v449, %v447
    %v666 = vpack.c.b16 %v452, %v450
    %v667 = vpack.c.b16 %v453, %v451
    %v668 = vpack.c.b16 %v456, %v454
    %v669 = vpack.c.b16 %v457, %v455
    %v670 = vpack.c.b16 %v460, %v458
    %v671 = vpack.c.b16 %v461, %v459
    %v672 = vpack.c.b16 %v464, %v462
    %v673 = vpack.c.b16 %v465, %v463
    %v674 = vpack.c.b16 %v468, %v466
    %v675 = vpack.c.b16 %v469, %v467
    %v676 = vpack.c.b16 %v472, %v470
    %v677 = vpack.c.b16 %v473, %v471
    %v678 = vpack.c.b16 %v476, %v474
    %v679 = vpack.c.b16 %v477, %v475
    %v680 = vpack.c.b16 %v480, %v478
    %v681 = vpack.c.b16 %v481, %v479
    %v682 = vpack.c.b16 %v484, %v482
    %v683 = vpack.c.b16 %v485, %v483
    %v684 = vpack.c.b16 %v488, %v486
    %v685 = vpack.c.b16 %v489, %v487
    %v686 = vpack.c.b16 %v492, %v490
    %v687 = vpack.c.b16 %v493, %v491
    %v688 = vpack.c.b16 %v496, %v494
    %v689 = vpack.c.b16 %v497, %v495
    %v690 = vpack.c.b16 %v500, %v498
    %v691 = vpack.c.b16 %v501, %v499
    %v692 = vpack.c.b16 %v504, %v502
    %v693 = vpack.c.b16 %v505, %v503
    %v694 = vpack.c.b16 %v508, %v506
    %v695 = vpack.c.b16 %v509, %v507
    %v696 = vpack.c.b16 %v512, %v510
    %v697 = vpack.c.b16 %v513, %v511
    %v698 = vpack.c.b16 %v516, %v514
    %v699 = vpack.c.b16 %v517, %v515
    %v700 = vpack.c.b16 %v520, %v518
    %v701 = vpack.c.b16 %v521, %v519
    %v702 = vpack.c.b16 %v524, %v522
    %v703 = vpack.c.b16 %v525, %v523
    %v704 = vpack.c.b16 %v528, %v526
    %v705 = vpack.c.b16 %v529, %v527
    %v706 = vpack.c.b16 %v532, %v530
    %v707 = vpack.c.b16 %v533, %v531
    %v708 = vpack.c.b16 %v536, %v534
    %v709 = vpack.c.b16 %v537, %v535
    %v710 = vpack.c.b16 %v540, %v538
    %v711 = vpack.c.b16 %v541, %v539
    %v712 = vpack.c.b16 %v544, %v542
    %v713 = vpack.c.b16 %v545, %v543
    %v714 = vpack.c.b16 %v548, %v546
    %v715 = vpack.c.b16 %v549, %v547
    %v716 = vpack.c.b16 %v552, %v550
    %v717 = vpack.c.b16 %v553, %v551
    %v718 = vpack.c.b16 %v556, %v554
    %v719 = vpack.c.b16 %v557, %v555
    %v720 = vpack.c.b16 %v560, %v558
    %v721 = vpack.c.b16 %v561, %v559
    %v722 = vpack.c.b16 %v564, %v562
    %v723 = vpack.c.b16 %v565, %v563
    %v724 = vpack.c.b16 %v568, %v566
    %v725 = vpack.c.b16 %v569, %v567
    %v726 = vpack.c.b16 %v572, %v570
    %v727 = vpack.c.b16 %v573, %v571
    %v728 = vpack.c.b16 %v576, %v574
    %v729 = vpack.c.b16 %v577, %v575
    %v730 = vpack.c.b16 %v580, %v578
    %v731 = vpack.c.b16 %v581, %v579
    %v732 = vpack.c.b16 %v584, %v582
    %v733 = vpack.c.b16 %v585, %v583
    %v734 = vpack.c.b16 %v588, %v586
    %v735 = vpack.c.b16 %v589, %v587
    %v736 = vpack.c.b16 %v592, %v590
    %v737 = vpack.c.b16 %v593, %v591
    %v738 = vpack.c.b16 %v596, %v594
    %v739 = vpack.c.b16 %v597, %v595
    %v740 = vpack.c.b16 %v600, %v598
    %v741 = vpack.c.b16 %v601, %v599
    %v742 = vpack.c.b16 %v604, %v602
    %v743 = vpack.c.b16 %v605, %v603
    %v744 = vpack.c.b16 %v608, %v606
    %v745 = vpack.c.b16 %v609, %v607
    %v746 = vpack.c.b16 %v612, %v610
    %v747 = vpack.c.b16 %v613, %v611
    %v748 = vpack.c.b16 %v616, %v614
    %v749 = vpack.c.b16 %v617, %v615
    %v750 = vpack.c.b16 %v620, %v618
    %v751 = vpack.c.b16 %v621, %v619
    %v752 = vpack.c.b16 %v624, %v622
    %v753 = vpack.c.b16 %v625, %v623
    %882 = vmatprep.subr.bf16.mxu0 %v627
    %883 = vmatpush1.bf16.msra.mxu0 %v626
    %884 = vmatprep.subr.bf16.mxu0 %v629
    %885 = vmatpush1.bf16.msra.mxu0 %v628
    %886 = vmatprep.subr.bf16.mxu0 %v631
    %887 = vmatpush1.bf16.msra.mxu0 %v630
    %888 = vmatprep.subr.bf16.mxu0 %v633
    %889 = vmatpush1.bf16.msra.mxu0 %v632
    %890 = vmatprep.subr.bf16.mxu0 %v635
    %891 = vmatpush1.bf16.msra.mxu0 %v634
    %892 = vmatprep.subr.bf16.mxu0 %v637
    %893 = vmatpush1.bf16.msra.mxu0 %v636
    %894 = vmatprep.subr.bf16.mxu0 %v639
    %895 = vmatpush1.bf16.msra.mxu0 %v638
    %896 = vmatprep.subr.bf16.mxu0 %v641
    %897 = vmatpush1.bf16.msra.mxu0 %v640
    %898 = vmatprep.subr.bf16.mxu0 %v643
    %899 = vmatpush1.bf16.msra.mxu0 %v642
    %900 = vmatprep.subr.bf16.mxu0 %v645
    %901 = vmatpush1.bf16.msra.mxu0 %v644
    %902 = vmatprep.subr.bf16.mxu0 %v647
    %903 = vmatpush1.bf16.msra.mxu0 %v646
    %904 = vmatprep.subr.bf16.mxu0 %v649
    %905 = vmatpush1.bf16.msra.mxu0 %v648
    %906 = vmatprep.subr.bf16.mxu0 %v651
    %907 = vmatpush1.bf16.msra.mxu0 %v650
    %908 = vmatprep.subr.bf16.mxu0 %v653
    %909 = vmatpush1.bf16.msra.mxu0 %v652
    %910 = vmatprep.subr.bf16.mxu0 %v655
    %911 = vmatpush1.bf16.msra.mxu0 %v654
    %912 = vmatprep.subr.bf16.mxu0 %v657
    %913 = vmatpush1.bf16.msra.mxu0 %v656
    %914 = vmatprep.mubr.bf16.mxu0 %v227
    %915 = vmatmul.mubr.bf16.gmra.mrb[0].mxu0 %v226
    %v916 = vpop.f32.mrb[0].mxu0
    %v917 = vadd.f32 %v209, %v916
    %v918 = vpop.f32.mrb[0].mxu0
    %v919 = vadd.f32 %v213, %v918
    %v920 = vpop.f32.mrb[0].mxu0
    %v921 = vpop.f32.mrb[0].mxu0
    %922 = vdwg.mxu0
    %923 = vmatprep.subr.bf16.mxu0 %v659
    %924 = vmatpush1.bf16.msra.mxu0 %v658
    %925 = vmatprep.subr.bf16.mxu0 %v661
    %926 = vmatpush1.bf16.msra.mxu0 %v660
    %927 = vmatprep.subr.bf16.mxu0 %v663
    %928 = vmatpush1.bf16.msra.mxu0 %v662
    %929 = vmatprep.subr.bf16.mxu0 %v665
    %930 = vmatpush1.bf16.msra.mxu0 %v664
    %931 = vmatprep.subr.bf16.mxu0 %v667
    %932 = vmatpush1.bf16.msra.mxu0 %v666
    %933 = vmatprep.subr.bf16.mxu0 %v669
    %934 = vmatpush1.bf16.msra.mxu0 %v668
    %935 = vmatprep.subr.bf16.mxu0 %v671
    %936 = vmatpush1.bf16.msra.mxu0 %v670
    %937 = vmatprep.subr.bf16.mxu0 %v673
    %938 = vmatpush1.bf16.msra.mxu0 %v672
    %939 = vmatprep.subr.bf16.mxu0 %v675
    %940 = vmatpush1.bf16.msra.mxu0 %v674
    %941 = vmatprep.subr.bf16.mxu0 %v677
    %942 = vmatpush1.bf16.msra.mxu0 %v676
    %943 = vmatprep.subr.bf16.mxu0 %v679
    %944 = vmatpush1.bf16.msra.mxu0 %v678
    %945 = vmatprep.subr.bf16.mxu0 %v681
    %946 = vmatpush1.bf16.msra.mxu0 %v680
    %947 = vmatprep.subr.bf16.mxu0 %v683
    %948 = vmatpush1.bf16.msra.mxu0 %v682
    %949 = vmatprep.subr.bf16.mxu0 %v685
    %950 = vmatpush1.bf16.msra.mxu0 %v684
    %951 = vmatprep.subr.bf16.mxu0 %v687
    %952 = vmatpush1.bf16.msra.mxu0 %v686
    %953 = vmatprep.subr.bf16.mxu0 %v689
    %954 = vmatpush1.bf16.msra.mxu0 %v688
    %955 = vmatprep.mubr.bf16.mxu0 %v229
    %956 = vmatmul.mubr.bf16.gmra.mrb[0].mxu0 %v228
    %v957 = vpop.f32.mrb[0].mxu0
    %v958 = vadd.f32 %v917, %v957
    %v959 = vpop.f32.mrb[0].mxu0
    %v960 = vadd.f32 %v919, %v959
    %v961 = vpop.f32.mrb[0].mxu0
    %v962 = vpop.f32.mrb[0].mxu0
    %963 = vdwg.mxu0
    %964 = vmatprep.subr.bf16.mxu0 %v691
    %965 = vmatpush1.bf16.msra.mxu0 %v690
    %966 = vmatprep.subr.bf16.mxu0 %v693
    %967 = vmatpush1.bf16.msra.mxu0 %v692
    %968 = vmatprep.subr.bf16.mxu0 %v695
    %969 = vmatpush1.bf16.msra.mxu0 %v694
    %970 = vmatprep.subr.bf16.mxu0 %v697
    %971 = vmatpush1.bf16.msra.mxu0 %v696
    %972 = vmatprep.subr.bf16.mxu0 %v699
    %973 = vmatpush1.bf16.msra.mxu0 %v698
    %974 = vmatprep.subr.bf16.mxu0 %v701
    %975 = vmatpush1.bf16.msra.mxu0 %v700
    %976 = vmatprep.subr.bf16.mxu0 %v703
    %977 = vmatpush1.bf16.msra.mxu0 %v702
    %978 = vmatprep.subr.bf16.mxu0 %v705
    %979 = vmatpush1.bf16.msra.mxu0 %v704
    %980 = vmatprep.subr.bf16.mxu0 %v707
    %981 = vmatpush1.bf16.msra.mxu0 %v706
    %982 = vmatprep.subr.bf16.mxu0 %v709
    %983 = vmatpush1.bf16.msra.mxu0 %v708
    %984 = vmatprep.subr.bf16.mxu0 %v711
    %985 = vmatpush1.bf16.msra.mxu0 %v710
    %986 = vmatprep.subr.bf16.mxu0 %v713
    %987 = vmatpush1.bf16.msra.mxu0 %v712
    %988 = vmatprep.subr.bf16.mxu0 %v715
    %989 = vmatpush1.bf16.msra.mxu0 %v714
    %990 = vmatprep.subr.bf16.mxu0 %v717
    %991 = vmatpush1.bf16.msra.mxu0 %v716
    %992 = vmatprep.subr.bf16.mxu0 %v719
    %993 = vmatpush1.bf16.msra.mxu0 %v718
    %994 = vmatprep.subr.bf16.mxu0 %v721
    %995 = vmatpush1.bf16.msra.mxu0 %v720
    %996 = vmatprep.mubr.bf16.mxu0 %v231
    %997 = vmatmul.mubr.bf16.gmra.mrb[0].mxu0 %v230
    %v998 = vpop.f32.mrb[0].mxu0
    %v999 = vadd.f32 %v958, %v998
    %v1000 = vpop.f32.mrb[0].mxu0
    %v1001 = vadd.f32 %v960, %v1000
    %v1002 = vpop.f32.mrb[0].mxu0
    %v1003 = vpop.f32.mrb[0].mxu0
    %1004 = vdwg.mxu0
    %1005 = vmatprep.subr.bf16.mxu0 %v723
    %1006 = vmatpush1.bf16.msra.mxu0 %v722
    %1007 = vmatprep.subr.bf16.mxu0 %v725
    %1008 = vmatpush1.bf16.msra.mxu0 %v724
    %1009 = vmatprep.subr.bf16.mxu0 %v727
    %1010 = vmatpush1.bf16.msra.mxu0 %v726
    %1011 = vmatprep.subr.bf16.mxu0 %v729
    %1012 = vmatpush1.bf16.msra.mxu0 %v728
    %1013 = vmatprep.subr.bf16.mxu0 %v731
    %1014 = vmatpush1.bf16.msra.mxu0 %v730
    %1015 = vmatprep.subr.bf16.mxu0 %v733
    %1016 = vmatpush1.bf16.msra.mxu0 %v732
    %1017 = vmatprep.subr.bf16.mxu0 %v735
    %1018 = vmatpush1.bf16.msra.mxu0 %v734
    %1019 = vmatprep.subr.bf16.mxu0 %v737
    %1020 = vmatpush1.bf16.msra.mxu0 %v736
    %1021 = vmatprep.subr.bf16.mxu0 %v739
    %1022 = vmatpush1.bf16.msra.mxu0 %v738
    %1023 = vmatprep.subr.bf16.mxu0 %v741
    %1024 = vmatpush1.bf16.msra.mxu0 %v740
    %1025 = vmatprep.subr.bf16.mxu0 %v743
    %1026 = vmatpush1.bf16.msra.mxu0 %v742
    %1027 = vmatprep.subr.bf16.mxu0 %v745
    %1028 = vmatpush1.bf16.msra.mxu0 %v744
    %1029 = vmatprep.subr.bf16.mxu0 %v747
    %1030 = vmatpush1.bf16.msra.mxu0 %v746
    %1031 = vmatprep.subr.bf16.mxu0 %v749
    %1032 = vmatpush1.bf16.msra.mxu0 %v748
    %1033 = vmatprep.subr.bf16.mxu0 %v751
    %1034 = vmatpush1.bf16.msra.mxu0 %v750
    %1035 = vmatprep.subr.bf16.mxu0 %v753
    %1036 = vmatpush1.bf16.msra.mxu0 %v752
    %1037 = vmatprep.mubr.bf16.mxu0 %v233
    %1038 = vmatmul.mubr.bf16.gmra.mrb[0].mxu0 %v232
    %v1039 = vpop.f32.mrb[0].mxu0
    %v1040 = vadd.f32 %v999, %v1039
    %v1041 = vpop.f32.mrb[0].mxu0
    %v1042 = vadd.f32 %v1001, %v1041
    %v1043 = vpop.f32.mrb[0].mxu0
    %v1044 = vpop.f32.mrb[0].mxu0
    %1045 = vdwg.mxu0
    %v1046 = vxor.u32 %v1040, 2147483648
    %v1047 = vxor.u32 %v1042, 2147483648
    %v1048 = vmul.f32 %v1046, 1.442695
    %v1049 = vpow.pop %v1048
    %v1050 = vmul.f32 %v1047, 1.442695
    %v1051 = vpow.pop %v1050
    %v1052 = vadd.f32 %v1049, 1.0
    %v1053 = vadd.f32 %v1051, 1.0
    %v1054 = vrcp.pop %v1052
    %v1055 = vmul.f32 1.0, %v1054
    %v1056 = vrcp.pop %v1053
    %v1057 = vmul.f32 1.0, %v1056
    %v1058 = vpack.c.bf16 %v1055, %v1055
    %v1059 = vpack.c.bf16 %v1057, %v1057
    %v1060 = vld [vmem:[#allocation7] sm:$0xf]
    %v1061 = vld [vmem:[#allocation7 + $0x4] sm:$0xf]
    %v1062 = vld [vmem:[#allocation7 + $0x8] sm:$0xf]
    %v1063 = vld [vmem:[#allocation7 + $0xc] sm:$0xf]
    %v1064 = vld [vmem:[#allocation7 + $0x10] sm:$0xf]
    %v1065 = vld [vmem:[#allocation7 + $0x14] sm:$0xf]
    %v1066 = vld [vmem:[#allocation7 + $0x18] sm:$0xf]
    %v1067 = vld [vmem:[#allocation7 + $0x1c] sm:$0xf]
    %v1068 = vld [vmem:[#allocation7 + $0x20] sm:$0xf]
    %v1069 = vld [vmem:[#allocation7 + $0x24] sm:$0xf]
    %v1070 = vld [vmem:[#allocation7 + $0x28] sm:$0xf]
    %v1071 = vld [vmem:[#allocation7 + $0x2c] sm:$0xf]
    %v1072 = vld [vmem:[#allocation7 + $0x30] sm:$0xf]
    %v1073 = vld [vmem:[#allocation7 + $0x34] sm:$0xf]
    %v1074 = vld [vmem:[#allocation7 + $0x38] sm:$0xf]
    %v1075 = vld [vmem:[#allocation7 + $0x3c] sm:$0xf]
    %v1076 = vld [vmem:[#allocation7 + $0x40] sm:$0xf]
    %v1077 = vld [vmem:[#allocation7 + $0x44] sm:$0xf]
    %v1078 = vld [vmem:[#allocation7 + $0x48] sm:$0xf]
    %v1079 = vld [vmem:[#allocation7 + $0x4c] sm:$0xf]
    %v1080 = vld [vmem:[#allocation7 + $0x50] sm:$0xf]
    %v1081 = vld [vmem:[#allocation7 + $0x54] sm:$0xf]
    %v1082 = vld [vmem:[#allocation7 + $0x58] sm:$0xf]
    %v1083 = vld [vmem:[#allocation7 + $0x5c] sm:$0xf]
    %v1084 = vld [vmem:[#allocation7 + $0x60] sm:$0xf]
    %v1085 = vld [vmem:[#allocation7 + $0x64] sm:$0xf]
    %v1086 = vld [vmem:[#allocation7 + $0x68] sm:$0xf]
    %v1087 = vld [vmem:[#allocation7 + $0x6c] sm:$0xf]
    %v1088 = vld [vmem:[#allocation7 + $0x70] sm:$0xf]
    %v1089 = vld [vmem:[#allocation7 + $0x74] sm:$0xf]
    %v1090 = vld [vmem:[#allocation7 + $0x78] sm:$0xf]
    %v1091 = vld [vmem:[#allocation7 + $0x7c] sm:$0xf]
    %v1092 = vld [vmem:[%s4] sm:$0x1]
    %v1093 = vunpack.c.l.bf16 %v1092
    %v1094 = vlaneseq
    %v1095 = vshrl.u32 %v1094, 7
    %v1096 = vsub.s32 0, %v1095
    %v1097 = vrot.slane %v1093, %v1096
    %v1130 = vunpack.c.l.b16 %v1060
    %v1131 = vunpack.c.l.b16 %v1061
    %v1132 = vunpack.c.l.b16 %v1062
    %v1133 = vunpack.c.l.b16 %v1063
    %v1134 = vunpack.c.l.b16 %v1064
    %v1135 = vunpack.c.l.b16 %v1065
    %v1136 = vunpack.c.l.b16 %v1066
    %v1137 = vunpack.c.l.b16 %v1067
    %v1138 = vunpack.c.l.b16 %v1068
    %v1139 = vunpack.c.l.b16 %v1069
    %v1140 = vunpack.c.l.b16 %v1070
    %v1141 = vunpack.c.l.b16 %v1071
    %v1142 = vunpack.c.l.b16 %v1072
    %v1143 = vunpack.c.l.b16 %v1073
    %v1144 = vunpack.c.l.b16 %v1074
    %v1145 = vunpack.c.l.b16 %v1075
    %v1146 = vunpack.c.l.b16 %v1076
    %v1147 = vunpack.c.l.b16 %v1077
    %v1148 = vunpack.c.l.b16 %v1078
    %v1149 = vunpack.c.l.b16 %v1079
    %v1150 = vunpack.c.l.b16 %v1080
    %v1151 = vunpack.c.l.b16 %v1081
    %v1152 = vunpack.c.l.b16 %v1082
    %v1153 = vunpack.c.l.b16 %v1083
    %v1154 = vunpack.c.l.b16 %v1084
    %v1155 = vunpack.c.l.b16 %v1085
    %v1156 = vunpack.c.l.b16 %v1086
    %v1157 = vunpack.c.l.b16 %v1087
    %v1158 = vunpack.c.l.b16 %v1088
    %v1159 = vunpack.c.l.b16 %v1089
    %v1160 = vunpack.c.l.b16 %v1090
    %v1161 = vunpack.c.l.b16 %v1091
    %v1162 = vpack.c.b16 %v1131, %v1130
    %v1163 = vpack.c.b16 %v1133, %v1132
    %v1164 = vpack.c.b16 %v1135, %v1134
    %v1165 = vpack.c.b16 %v1137, %v1136
    %v1166 = vpack.c.b16 %v1139, %v1138
    %v1167 = vpack.c.b16 %v1141, %v1140
    %v1168 = vpack.c.b16 %v1143, %v1142
    %v1169 = vpack.c.b16 %v1145, %v1144
    %v1170 = vpack.c.b16 %v1147, %v1146
    %v1171 = vpack.c.b16 %v1149, %v1148
    %v1172 = vpack.c.b16 %v1151, %v1150
    %v1173 = vpack.c.b16 %v1153, %v1152
    %v1174 = vpack.c.b16 %v1155, %v1154
    %v1175 = vpack.c.b16 %v1157, %v1156
    %v1176 = vpack.c.b16 %v1159, %v1158
    %v1177 = vpack.c.b16 %v1161, %v1160
    %1194 = vmatprep.subr.bf16.mxu0 0
    %1195 = vmatpush1.bf16.msra.mxu0 %v1162
    %1196 = vmatprep.subr.bf16.mxu0 0
    %1197 = vmatpush1.bf16.msra.mxu0 %v1163
    %1198 = vmatprep.subr.bf16.mxu0 0
    %1199 = vmatpush1.bf16.msra.mxu0 %v1164
    %1200 = vmatprep.subr.bf16.mxu0 0
    %1201 = vmatpush1.bf16.msra.mxu0 %v1165
    %1202 = vmatprep.subr.bf16.mxu0 0
    %1203 = vmatpush1.bf16.msra.mxu0 %v1166
    %1204 = vmatprep.subr.bf16.mxu0 0
    %1205 = vmatpush1.bf16.msra.mxu0 %v1167
    %1206 = vmatprep.subr.bf16.mxu0 0
    %1207 = vmatpush1.bf16.msra.mxu0 %v1168
    %1208 = vmatprep.subr.bf16.mxu0 0
    %1209 = vmatpush1.bf16.msra.mxu0 %v1169
    %1210 = vmatprep.subr.bf16.mxu0 0
    %1211 = vmatpush1.bf16.msra.mxu0 %v1170
    %1212 = vmatprep.subr.bf16.mxu0 0
    %1213 = vmatpush1.bf16.msra.mxu0 %v1171
    %1214 = vmatprep.subr.bf16.mxu0 0
    %1215 = vmatpush1.bf16.msra.mxu0 %v1172
    %1216 = vmatprep.subr.bf16.mxu0 0
    %1217 = vmatpush1.bf16.msra.mxu0 %v1173
    %1218 = vmatprep.subr.bf16.mxu0 0
    %1219 = vmatpush1.bf16.msra.mxu0 %v1174
    %1220 = vmatprep.subr.bf16.mxu0 0
    %1221 = vmatpush1.bf16.msra.mxu0 %v1175
    %1222 = vmatprep.subr.bf16.mxu0 0
    %1223 = vmatpush1.bf16.msra.mxu0 %v1176
    %1224 = vmatprep.subr.bf16.mxu0 0
    %1225 = vmatpush1.bf16.msra.mxu0 %v1177
    %1226 = vmatprep.mubr.bf16.mxu0 %v1059
    %1227 = vmatmul.mubr.bf16.gmra.mrb[0].mxu0 %v1058
    %v1228 = vpop.f32.mrb[0].mxu0
    %v1229 = vadd.f32 %v1097, %v1228
    %v1230 = vpop.f32.mrb[0].mxu0
    %v1231 = vpop.f32.mrb[0].mxu0
    %v1232 = vpop.f32.mrb[0].mxu0
    %1233 = vdwg.mxu0
    %v1234 = vxor.u32 %v1229, 2147483648
    %v1235 = vmul.f32 %v1234, 1.442695
    %v1236 = vpow.pop %v1235
    %v1237 = vadd.f32 %v1236, 1.0
    %v1238 = vrcp.pop %v1237
    %v1239 = vmul.f32 1.0, %v1238
    %1240 = vst [vmem:[#allocation8] sm:$0xff] %v1239
    // Predicated region
    $region34: #{tpu_custom_call.1} parent=1 // pred_check
      _
    $region35: #{tpu_custom_call.1} parent=1 // pred_check_branch
      %1242 = sbr.rel (0) target = $region37
    $region36: #{tpu_custom_call.1} parent=1 // pred_region
      %s1244 = ssub.s32 128, 128
      %1245 = vsyncadd [#allocation4], %s1244
      %s1247 = sshll.u32 [#allocation8], 4
      %s1248 = int_to_ptr.vmem [resolvable:$true] %s1247
      %1250 = dma.vmem_to_hbm [thread:$0]  %s1248, 128, %s5, [#allocation4]
    $region37: #{tpu_custom_call.1} parent=1 // pred_fallthru
      _
    // Predicated region
    $region38: #{tpu_custom_call.1} parent=1 // pred_check
      _
    $region39: #{tpu_custom_call.1} parent=1 // pred_check_branch
      %1252 = sbr.rel (0) target = $region41
    $region40: #{tpu_custom_call.1} parent=1 // pred_region
      %1253 = dma.done [#allocation4], 128
    $region41: #{tpu_custom_call.1} parent=1 // pred_fallthru
      _
    %1254 = vsyncpa [#allocation3], 1
    %1255 = vsyncpa [#allocation6], 1
    %1256 = vsyncpa [#allocation4], 1

// kernel: tpu_custom_call.1
$region0: #{tpu_custom_call.1}
  #allocation0 [shape = 'u32[]', space=smem, size = 0x4, offset = 0x4, fixed_abs, tag = 'smem constant byte address 0x4 - core index']
  #allocation1 [shape = 'u32[144,128]{1,0:T(1,128)}', space=vmem, size = 0x12000, scoped, tag = 'internal scratch']
  %s0 = inlined_call_operand.hbm [shape: bf16[8,1024], index: 0, kind: input, shape index: {}]
  %s1 = inlined_call_operand.hbm [shape: bf16[1024,256], index: 1, kind: input, shape index: {}]
  %s2 = inlined_call_operand.vmem [shape: bf16[1,256], index: 2, kind: input, shape index: {}]
  %s3 = inlined_call_operand.hbm [shape: bf16[256,128], index: 3, kind: input, shape index: {}]
  %s4 = inlined_call_operand.vmem [shape: bf16[1,128], index: 4, kind: input, shape index: {}]
  %s5 = inlined_call_operand.hbm [shape: f32[8,128], index: 5, kind: output, shape index: {}]
  %s6 = sld [smem:[#allocation0]]
  $region42: #{tpu_custom_call.1} parent=0
    _
  %s8 = ssub.s32 1, %s6
  %s9 = scalar_select 0, %s8, %s6
  $region1: #{tpu_custom_call.1} parent=0
    #allocation2 [shape = 'u8[16384]{0}', space=vmem, size = 0x4000, scoped, tag = 'input window, operand 0, single buffered']
    #allocation3 [shape = 's32[1]{0}', space=sflag, size = 0x4, scoped, tag = 'scoped memory for tpu_custom_call.1']
    #allocation4 [shape = 's32[1]{0}', space=sflag, size = 0x4, scoped, tag = 'scoped memory for tpu_custom_call.1']
    #allocation5 [shape = 'u8[524288]{0}', space=vmem, size = 0x80000, scoped, tag = 'input window, operand 1, single buffered']
    #allocation6 [shape = 's32[1]{0}', space=sflag, size = 0x4, scoped, tag = 'scoped memory for tpu_custom_call.1']
    #allocation7 [shape = 'u8[65536]{0}', space=vmem, size = 0x10000, scoped, tag = 'input window, operand 3, single buffered']
    #allocation8 [shape = 'u8[4096]{0}', space=vmem, size = 0x1000, scoped, tag = 'output window, operand 0, single buffered']
    %10 = vsyncpa [#allocation3], 0
    %11 = vsyncpa [#allocation6], 0
    %12 = vsyncpa [#allocation4], 0
    // Predicated region
    $region2: #{tpu_custom_call.1} parent=1 // pred_check
      _
    $region3: #{tpu_custom_call.1} parent=1 // pred_check_branch
      %14 = sbr.rel (0) target = $region5
    $region4: #{tpu_custom_call.1} parent=1 // pred_region
      %s16 = ssub.s32 512, 512
      %17 = vsyncadd [#allocation3], %s16
      %s19 = sshll.u32 [#allocation2], 4
      %s20 = int_to_ptr.vmem [resolvable:$true] %s19
      %22 = dma.hbm_to_vmem [thread:$0]  %s0, 512, %s20, [#allocation3]
    $region5: #{tpu_custom_call.1} parent=1 // pred_fallthru
      _
    // Predicated region
    $region6: #{tpu_custom_call.1} parent=1 // pred_check
      _
    $region7: #{tpu_custom_call.1} parent=1 // pred_check_branch
      %24 = sbr.rel (0) target = $region9
    $region8: #{tpu_custom_call.1} parent=1 // pred_region
      %s26 = ssub.s32 16384, 16384
      %27 = vsyncadd [#allocation6], %s26
      %s28 = sshll.u32 [#allocation5], 4
      %s29 = int_to_ptr.vmem [resolvable:$true] %s28
      %34 = dma.hbm_to_vmem [thread:$0]  %s1, 16384, %s29, [#allocation6], 128, 128, 8
    $region9: #{tpu_custom_call.1} parent=1 // pred_fallthru
      _
    // Predicated region
    $region10: #{tpu_custom_call.1} parent=1 // pred_check
      _
    $region11: #{tpu_custom_call.1} parent=1 // pred_check_branch
      %36 = sbr.rel (0) target = $region13
    $region12: #{tpu_custom_call.1} parent=1 // pred_region
      _
    $region13: #{tpu_custom_call.1} parent=1 // pred_fallthru
      _
    // Predicated region
    $region14: #{tpu_custom_call.1} parent=1 // pred_check
      _
    $region15: #{tpu_custom_call.1} parent=1 // pred_check_branch
      %38 = sbr.rel (0) target = $region17
    $region16: #{tpu_custom_call.1} parent=1 // pred_region
      %s40 = ssub.s32 2048, 2048
      %41 = vsyncadd [#allocation6], %s40
      %s42 = sshll.u32 [#allocation7], 4
      %s43 = int_to_ptr.vmem [resolvable:$true] %s42
      %48 = dma.hbm_to_vmem [thread:$0]  %s3, 2048, %s43, [#allocation6], 64, 64, 4
    $region17: #{tpu_custom_call.1} parent=1 // pred_fallthru
      _
    // Predicated region
    $region18: #{tpu_custom_call.1} parent=1 // pred_check
      _
    $region19: #{tpu_custom_call.1} parent=1 // pred_check_branch
      %50 = sbr.rel (0) target = $region21
    $region20: #{tpu_custom_call.1} parent=1 // pred_region
      _
    $region21: #{tpu_custom_call.1} parent=1 // pred_fallthru
      _
    // Predicated region
    $region22: #{tpu_custom_call.1} parent=1 // pred_check
      _
    $region23: #{tpu_custom_call.1} parent=1 // pred_check_branch
      %52 = sbr.rel (0) target = $region25
    $region24: #{tpu_custom_call.1} parent=1 // pred_region
      %53 = dma.done [#allocation3], 512
    $region25: #{tpu_custom_call.1} parent=1 // pred_fallthru
      _
    // Predicated region
    $region26: #{tpu_custom_call.1} parent=1 // pred_check
      _
    $region27: #{tpu_custom_call.1} parent=1 // pred_check_branch
      %55 = sbr.rel (0) target = $region29
    $region28: #{tpu_custom_call.1} parent=1 // pred_region
      %56 = dma.done [#allocation6], 16384
    $region29: #{tpu_custom_call.1} parent=1 // pred_fallthru
      _
    // Predicated region
    $region30: #{tpu_custom_call.1} parent=1 // pred_check
      _
    $region31: #{tpu_custom_call.1} parent=1 // pred_check_branch
      %58 = sbr.rel (0) target = $region33
    $region32: #{tpu_custom_call.1} parent=1 // pred_region
      %59 = dma.done [#allocation6], 2048
    $region33: #{tpu_custom_call.1} parent=1 // pred_fallthru
      _
    %v61 = vld [vmem:[#allocation2] sm:$0xff]
    %v62 = vld [vmem:[#allocation2 + $0x8] sm:$0xff]
    %v63 = vld [vmem:[#allocation2 + $0x10] sm:$0xff]
    %v64 = vld [vmem:[#allocation2 + $0x18] sm:$0xff]
    %v65 = vld [vmem:[#allocation5] sm:$0xff]
    %v66 = vld [vmem:[#allocation5 + $0x8] sm:$0xff]
    %v67 = vld [vmem:[#allocation5 + $0x10] sm:$0xff]
    %v68 = vld [vmem:[#allocation5 + $0x18] sm:$0xff]
    %v69 = vld [vmem:[#allocation5 + $0x20] sm:$0xff]
    %v70 = vld [vmem:[#allocation5 + $0x28] sm:$0xff]
    %v71 = vld [vmem:[#allocation5 + $0x30] sm:$0xff]
    %v72 = vld [vmem:[#allocation5 + $0x38] sm:$0xff]
    %v73 = vld [vmem:[#allocation5 + $0x40] sm:$0xff]
    %v74 = vld [vmem:[#allocation5 + $0x48] sm:$0xff]
    %v75 = vld [vmem:[#allocation5 + $0x50] sm:$0xff]
    %v76 = vld [vmem:[#allocation5 + $0x58] sm:$0xff]
    %v77 = vld [vmem:[#allocation5 + $0x60] sm:$0xff]
    %v78 = vld [vmem:[#allocation5 + $0x68] sm:$0xff]
    %v79 = vld [vmem:[#allocation5 + $0x70] sm:$0xff]
    %v80 = vld [vmem:[#allocation5 + $0x78] sm:$0xff]
    %v81 = vld [vmem:[#allocation5 + $0x80] sm:$0xff]
    %v82 = vld [vmem:[#allocation5 + $0x88] sm:$0xff]
    %v83 = vld [vmem:[#allocation5 + $0x90] sm:$0xff]
    %v84 = vld [vmem:[#allocation5 + $0x98] sm:$0xff]
    %v85 = vld [vmem:[#allocation5 + $0xa0] sm:$0xff]
    %v86 = vld [vmem:[#allocation5 + $0xa8] sm:$0xff]
    %v87 = vld [vmem:[#allocation5 + $0xb0] sm:$0xff]
    %v88 = vld [vmem:[#allocation5 + $0xb8] sm:$0xff]
    %v89 = vld [vmem:[#allocation5 + $0xc0] sm:$0xff]
    %v90 = vld [vmem:[#allocation5 + $0xc8] sm:$0xff]
    %v91 = vld [vmem:[#allocation5 + $0xd0] sm:$0xff]
    %v92 = vld [vmem:[#allocation5 + $0xd8] sm:$0xff]
    %v93 = vld [vmem:[#allocation5 + $0xe0] sm:$0xff]
    %v94 = vld [vmem:[#allocation5 + $0xe8] sm:$0xff]
    %v95 = vld [vmem:[#allocation5 + $0xf0] sm:$0xff]
    %v96 = vld [vmem:[#allocation5 + $0xf8] sm:$0xff]
    %v97 = vld [vmem:[#allocation5 + $0x100] sm:$0xff]
    %v98 = vld [vmem:[#allocation5 + $0x108] sm:$0xff]
    %v99 = vld [vmem:[#allocation5 + $0x110] sm:$0xff]
    %v100 = vld [vmem:[#allocation5 + $0x118] sm:$0xff]
    %v101 = vld [vmem:[#allocation5 + $0x120] sm:$0xff]
    %v102 = vld [vmem:[#allocation5 + $0x128] sm:$0xff]
    %v103 = vld [vmem:[#allocation5 + $0x130] sm:$0xff]
    %v104 = vld [vmem:[#allocation5 + $0x138] sm:$0xff]
    %v105 = vld [vmem:[#allocation5 + $0x140] sm:$0xff]
    %v106 = vld [vmem:[#allocation5 + $0x148] sm:$0xff]
    %v107 = vld [vmem:[#allocation5 + $0x150] sm:$0xff]
    %v108 = vld [vmem:[#allocation5 + $0x158] sm:$0xff]
    %v109 = vld [vmem:[#allocation5 + $0x160] sm:$0xff]
    %v110 = vld [vmem:[#allocation5 + $0x168] sm:$0xff]
    %v111 = vld [vmem:[#allocation5 + $0x170] sm:$0xff]
    %v112 = vld [vmem:[#allocation5 + $0x178] sm:$0xff]
    %v113 = vld [vmem:[#allocation5 + $0x180] sm:$0xff]
    %v114 = vld [vmem:[#allocation5 + $0x188] sm:$0xff]
    %v115 = vld [vmem:[#allocation5 + $0x190] sm:$0xff]
    %v116 = vld [vmem:[#allocation5 + $0x198] sm:$0xff]
    %v117 = vld [vmem:[#allocation5 + $0x1a0] sm:$0xff]
    %v118 = vld [vmem:[#allocation5 + $0x1a8] sm:$0xff]
    %v119 = vld [vmem:[#allocation5 + $0x1b0] sm:$0xff]
    %v120 = vld [vmem:[#allocation5 + $0x1b8] sm:$0xff]
    %v121 = vld [vmem:[#allocation5 + $0x1c0] sm:$0xff]
    %v122 = vld [vmem:[#allocation5 + $0x1c8] sm:$0xff]
    %v123 = vld [vmem:[#allocation5 + $0x1d0] sm:$0xff]
    %v124 = vld [vmem:[#allocation5 + $0x1d8] sm:$0xff]
    %v125 = vld [vmem:[#allocation5 + $0x1e0] sm:$0xff]
    %v126 = vld [vmem:[#allocation5 + $0x1e8] sm:$0xff]
    %v127 = vld [vmem:[#allocation5 + $0x1f0] sm:$0xff]
    %v128 = vld [vmem:[#allocation5 + $0x1f8] sm:$0xff]
    %v129 = vld [vmem:[#allocation5 + $0x200] sm:$0xff]
    %v130 = vld [vmem:[#allocation5 + $0x208] sm:$0xff]
    %v131 = vld [vmem:[#allocation5 + $0x210] sm:$0xff]
    %v132 = vld [vmem:[#allocation5 + $0x218] sm:$0xff]
    %v133 = vld [vmem:[#allocation5 + $0x220] sm:$0xff]
    %v134 = vld [vmem:[#allocation5 + $0x228] sm:$0xff]
    %v135 = vld [vmem:[#allocation5 + $0x230] sm:$0xff]
    %v136 = vld [vmem:[#allocation5 + $0x238] sm:$0xff]
    %v137 = vld [vmem:[#allocation5 + $0x240] sm:$0xff]
    %v138 = vld [vmem:[#allocation5 + $0x248] sm:$0xff]
    %v139 = vld [vmem:[#allocation5 + $0x250] sm:$0xff]
    %v140 = vld [vmem:[#allocation5 + $0x258] sm:$0xff]
    %v141 = vld [vmem:[#allocation5 + $0x260] sm:$0xff]
    %v142 = vld [vmem:[#allocation5 + $0x268] sm:$0xff]
    %v143 = vld [vmem:[#allocation5 + $0x270] sm:$0xff]
    %v144 = vld [vmem:[#allocation5 + $0x278] sm:$0xff]
    %v145 = vld [vmem:[#allocation5 + $0x280] sm:$0xff]
    %v146 = vld [vmem:[#allocation5 + $0x288] sm:$0xff]
    %v147 = vld [vmem:[#allocation5 + $0x290] sm:$0xff]
    %v148 = vld [vmem:[#allocation5 + $0x298] sm:$0xff]
    %v149 = vld [vmem:[#allocation5 + $0x2a0] sm:$0xff]
    %v150 = vld [vmem:[#allocation5 + $0x2a8] sm:$0xff]
    %v151 = vld [vmem:[#allocation5 + $0x2b0] sm:$0xff]
    %v152 = vld [vmem:[#allocation5 + $0x2b8] sm:$0xff]
    %v153 = vld [vmem:[#allocation5 + $0x2c0] sm:$0xff]
    %v154 = vld [vmem:[#allocation5 + $0x2c8] sm:$0xff]
    %v155 = vld [vmem:[#allocation5 + $0x2d0] sm:$0xff]
    %v156 = vld [vmem:[#allocation5 + $0x2d8] sm:$0xff]
    %v157 = vld [vmem:[#allocation5 + $0x2e0] sm:$0xff]
    %v158 = vld [vmem:[#allocation5 + $0x2e8] sm:$0xff]
    %v159 = vld [vmem:[#allocation5 + $0x2f0] sm:$0xff]
    %v160 = vld [vmem:[#allocation5 + $0x2f8] sm:$0xff]
    %v161 = vld [vmem:[#allocation5 + $0x300] sm:$0xff]
    %v162 = vld [vmem:[#allocation5 + $0x308] sm:$0xff]
    %v163 = vld [vmem:[#allocation5 + $0x310] sm:$0xff]
    %v164 = vld [vmem:[#allocation5 + $0x318] sm:$0xff]
    %v165 = vld [vmem:[#allocation5 + $0x320] sm:$0xff]
    %v166 = vld [vmem:[#allocation5 + $0x328] sm:$0xff]
    %v167 = vld [vmem:[#allocation5 + $0x330] sm:$0xff]
    %v168 = vld [vmem:[#allocation5 + $0x338] sm:$0xff]
    %v169 = vld [vmem:[#allocation5 + $0x340] sm:$0xff]
    %v170 = vld [vmem:[#allocation5 + $0x348] sm:$0xff]
    %v171 = vld [vmem:[#allocation5 + $0x350] sm:$0xff]
    %v172 = vld [vmem:[#allocation5 + $0x358] sm:$0xff]
    %v173 = vld [vmem:[#allocation5 + $0x360] sm:$0xff]
    %v174 = vld [vmem:[#allocation5 + $0x368] sm:$0xff]
    %v175 = vld [vmem:[#allocation5 + $0x370] sm:$0xff]
    %v176 = vld [vmem:[#allocation5 + $0x378] sm:$0xff]
    %v177 = vld [vmem:[#allocation5 + $0x380] sm:$0xff]
    %v178 = vld [vmem:[#allocation5 + $0x388] sm:$0xff]
    %v179 = vld [vmem:[#allocation5 + $0x390] sm:$0xff]
    %v180 = vld [vmem:[#allocation5 + $0x398] sm:$0xff]
    %v181 = vld [vmem:[#allocation5 + $0x3a0] sm:$0xff]
    %v182 = vld [vmem:[#allocation5 + $0x3a8] sm:$0xff]
    %v183 = vld [vmem:[#allocation5 + $0x3b0] sm:$0xff]
    %v184 = vld [vmem:[#allocation5 + $0x3b8] sm:$0xff]
    %v185 = vld [vmem:[#allocation5 + $0x3c0] sm:$0xff]
    %v186 = vld [vmem:[#allocation5 + $0x3c8] sm:$0xff]
    %v187 = vld [vmem:[#allocation5 + $0x3d0] sm:$0xff]
    %v188 = vld [vmem:[#allocation5 + $0x3d8] sm:$0xff]
    %v189 = vld [vmem:[#allocation5 + $0x3e0] sm:$0xff]
    %v190 = vld [vmem:[#allocation5 + $0x3e8] sm:$0xff]
    %v191 = vld [vmem:[#allocation5 + $0x3f0] sm:$0xff]
    %v192 = vld [vmem:[#allocation5 + $0x3f8] sm:$0xff]
    %v193 = vld [vmem:[%s2] sm:$0x3]
    %v194 = vunpack.c.l.bf16 %v193
    %v196 = vlaneseq
    %v197 = vshrl.u32 %v196, 7
    %v198 = vsub.s32 0, %v197
    %v199 = vrot.slane %v194, %v198
    %v200 = vlaneseq
    %v201 = vshrl.u32 %v200, 7
    %v202 = vsub.s32 2, %v201
    %v203 = vrot.slane %v194, %v202
    %v206 = vlaneseq
    %v207 = vshrl.u32 %v206, 7
    %v208 = vsub.s32 0, %v207
    %v209 = vrot.slane %v199, %v208
    %v210 = vlaneseq
    %v211 = vshrl.u32 %v210, 7
    %v212 = vsub.s32 0, %v211
    %v213 = vrot.slane %v203, %v212
    %v218 = vunpack.c.l.b16 %v61
    %v219 = vunpack.c.h.b16 %v61
    %v220 = vunpack.c.l.b16 %v62
    %v221 = vunpack.c.h.b16 %v62
    %v222 = vunpack.c.l.b16 %v63
    %v223 = vunpack.c.h.b16 %v63
    %v224 = vunpack.c.l.b16 %v64
    %v225 = vunpack.c.h.b16 %v64
    %v226 = vpack.c.b16 %v218, %v218
    %v227 = vpack.c.b16 %v219, %v219
    %v228 = vpack.c.b16 %v220, %v220
    %v229 = vpack.c.b16 %v221, %v221
    %v230 = vpack.c.b16 %v222, %v222
    %v231 = vpack.c.b16 %v223, %v223
    %v232 = vpack.c.b16 %v224, %v224
    %v233 = vpack.c.b16 %v225, %v225
    %v370 = vunpack.c.l.b16 %v65
    %v371 = vunpack.c.h.b16 %v65
    %v372 = vunpack.c.l.b16 %v66
    %v373 = vunpack.c.h.b16 %v66
    %v374 = vunpack.c.l.b16 %v67
    %v375 = vunpack.c.h.b16 %v67
    %v376 = vunpack.c.l.b16 %v68
    %v377 = vunpack.c.h.b16 %v68
    %v378 = vunpack.c.l.b16 %v69
    %v379 = vunpack.c.h.b16 %v69
    %v380 = vunpack.c.l.b16 %v70
    %v381 = vunpack.c.h.b16 %v70
    %v382 = vunpack.c.l.b16 %v71
    %v383 = vunpack.c.h.b16 %v71
    %v384 = vunpack.c.l.b16 %v72
    %v385 = vunpack.c.h.b16 %v72
    %v386 = vunpack.c.l.b16 %v73
    %v387 = vunpack.c.h.b16 %v73
    %v388 = vunpack.c.l.b16 %v74
    %v389 = vunpack.c.h.b16 %v74
    %v390 = vunpack.c.l.b16 %v75
    %v391 = vunpack.c.h.b16 %v75
    %v392 = vunpack.c.l.b16 %v76
    %v393 = vunpack.c.h.b16 %v76
    %v394 = vunpack.c.l.b16 %v77
    %v395 = vunpack.c.h.b16 %v77
    %v396 = vunpack.c.l.b16 %v78
    %v397 = vunpack.c.h.b16 %v78
    %v398 = vunpack.c.l.b16 %v79
    %v399 = vunpack.c.h.b16 %v79
    %v400 = vunpack.c.l.b16 %v80
    %v401 = vunpack.c.h.b16 %v80
    %v402 = vunpack.c.l.b16 %v81
    %v403 = vunpack.c.h.b16 %v81
    %v404 = vunpack.c.l.b16 %v82
    %v405 = vunpack.c.h.b16 %v82
    %v406 = vunpack.c.l.b16 %v83
    %v407 = vunpack.c.h.b16 %v83
    %v408 = vunpack.c.l.b16 %v84
    %v409 = vunpack.c.h.b16 %v84
    %v410 = vunpack.c.l.b16 %v85
    %v411 = vunpack.c.h.b16 %v85
    %v412 = vunpack.c.l.b16 %v86
    %v413 = vunpack.c.h.b16 %v86
    %v414 = vunpack.c.l.b16 %v87
    %v415 = vunpack.c.h.b16 %v87
    %v416 = vunpack.c.l.b16 %v88
    %v417 = vunpack.c.h.b16 %v88
    %v418 = vunpack.c.l.b16 %v89
    %v419 = vunpack.c.h.b16 %v89
    %v420 = vunpack.c.l.b16 %v90
    %v421 = vunpack.c.h.b16 %v90
    %v422 = vunpack.c.l.b16 %v91
    %v423 = vunpack.c.h.b16 %v91
    %v424 = vunpack.c.l.b16 %v92
    %v425 = vunpack.c.h.b16 %v92
    %v426 = vunpack.c.l.b16 %v93
    %v427 = vunpack.c.h.b16 %v93
    %v428 = vunpack.c.l.b16 %v94
    %v429 = vunpack.c.h.b16 %v94
    %v430 = vunpack.c.l.b16 %v95
    %v431 = vunpack.c.h.b16 %v95
    %v432 = vunpack.c.l.b16 %v96
    %v433 = vunpack.c.h.b16 %v96
    %v434 = vunpack.c.l.b16 %v97
    %v435 = vunpack.c.h.b16 %v97
    %v436 = vunpack.c.l.b16 %v98
    %v437 = vunpack.c.h.b16 %v98
    %v438 = vunpack.c.l.b16 %v99
    %v439 = vunpack.c.h.b16 %v99
    %v440 = vunpack.c.l.b16 %v100
    %v441 = vunpack.c.h.b16 %v100
    %v442 = vunpack.c.l.b16 %v101
    %v443 = vunpack.c.h.b16 %v101
    %v444 = vunpack.c.l.b16 %v102
    %v445 = vunpack.c.h.b16 %v102
    %v446 = vunpack.c.l.b16 %v103
    %v447 = vunpack.c.h.b16 %v103
    %v448 = vunpack.c.l.b16 %v104
    %v449 = vunpack.c.h.b16 %v104
    %v450 = vunpack.c.l.b16 %v105
    %v451 = vunpack.c.h.b16 %v105
    %v452 = vunpack.c.l.b16 %v106
    %v453 = vunpack.c.h.b16 %v106
    %v454 = vunpack.c.l.b16 %v107
    %v455 = vunpack.c.h.b16 %v107
    %v456 = vunpack.c.l.b16 %v108
    %v457 = vunpack.c.h.b16 %v108
    %v458 = vunpack.c.l.b16 %v109
    %v459 = vunpack.c.h.b16 %v109
    %v460 = vunpack.c.l.b16 %v110
    %v461 = vunpack.c.h.b16 %v110
    %v462 = vunpack.c.l.b16 %v111
    %v463 = vunpack.c.h.b16 %v111
    %v464 = vunpack.c.l.b16 %v112
    %v465 = vunpack.c.h.b16 %v112
    %v466 = vunpack.c.l.b16 %v113
    %v467 = vunpack.c.h.b16 %v113
    %v468 = vunpack.c.l.b16 %v114
    %v469 = vunpack.c.h.b16 %v114
    %v470 = vunpack.c.l.b16 %v115
    %v471 = vunpack.c.h.b16 %v115
    %v472 = vunpack.c.l.b16 %v116
    %v473 = vunpack.c.h.b16 %v116
    %v474 = vunpack.c.l.b16 %v117
    %v475 = vunpack.c.h.b16 %v117
    %v476 = vunpack.c.l.b16 %v118
    %v477 = vunpack.c.h.b16 %v118
    %v478 = vunpack.c.l.b16 %v119
    %v479 = vunpack.c.h.b16 %v119
    %v480 = vunpack.c.l.b16 %v120
    %v481 = vunpack.c.h.b16 %v120
    %v482 = vunpack.c.l.b16 %v121
    %v483 = vunpack.c.h.b16 %v121
    %v484 = vunpack.c.l.b16 %v122
    %v485 = vunpack.c.h.b16 %v122
    %v486 = vunpack.c.l.b16 %v123
    %v487 = vunpack.c.h.b16 %v123
    %v488 = vunpack.c.l.b16 %v124
    %v489 = vunpack.c.h.b16 %v124
    %v490 = vunpack.c.l.b16 %v125
    %v491 = vunpack.c.h.b16 %v125
    %v492 = vunpack.c.l.b16 %v126
    %v493 = vunpack.c.h.b16 %v126
    %v494 = vunpack.c.l.b16 %v127
    %v495 = vunpack.c.h.b16 %v127
    %v496 = vunpack.c.l.b16 %v128
    %v497 = vunpack.c.h.b16 %v128
    %v498 = vunpack.c.l.b16 %v129
    %v499 = vunpack.c.h.b16 %v129
    %v500 = vunpack.c.l.b16 %v130
    %v501 = vunpack.c.h.b16 %v130
    %v502 = vunpack.c.l.b16 %v131
    %v503 = vunpack.c.h.b16 %v131
    %v504 = vunpack.c.l.b16 %v132
    %v505 = vunpack.c.h.b16 %v132
    %v506 = vunpack.c.l.b16 %v133
    %v507 = vunpack.c.h.b16 %v133
    %v508 = vunpack.c.l.b16 %v134
    %v509 = vunpack.c.h.b16 %v134
    %v510 = vunpack.c.l.b16 %v135
    %v511 = vunpack.c.h.b16 %v135
    %v512 = vunpack.c.l.b16 %v136
    %v513 = vunpack.c.h.b16 %v136
    %v514 = vunpack.c.l.b16 %v137
    %v515 = vunpack.c.h.b16 %v137
    %v516 = vunpack.c.l.b16 %v138
    %v517 = vunpack.c.h.b16 %v138
    %v518 = vunpack.c.l.b16 %v139
    %v519 = vunpack.c.h.b16 %v139
    %v520 = vunpack.c.l.b16 %v140
    %v521 = vunpack.c.h.b16 %v140
    %v522 = vunpack.c.l.b16 %v141
    %v523 = vunpack.c.h.b16 %v141
    %v524 = vunpack.c.l.b16 %v142
    %v525 = vunpack.c.h.b16 %v142
    %v526 = vunpack.c.l.b16 %v143
    %v527 = vunpack.c.h.b16 %v143
    %v528 = vunpack.c.l.b16 %v144
    %v529 = vunpack.c.h.b16 %v144
    %v530 = vunpack.c.l.b16 %v145
    %v531 = vunpack.c.h.b16 %v145
    %v532 = vunpack.c.l.b16 %v146
    %v533 = vunpack.c.h.b16 %v146
    %v534 = vunpack.c.l.b16 %v147
    %v535 = vunpack.c.h.b16 %v147
    %v536 = vunpack.c.l.b16 %v148
    %v537 = vunpack.c.h.b16 %v148
    %v538 = vunpack.c.l.b16 %v149
    %v539 = vunpack.c.h.b16 %v149
    %v540 = vunpack.c.l.b16 %v150
    %v541 = vunpack.c.h.b16 %v150
    %v542 = vunpack.c.l.b16 %v151
    %v543 = vunpack.c.h.b16 %v151
    %v544 = vunpack.c.l.b16 %v152
    %v545 = vunpack.c.h.b16 %v152
    %v546 = vunpack.c.l.b16 %v153
    %v547 = vunpack.c.h.b16 %v153
    %v548 = vunpack.c.l.b16 %v154
    %v549 = vunpack.c.h.b16 %v154
    %v550 = vunpack.c.l.b16 %v155
    %v551 = vunpack.c.h.b16 %v155
    %v552 = vunpack.c.l.b16 %v156
    %v553 = vunpack.c.h.b16 %v156
    %v554 = vunpack.c.l.b16 %v157
    %v555 = vunpack.c.h.b16 %v157
    %v556 = vunpack.c.l.b16 %v158
    %v557 = vunpack.c.h.b16 %v158
    %v558 = vunpack.c.l.b16 %v159
    %v559 = vunpack.c.h.b16 %v159
    %v560 = vunpack.c.l.b16 %v160
    %v561 = vunpack.c.h.b16 %v160
    %v562 = vunpack.c.l.b16 %v161
    %v563 = vunpack.c.h.b16 %v161
    %v564 = vunpack.c.l.b16 %v162
    %v565 = vunpack.c.h.b16 %v162
    %v566 = vunpack.c.l.b16 %v163
    %v567 = vunpack.c.h.b16 %v163
    %v568 = vunpack.c.l.b16 %v164
    %v569 = vunpack.c.h.b16 %v164
    %v570 = vunpack.c.l.b16 %v165
    %v571 = vunpack.c.h.b16 %v165
    %v572 = vunpack.c.l.b16 %v166
    %v573 = vunpack.c.h.b16 %v166
    %v574 = vunpack.c.l.b16 %v167
    %v575 = vunpack.c.h.b16 %v167
    %v576 = vunpack.c.l.b16 %v168
    %v577 = vunpack.c.h.b16 %v168
    %v578 = vunpack.c.l.b16 %v169
    %v579 = vunpack.c.h.b16 %v169
    %v580 = vunpack.c.l.b16 %v170
    %v581 = vunpack.c.h.b16 %v170
    %v582 = vunpack.c.l.b16 %v171
    %v583 = vunpack.c.h.b16 %v171
    %v584 = vunpack.c.l.b16 %v172
    %v585 = vunpack.c.h.b16 %v172
    %v586 = vunpack.c.l.b16 %v173
    %v587 = vunpack.c.h.b16 %v173
    %v588 = vunpack.c.l.b16 %v174
    %v589 = vunpack.c.h.b16 %v174
    %v590 = vunpack.c.l.b16 %v175
    %v591 = vunpack.c.h.b16 %v175
    %v592 = vunpack.c.l.b16 %v176
    %v593 = vunpack.c.h.b16 %v176
    %v594 = vunpack.c.l.b16 %v177
    %v595 = vunpack.c.h.b16 %v177
    %v596 = vunpack.c.l.b16 %v178
    %v597 = vunpack.c.h.b16 %v178
    %v598 = vunpack.c.l.b16 %v179
    %v599 = vunpack.c.h.b16 %v179
    %v600 = vunpack.c.l.b16 %v180
    %v601 = vunpack.c.h.b16 %v180
    %v602 = vunpack.c.l.b16 %v181
    %v603 = vunpack.c.h.b16 %v181
    %v604 = vunpack.c.l.b16 %v182
    %v605 = vunpack.c.h.b16 %v182
    %v606 = vunpack.c.l.b16 %v183
    %v607 = vunpack.c.h.b16 %v183
    %v608 = vunpack.c.l.b16 %v184
    %v609 = vunpack.c.h.b16 %v184
    %v610 = vunpack.c.l.b16 %v185
    %v611 = vunpack.c.h.b16 %v185
    %v612 = vunpack.c.l.b16 %v186
    %v613 = vunpack.c.h.b16 %v186
    %v614 = vunpack.c.l.b16 %v187
    %v615 = vunpack.c.h.b16 %v187
    %v616 = vunpack.c.l.b16 %v188
    %v617 = vunpack.c.h.b16 %v188
    %v618 = vunpack.c.l.b16 %v189
    %v619 = vunpack.c.h.b16 %v189
    %v620 = vunpack.c.l.b16 %v190
    %v621 = vunpack.c.h.b16 %v190
    %v622 = vunpack.c.l.b16 %v191
    %v623 = vunpack.c.h.b16 %v191
    %v624 = vunpack.c.l.b16 %v192
    %v625 = vunpack.c.h.b16 %v192
    %v626 = vpack.c.b16 %v372, %v370
    %v627 = vpack.c.b16 %v373, %v371
    %v628 = vpack.c.b16 %v376, %v374
    %v629 = vpack.c.b16 %v377, %v375
    %v630 = vpack.c.b16 %v380, %v378
    %v631 = vpack.c.b16 %v381, %v379
    %v632 = vpack.c.b16 %v384, %v382
    %v633 = vpack.c.b16 %v385, %v383
    %v634 = vpack.c.b16 %v388, %v386
    %v635 = vpack.c.b16 %v389, %v387
    %v636 = vpack.c.b16 %v392, %v390
    %v637 = vpack.c.b16 %v393, %v391
    %v638 = vpack.c.b16 %v396, %v394
    %v639 = vpack.c.b16 %v397, %v395
    %v640 = vpack.c.b16 %v400, %v398
    %v641 = vpack.c.b16 %v401, %v399
    %v642 = vpack.c.b16 %v404, %v402
    %v643 = vpack.c.b16 %v405, %v403
    %v644 = vpack.c.b16 %v408, %v406
    %v645 = vpack.c.b16 %v409, %v407
    %v646 = vpack.c.b16 %v412, %v410
    %v647 = vpack.c.b16 %v413, %v411
    %v648 = vpack.c.b16 %v416, %v414
    %v649 = vpack.c.b16 %v417, %v415
    %v650 = vpack.c.b16 %v420, %v418
    %v651 = vpack.c.b16 %v421, %v419
    %v652 = vpack.c.b16 %v424, %v422
    %v653 = vpack.c.b16 %v425, %v423
    %v654 = vpack.c.b16 %v428, %v426
    %v655 = vpack.c.b16 %v429, %v427
    %v656 = vpack.c.b16 %v432, %v430
    %v657 = vpack.c.b16 %v433, %v431
    %v658 = vpack.c.b16 %v436, %v434
    %v659 = vpack.c.b16 %v437, %v435
    %v660 = vpack.c.b16 %v440, %v438
    %v661 = vpack.c.b16 %v441, %v439
    %v662 = vpack.c.b16 %v444, %v442
    %v663 = vpack.c.b16 %v445, %v443
    %v664 = vpack.c.b16 %v448, %v446
    %v665 = vpack.c.b16 %v449, %v447
    %v666 = vpack.c.b16 %v452, %v450
    %v667 = vpack.c.b16 %v453, %v451
    %v668 = vpack.c.b16 %v456, %v454
    %v669 = vpack.c.b16 %v457, %v455
    %v670 = vpack.c.b16 %v460, %v458
    %v671 = vpack.c.b16 %v461, %v459
    %v672 = vpack.c.b16 %v464, %v462
    %v673 = vpack.c.b16 %v465, %v463
    %v674 = vpack.c.b16 %v468, %v466
    %v675 = vpack.c.b16 %v469, %v467
    %v676 = vpack.c.b16 %v472, %v470
    %v677 = vpack.c.b16 %v473, %v471
    %v678 = vpack.c.b16 %v476, %v474
    %v679 = vpack.c.b16 %v477, %v475
    %v680 = vpack.c.b16 %v480, %v478
    %v681 = vpack.c.b16 %v481, %v479
    %v682 = vpack.c.b16 %v484, %v482
    %v683 = vpack.c.b16 %v485, %v483
    %v684 = vpack.c.b16 %v488, %v486
    %v685 = vpack.c.b16 %v489, %v487
    %v686 = vpack.c.b16 %v492, %v490
    %v687 = vpack.c.b16 %v493, %v491
    %v688 = vpack.c.b16 %v496, %v494
    %v689 = vpack.c.b16 %v497, %v495
    %v690 = vpack.c.b16 %v500, %v498
    %v691 = vpack.c.b16 %v501, %v499
    %v692 = vpack.c.b16 %v504, %v502
    %v693 = vpack.c.b16 %v505, %v503
    %v694 = vpack.c.b16 %v508, %v506
    %v695 = vpack.c.b16 %v509, %v507
    %v696 = vpack.c.b16 %v512, %v510
    %v697 = vpack.c.b16 %v513, %v511
    %v698 = vpack.c.b16 %v516, %v514
    %v699 = vpack.c.b16 %v517, %v515
    %v700 = vpack.c.b16 %v520, %v518
    %v701 = vpack.c.b16 %v521, %v519
    %v702 = vpack.c.b16 %v524, %v522
    %v703 = vpack.c.b16 %v525, %v523
    %v704 = vpack.c.b16 %v528, %v526
    %v705 = vpack.c.b16 %v529, %v527
    %v706 = vpack.c.b16 %v532, %v530
    %v707 = vpack.c.b16 %v533, %v531
    %v708 = vpack.c.b16 %v536, %v534
    %v709 = vpack.c.b16 %v537, %v535
    %v710 = vpack.c.b16 %v540, %v538
    %v711 = vpack.c.b16 %v541, %v539
    %v712 = vpack.c.b16 %v544, %v542
    %v713 = vpack.c.b16 %v545, %v543
    %v714 = vpack.c.b16 %v548, %v546
    %v715 = vpack.c.b16 %v549, %v547
    %v716 = vpack.c.b16 %v552, %v550
    %v717 = vpack.c.b16 %v553, %v551
    %v718 = vpack.c.b16 %v556, %v554
    %v719 = vpack.c.b16 %v557, %v555
    %v720 = vpack.c.b16 %v560, %v558
    %v721 = vpack.c.b16 %v561, %v559
    %v722 = vpack.c.b16 %v564, %v562
    %v723 = vpack.c.b16 %v565, %v563
    %v724 = vpack.c.b16 %v568, %v566
    %v725 = vpack.c.b16 %v569, %v567
    %v726 = vpack.c.b16 %v572, %v570
    %v727 = vpack.c.b16 %v573, %v571
    %v728 = vpack.c.b16 %v576, %v574
    %v729 = vpack.c.b16 %v577, %v575
    %v730 = vpack.c.b16 %v580, %v578
    %v731 = vpack.c.b16 %v581, %v579
    %v732 = vpack.c.b16 %v584, %v582
    %v733 = vpack.c.b16 %v585, %v583
    %v734 = vpack.c.b16 %v588, %v586
    %v735 = vpack.c.b16 %v589, %v587
    %v736 = vpack.c.b16 %v592, %v590
    %v737 = vpack.c.b16 %v593, %v591
    %v738 = vpack.c.b16 %v596, %v594
    %v739 = vpack.c.b16 %v597, %v595
    %v740 = vpack.c.b16 %v600, %v598
    %v741 = vpack.c.b16 %v601, %v599
    %v742 = vpack.c.b16 %v604, %v602
    %v743 = vpack.c.b16 %v605, %v603
    %v744 = vpack.c.b16 %v608, %v606
    %v745 = vpack.c.b16 %v609, %v607
    %v746 = vpack.c.b16 %v612, %v610
    %v747 = vpack.c.b16 %v613, %v611
    %v748 = vpack.c.b16 %v616, %v614
    %v749 = vpack.c.b16 %v617, %v615
    %v750 = vpack.c.b16 %v620, %v618
    %v751 = vpack.c.b16 %v621, %v619
    %v752 = vpack.c.b16 %v624, %v622
    %v753 = vpack.c.b16 %v625, %v623
    %882 = vmatprep.subr.bf16.mxu0 %v627
    %883 = vmatpush1.bf16.msra.mxu0 %v626
    %884 = vmatprep.subr.bf16.mxu0 %v629
    %885 = vmatpush1.bf16.msra.mxu0 %v628
    %886 = vmatprep.subr.bf16.mxu0 %v631
    %887 = vmatpush1.bf16.msra.mxu0 %v630
    %888 = vmatprep.subr.bf16.mxu0 %v633
    %889 = vmatpush1.bf16.msra.mxu0 %v632
    %890 = vmatprep.subr.bf16.mxu0 %v635
    %891 = vmatpush1.bf16.msra.mxu0 %v634
    %892 = vmatprep.subr.bf16.mxu0 %v637
    %893 = vmatpush1.bf16.msra.mxu0 %v636
    %894 = vmatprep.subr.bf16.mxu0 %v639
    %895 = vmatpush1.bf16.msra.mxu0 %v638
    %896 = vmatprep.subr.bf16.mxu0 %v641
    %897 = vmatpush1.bf16.msra.mxu0 %v640
    %898 = vmatprep.subr.bf16.mxu0 %v643
    %899 = vmatpush1.bf16.msra.mxu0 %v642
    %900 = vmatprep.subr.bf16.mxu0 %v645
    %901 = vmatpush1.bf16.msra.mxu0 %v644
    %902 = vmatprep.subr.bf16.mxu0 %v647
    %903 = vmatpush1.bf16.msra.mxu0 %v646
    %904 = vmatprep.subr.bf16.mxu0 %v649
    %905 = vmatpush1.bf16.msra.mxu0 %v648
    %906 = vmatprep.subr.bf16.mxu0 %v651
    %907 = vmatpush1.bf16.msra.mxu0 %v650
    %908 = vmatprep.subr.bf16.mxu0 %v653
    %909 = vmatpush1.bf16.msra.mxu0 %v652
    %910 = vmatprep.subr.bf16.mxu0 %v655
    %911 = vmatpush1.bf16.msra.mxu0 %v654
    %912 = vmatprep.subr.bf16.mxu0 %v657
    %913 = vmatpush1.bf16.msra.mxu0 %v656
    %914 = vmatprep.mubr.bf16.mxu0 %v227
    %915 = vmatmul.mubr.bf16.gmra.mrb[0].mxu0 %v226
    %v916 = vpop.f32.mrb[0].mxu0
    %v917 = vadd.f32 %v209, %v916
    %v918 = vpop.f32.mrb[0].mxu0
    %v919 = vadd.f32 %v213, %v918
    %v920 = vpop.f32.mrb[0].mxu0
    %v921 = vpop.f32.mrb[0].mxu0
    %922 = vdwg.mxu0
    %923 = vmatprep.subr.bf16.mxu0 %v659
    %924 = vmatpush1.bf16.msra.mxu0 %v658
    %925 = vmatprep.subr.bf16.mxu0 %v661
    %926 = vmatpush1.bf16.msra.mxu0 %v660
    %927 = vmatprep.subr.bf16.mxu0 %v663
    %928 = vmatpush1.bf16.msra.mxu0 %v662
    %929 = vmatprep.subr.bf16.mxu0 %v665
    %930 = vmatpush1.bf16.msra.mxu0 %v664
    %931 = vmatprep.subr.bf16.mxu0 %v667
    %932 = vmatpush1.bf16.msra.mxu0 %v666
    %933 = vmatprep.subr.bf16.mxu0 %v669
    %934 = vmatpush1.bf16.msra.mxu0 %v668
    %935 = vmatprep.subr.bf16.mxu0 %v671
    %936 = vmatpush1.bf16.msra.mxu0 %v670
    %937 = vmatprep.subr.bf16.mxu0 %v673
    %938 = vmatpush1.bf16.msra.mxu0 %v672
    %939 = vmatprep.subr.bf16.mxu0 %v675
    %940 = vmatpush1.bf16.msra.mxu0 %v674
    %941 = vmatprep.subr.bf16.mxu0 %v677
    %942 = vmatpush1.bf16.msra.mxu0 %v676
    %943 = vmatprep.subr.bf16.mxu0 %v679
    %944 = vmatpush1.bf16.msra.mxu0 %v678
    %945 = vmatprep.subr.bf16.mxu0 %v681
    %946 = vmatpush1.bf16.msra.mxu0 %v680
    %947 = vmatprep.subr.bf16.mxu0 %v683
    %948 = vmatpush1.bf16.msra.mxu0 %v682
    %949 = vmatprep.subr.bf16.mxu0 %v685
    %950 = vmatpush1.bf16.msra.mxu0 %v684
    %951 = vmatprep.subr.bf16.mxu0 %v687
    %952 = vmatpush1.bf16.msra.mxu0 %v686
    %953 = vmatprep.subr.bf16.mxu0 %v689
    %954 = vmatpush1.bf16.msra.mxu0 %v688
    %955 = vmatprep.mubr.bf16.mxu0 %v229
    %956 = vmatmul.mubr.bf16.gmra.mrb[0].mxu0 %v228
    %v957 = vpop.f32.mrb[0].mxu0
    %v958 = vadd.f32 %v917, %v957
    %v959 = vpop.f32.mrb[0].mxu0
    %v960 = vadd.f32 %v919, %v959
    %v961 = vpop.f32.mrb[0].mxu0
    %v962 = vpop.f32.mrb[0].mxu0
    %963 = vdwg.mxu0
    %964 = vmatprep.subr.bf16.mxu0 %v691
    %965 = vmatpush1.bf16.msra.mxu0 %v690
    %966 = vmatprep.subr.bf16.mxu0 %v693
    %967 = vmatpush1.bf16.msra.mxu0 %v692
    %968 = vmatprep.subr.bf16.mxu0 %v695
    %969 = vmatpush1.bf16.msra.mxu0 %v694
    %970 = vmatprep.subr.bf16.mxu0 %v697
    %971 = vmatpush1.bf16.msra.mxu0 %v696
    %972 = vmatprep.subr.bf16.mxu0 %v699
    %973 = vmatpush1.bf16.msra.mxu0 %v698
    %974 = vmatprep.subr.bf16.mxu0 %v701
    %975 = vmatpush1.bf16.msra.mxu0 %v700
    %976 = vmatprep.subr.bf16.mxu0 %v703
    %977 = vmatpush1.bf16.msra.mxu0 %v702
    %978 = vmatprep.subr.bf16.mxu0 %v705
    %979 = vmatpush1.bf16.msra.mxu0 %v704
    %980 = vmatprep.subr.bf16.mxu0 %v707
    %981 = vmatpush1.bf16.msra.mxu0 %v706
    %982 = vmatprep.subr.bf16.mxu0 %v709
    %983 = vmatpush1.bf16.msra.mxu0 %v708
    %984 = vmatprep.subr.bf16.mxu0 %v711
    %985 = vmatpush1.bf16.msra.mxu0 %v710
    %986 = vmatprep.subr.bf16.mxu0 %v713
    %987 = vmatpush1.bf16.msra.mxu0 %v712
    %988 = vmatprep.subr.bf16.mxu0 %v715
    %989 = vmatpush1.bf16.msra.mxu0 %v714
    %990 = vmatprep.subr.bf16.mxu0 %v717
    %991 = vmatpush1.bf16.msra.mxu0 %v716
    %992 = vmatprep.subr.bf16.mxu0 %v719
    %993 = vmatpush1.bf16.msra.mxu0 %v718
    %994 = vmatprep.subr.bf16.mxu0 %v721
    %995 = vmatpush1.bf16.msra.mxu0 %v720
    %996 = vmatprep.mubr.bf16.mxu0 %v231
    %997 = vmatmul.mubr.bf16.gmra.mrb[0].mxu0 %v230
    %v998 = vpop.f32.mrb[0].mxu0
    %v999 = vadd.f32 %v958, %v998
    %v1000 = vpop.f32.mrb[0].mxu0
    %v1001 = vadd.f32 %v960, %v1000
    %v1002 = vpop.f32.mrb[0].mxu0
    %v1003 = vpop.f32.mrb[0].mxu0
    %1004 = vdwg.mxu0
    %1005 = vmatprep.subr.bf16.mxu0 %v723
    %1006 = vmatpush1.bf16.msra.mxu0 %v722
    %1007 = vmatprep.subr.bf16.mxu0 %v725
    %1008 = vmatpush1.bf16.msra.mxu0 %v724
    %1009 = vmatprep.subr.bf16.mxu0 %v727
    %1010 = vmatpush1.bf16.msra.mxu0 %v726
    %1011 = vmatprep.subr.bf16.mxu0 %v729
    %1012 = vmatpush1.bf16.msra.mxu0 %v728
    %1013 = vmatprep.subr.bf16.mxu0 %v731
    %1014 = vmatpush1.bf16.msra.mxu0 %v730
    %1015 = vmatprep.subr.bf16.mxu0 %v733
    %1016 = vmatpush1.bf16.msra.mxu0 %v732
    %1017 = vmatprep.subr.bf16.mxu0 %v735
    %1018 = vmatpush1.bf16.msra.mxu0 %v734
    %1019 = vmatprep.subr.bf16.mxu0 %v737
    %1020 = vmatpush1.bf16.msra.mxu0 %v736
    %1021 = vmatprep.subr.bf16.mxu0 %v739
    %1022 = vmatpush1.bf16.msra.mxu0 %v738
    %1023 = vmatprep.subr.bf16.mxu0 %v741
    %1024 = vmatpush1.bf16.msra.mxu0 %v740
    %1025 = vmatprep.subr.bf16.mxu0 %v743
    %1026 = vmatpush1.bf16.msra.mxu0 %v742
    %1027 = vmatprep.subr.bf16.mxu0 %v745
    %1028 = vmatpush1.bf16.msra.mxu0 %v744
    %1029 = vmatprep.subr.bf16.mxu0 %v747
    %1030 = vmatpush1.bf16.msra.mxu0 %v746
    %1031 = vmatprep.subr.bf16.mxu0 %v749
    %1032 = vmatpush1.bf16.msra.mxu0 %v748
    %1033 = vmatprep.subr.bf16.mxu0 %v751
    %1034 = vmatpush1.bf16.msra.mxu0 %v750
    %1035 = vmatprep.subr.bf16.mxu0 %v753
    %1036 = vmatpush1.bf16.msra.mxu0 %v752
    %1037 = vmatprep.mubr.bf16.mxu0 %v233
    %1038 = vmatmul.mubr.bf16.gmra.mrb[0].mxu0 %v232
    %v1039 = vpop.f32.mrb[0].mxu0
    %v1040 = vadd.f32 %v999, %v1039
    %v1041 = vpop.f32.mrb[0].mxu0
    %v1042 = vadd.f32 %v1001, %v1041
    %v1043 = vpop.f32.mrb[0].mxu0
    %v1044 = vpop.f32.mrb[0].mxu0
    %1045 = vdwg.mxu0
    %v1046 = vxor.u32 %v1040, 2147483648
    %v1047 = vxor.u32 %v1042, 2147483648
    %v1048 = vmul.f32 %v1046, 1.442695
    %v1049 = vpow.pop %v1048
    %v1050 = vmul.f32 %v1047, 1.442695
    %v1051 = vpow.pop %v1050
    %v1052 = vadd.f32 %v1049, 1.0
    %v1053 = vadd.f32 %v1051, 1.0
    %v1054 = vrcp.pop %v1052
    %v1055 = vmul.f32 1.0, %v1054
    %v1056 = vrcp.pop %v1053
    %v1057 = vmul.f32 1.0, %v1056
    %v1058 = vpack.c.bf16 %v1055, %v1055
    %v1059 = vpack.c.bf16 %v1057, %v1057
    %v1060 = vld [vmem:[#allocation7] sm:$0xf]
    %v1061 = vld [vmem:[#allocation7 + $0x4] sm:$0xf]
    %v1062 = vld [vmem:[#allocation7 + $0x8] sm:$0xf]
    %v1063 = vld [vmem:[#allocation7 + $0xc] sm:$0xf]
    %v1064 = vld [vmem:[#allocation7 + $0x10] sm:$0xf]
    %v1065 = vld [vmem:[#allocation7 + $0x14] sm:$0xf]
    %v1066 = vld [vmem:[#allocation7 + $0x18] sm:$0xf]
    %v1067 = vld [vmem:[#allocation7 + $0x1c] sm:$0xf]
    %v1068 = vld [vmem:[#allocation7 + $0x20] sm:$0xf]
    %v1069 = vld [vmem:[#allocation7 + $0x24] sm:$0xf]
    %v1070 = vld [vmem:[#allocation7 + $0x28] sm:$0xf]
    %v1071 = vld [vmem:[#allocation7 + $0x2c] sm:$0xf]
    %v1072 = vld [vmem:[#allocation7 + $0x30] sm:$0xf]
    %v1073 = vld [vmem:[#allocation7 + $0x34] sm:$0xf]
    %v1074 = vld [vmem:[#allocation7 + $0x38] sm:$0xf]
    %v1075 = vld [vmem:[#allocation7 + $0x3c] sm:$0xf]
    %v1076 = vld [vmem:[#allocation7 + $0x40] sm:$0xf]
    %v1077 = vld [vmem:[#allocation7 + $0x44] sm:$0xf]
    %v1078 = vld [vmem:[#allocation7 + $0x48] sm:$0xf]
    %v1079 = vld [vmem:[#allocation7 + $0x4c] sm:$0xf]
    %v1080 = vld [vmem:[#allocation7 + $0x50] sm:$0xf]
    %v1081 = vld [vmem:[#allocation7 + $0x54] sm:$0xf]
    %v1082 = vld [vmem:[#allocation7 + $0x58] sm:$0xf]
    %v1083 = vld [vmem:[#allocation7 + $0x5c] sm:$0xf]
    %v1084 = vld [vmem:[#allocation7 + $0x60] sm:$0xf]
    %v1085 = vld [vmem:[#allocation7 + $0x64] sm:$0xf]
    %v1086 = vld [vmem:[#allocation7 + $0x68] sm:$0xf]
    %v1087 = vld [vmem:[#allocation7 + $0x6c] sm:$0xf]
    %v1088 = vld [vmem:[#allocation7 + $0x70] sm:$0xf]
    %v1089 = vld [vmem:[#allocation7 + $0x74] sm:$0xf]
    %v1090 = vld [vmem:[#allocation7 + $0x78] sm:$0xf]
    %v1091 = vld [vmem:[#allocation7 + $0x7c] sm:$0xf]
    %v1092 = vld [vmem:[%s4] sm:$0x1]
    %v1093 = vunpack.c.l.bf16 %v1092
    %v1094 = vlaneseq
    %v1095 = vshrl.u32 %v1094, 7
    %v1096 = vsub.s32 0, %v1095
    %v1097 = vrot.slane %v1093, %v1096
    %v1130 = vunpack.c.l.b16 %v1060
    %v1131 = vunpack.c.l.b16 %v1061
    %v1132 = vunpack.c.l.b16 %v1062
    %v1133 = vunpack.c.l.b16 %v1063
    %v1134 = vunpack.c.l.b16 %v1064
    %v1135 = vunpack.c.l.b16 %v1065
    %v1136 = vunpack.c.l.b16 %v1066
    %v1137 = vunpack.c.l.b16 %v1067
    %v1138 = vunpack.c.l.b16 %v1068
    %v1139 = vunpack.c.l.b16 %v1069
    %v1140 = vunpack.c.l.b16 %v1070
    %v1141 = vunpack.c.l.b16 %v1071
    %v1142 = vunpack.c.l.b16 %v1072
    %v1143 = vunpack.c.l.b16 %v1073
    %v1144 = vunpack.c.l.b16 %v1074
    %v1145 = vunpack.c.l.b16 %v1075
    %v1146 = vunpack.c.l.b16 %v1076
    %v1147 = vunpack.c.l.b16 %v1077
    %v1148 = vunpack.c.l.b16 %v1078
    %v1149 = vunpack.c.l.b16 %v1079
    %v1150 = vunpack.c.l.b16 %v1080
    %v1151 = vunpack.c.l.b16 %v1081
    %v1152 = vunpack.c.l.b16 %v1082
    %v1153 = vunpack.c.l.b16 %v1083
    %v1154 = vunpack.c.l.b16 %v1084
    %v1155 = vunpack.c.l.b16 %v1085
    %v1156 = vunpack.c.l.b16 %v1086
    %v1157 = vunpack.c.l.b16 %v1087
    %v1158 = vunpack.c.l.b16 %v1088
    %v1159 = vunpack.c.l.b16 %v1089
    %v1160 = vunpack.c.l.b16 %v1090
    %v1161 = vunpack.c.l.b16 %v1091
    %v1162 = vpack.c.b16 %v1131, %v1130
    %v1163 = vpack.c.b16 %v1133, %v1132
    %v1164 = vpack.c.b16 %v1135, %v1134
    %v1165 = vpack.c.b16 %v1137, %v1136
    %v1166 = vpack.c.b16 %v1139, %v1138
    %v1167 = vpack.c.b16 %v1141, %v1140
    %v1168 = vpack.c.b16 %v1143, %v1142
    %v1169 = vpack.c.b16 %v1145, %v1144
    %v1170 = vpack.c.b16 %v1147, %v1146
    %v1171 = vpack.c.b16 %v1149, %v1148
    %v1172 = vpack.c.b16 %v1151, %v1150
    %v1173 = vpack.c.b16 %v1153, %v1152
    %v1174 = vpack.c.b16 %v1155, %v1154
    %v1175 = vpack.c.b16 %v1157, %v1156
    %v1176 = vpack.c.b16 %v1159, %v1158
    %v1177 = vpack.c.b16 %v1161, %v1160
    %1194 = vmatprep.subr.bf16.mxu0 0
    %1195 = vmatpush1.bf16.msra.mxu0 %v1162
    %1196 = vmatprep.subr.bf16.mxu0 0
    %1197 = vmatpush1.bf16.msra.mxu0 %v1163
    %1198 = vmatprep.subr.bf16.mxu0 0
    %1199 = vmatpush1.bf16.msra.mxu0 %v1164
    %1200 = vmatprep.subr.bf16.mxu0 0
    %1201 = vmatpush1.bf16.msra.mxu0 %v1165
    %1202 = vmatprep.subr.bf16.mxu0 0
    %1203 = vmatpush1.bf16.msra.mxu0 %v1166
    %1204 = vmatprep.subr.bf16.mxu0 0
    %1205 = vmatpush1.bf16.msra.mxu0 %v1167
    %1206 = vmatprep.subr.bf16.mxu0 0
    %1207 = vmatpush1.bf16.msra.mxu0 %v1168
    %1208 = vmatprep.subr.bf16.mxu0 0
    %1209 = vmatpush1.bf16.msra.mxu0 %v1169
    %1210 = vmatprep.subr.bf16.mxu0 0
    %1211 = vmatpush1.bf16.msra.mxu0 %v1170
    %1212 = vmatprep.subr.bf16.mxu0 0
    %1213 = vmatpush1.bf16.msra.mxu0 %v1171
    %1214 = vmatprep.subr.bf16.mxu0 0
    %1215 = vmatpush1.bf16.msra.mxu0 %v1172
    %1216 = vmatprep.subr.bf16.mxu0 0
    %1217 = vmatpush1.bf16.msra.mxu0 %v1173
    %1218 = vmatprep.subr.bf16.mxu0 0
    %1219 = vmatpush1.bf16.msra.mxu0 %v1174
    %1220 = vmatprep.subr.bf16.mxu0 0
    %1221 = vmatpush1.bf16.msra.mxu0 %v1175
    %1222 = vmatprep.subr.bf16.mxu0 0
    %1223 = vmatpush1.bf16.msra.mxu0 %v1176
    %1224 = vmatprep.subr.bf16.mxu0 0
    %1225 = vmatpush1.bf16.msra.mxu0 %v1177
    %1226 = vmatprep.mubr.bf16.mxu0 %v1059
    %1227 = vmatmul.mubr.bf16.gmra.mrb[0].mxu0 %v1058
    %v1228 = vpop.f32.mrb[0].mxu0
    %v1229 = vadd.f32 %v1097, %v1228
    %v1230 = vpop.f32.mrb[0].mxu0
    %v1231 = vpop.f32.mrb[0].mxu0
    %v1232 = vpop.f32.mrb[0].mxu0
    %1233 = vdwg.mxu0
    %v1234 = vxor.u32 %v1229, 2147483648
    %v1235 = vmul.f32 %v1234, 1.442695
    %v1236 = vpow.pop %v1235
    %v1237 = vadd.f32 %v1236, 1.0
    %v1238 = vrcp.pop %v1237
    %v1239 = vmul.f32 1.0, %v1238
    %1240 = vst [vmem:[#allocation8] sm:$0xff] %v1239
    // Predicated region
    $region34: #{tpu_custom_call.1} parent=1 // pred_check
      _
    $region35: #{tpu_custom_call.1} parent=1 // pred_check_branch
      %1242 = sbr.rel (0) target = $region37
    $region36: #{tpu_custom_call.1} parent=1 // pred_region
      %s1244 = ssub.s32 128, 128
      %1245 = vsyncadd [#allocation4], %s1244
      %s1247 = sshll.u32 [#allocation8], 4
      %s1248 = int_to_ptr.vmem [resolvable:$true] %s1247
      %1250 = dma.vmem_to_hbm [thread:$0]  %s1248, 128, %s5, [#allocation4]
    $region37: #{tpu_custom_call.1} parent=1 // pred_fallthru
      _
    // Predicated region
    $region38: #{tpu_custom_call.1} parent=1 // pred_check
      _
    $region39: #{tpu_custom_call.1} parent=1 // pred_check_branch
      %1252 = sbr.rel (0) target = $region41
    $region40: #{tpu_custom_call.1} parent=1 // pred_region
      %1253 = dma.done [#allocation4], 128
    $region41: #{tpu_custom_call.1} parent=1 // pred_fallthru
      _
    %1254 = vsyncpa [#allocation3], 1
    %1255 = vsyncpa [#allocation6], 1
    %1256 = vsyncpa [#allocation4], 1

// kernel: tpu_custom_call.1
$region0: #{tpu_custom_call.1}
  #allocation0 [shape = 'u32[]', space=smem, size = 0x4, offset = 0x4, fixed_abs, tag = 'smem constant byte address 0x4 - core index']
  #allocation1 [shape = 'u32[144,128]{1,0:T(1,128)}', space=vmem, size = 0x12000, scoped, tag = 'internal scratch']
  %s0 = inlined_call_operand.hbm [shape: bf16[8,1024], index: 0, kind: input, shape index: {}]
  %s1 = inlined_call_operand.hbm [shape: bf16[1024,256], index: 1, kind: input, shape index: {}]
  %s2 = inlined_call_operand.vmem [shape: bf16[1,256], index: 2, kind: input, shape index: {}]
  %s3 = inlined_call_operand.hbm [shape: bf16[256,128], index: 3, kind: input, shape index: {}]
  %s4 = inlined_call_operand.vmem [shape: bf16[1,128], index: 4, kind: input, shape index: {}]
  %s5 = inlined_call_operand.hbm [shape: f32[8,128], index: 5, kind: output, shape index: {}]
  %s6 = sld [smem:[#allocation0]]
  $region42: #{tpu_custom_call.1} parent=0
    _
  %s8 = ssub.s32 1, %s6
  %s9 = scalar_select 0, %s8, %s6
  $region1: #{tpu_custom_call.1} parent=0
    #allocation2 [shape = 'u8[16384]{0}', space=vmem, size = 0x4000, scoped, tag = 'input window, operand 0, single buffered']
    #allocation3 [shape = 's32[1]{0}', space=sflag, size = 0x4, scoped, tag = 'scoped memory for tpu_custom_call.1']
    #allocation4 [shape = 's32[1]{0}', space=sflag, size = 0x4, scoped, tag = 'scoped memory for tpu_custom_call.1']
    #allocation5 [shape = 'u8[524288]{0}', space=vmem, size = 0x80000, scoped, tag = 'input window, operand 1, single buffered']
    #allocation6 [shape = 's32[1]{0}', space=sflag, size = 0x4, scoped, tag = 'scoped memory for tpu_custom_call.1']
    #allocation7 [shape = 'u8[65536]{0}', space=vmem, size = 0x10000, scoped, tag = 'input window, operand 3, single buffered']
    #allocation8 [shape = 'u8[4096]{0}', space=vmem, size = 0x1000, scoped, tag = 'output window, operand 0, single buffered']
    %10 = vsyncpa [#allocation3], 0
    %11 = vsyncpa [#allocation6], 0
    %12 = vsyncpa [#allocation4], 0
    // Predicated region
    $region2: #{tpu_custom_call.1} parent=1 // pred_check
      _
    $region3: #{tpu_custom_call.1} parent=1 // pred_check_branch
      %14 = sbr.rel (0) target = $region5
    $region4: #{tpu_custom_call.1} parent=1 // pred_region
      %s16 = ssub.s32 512, 512
      %17 = vsyncadd [#allocation3], %s16
      %s19 = sshll.u32 [#allocation2], 4
      %s20 = int_to_ptr.vmem [resolvable:$true] %s19
      %22 = dma.hbm_to_vmem [thread:$0]  %s0, 512, %s20, [#allocation3]
    $region5: #{tpu_custom_call.1} parent=1 // pred_fallthru
      _
    // Predicated region
    $region6: #{tpu_custom_call.1} parent=1 // pred_check
      _
    $region7: #{tpu_custom_call.1} parent=1 // pred_check_branch
      %24 = sbr.rel (0) target = $region9
    $region8: #{tpu_custom_call.1} parent=1 // pred_region
      %s26 = ssub.s32 16384, 16384
      %27 = vsyncadd [#allocation6], %s26
      %s28 = sshll.u32 [#allocation5], 4
      %s29 = int_to_ptr.vmem [resolvable:$true] %s28
      %34 = dma.hbm_to_vmem [thread:$0]  %s1, 16384, %s29, [#allocation6], 128, 128, 8
    $region9: #{tpu_custom_call.1} parent=1 // pred_fallthru
      _
    // Predicated region
    $region10: #{tpu_custom_call.1} parent=1 // pred_check
      _
    $region11: #{tpu_custom_call.1} parent=1 // pred_check_branch
      %36 = sbr.rel (0) target = $region13
    $region12: #{tpu_custom_call.1} parent=1 // pred_region
      _
    $region13: #{tpu_custom_call.1} parent=1 // pred_fallthru
      _
    // Predicated region
    $region14: #{tpu_custom_call.1} parent=1 // pred_check
      _
    $region15: #{tpu_custom_call.1} parent=1 // pred_check_branch
      %38 = sbr.rel (0) target = $region17
    $region16: #{tpu_custom_call.1} parent=1 // pred_region
      %s40 = ssub.s32 2048, 2048
      %41 = vsyncadd [#allocation6], %s40
      %s42 = sshll.u32 [#allocation7], 4
      %s43 = int_to_ptr.vmem [resolvable:$true] %s42
      %48 = dma.hbm_to_vmem [thread:$0]  %s3, 2048, %s43, [#allocation6], 64, 64, 4
    $region17: #{tpu_custom_call.1} parent=1 // pred_fallthru
      _
    // Predicated region
    $region18: #{tpu_custom_call.1} parent=1 // pred_check
      _
    $region19: #{tpu_custom_call.1} parent=1 // pred_check_branch
      %50 = sbr.rel (0) target = $region21
    $region20: #{tpu_custom_call.1} parent=1 // pred_region
      _
    $region21: #{tpu_custom_call.1} parent=1 // pred_fallthru
      _
    // Predicated region
    $region22: #{tpu_custom_call.1} parent=1 // pred_check
      _
    $region23: #{tpu_custom_call.1} parent=1 // pred_check_branch
      %52 = sbr.rel (0) target = $region25
    $region24: #{tpu_custom_call.1} parent=1 // pred_region
      %53 = dma.done [#allocation3], 512
    $region25: #{tpu_custom_call.1} parent=1 // pred_fallthru
      _
    // Predicated region
    $region26: #{tpu_custom_call.1} parent=1 // pred_check
      _
    $region27: #{tpu_custom_call.1} parent=1 // pred_check_branch
      %55 = sbr.rel (0) target = $region29
    $region28: #{tpu_custom_call.1} parent=1 // pred_region
      %56 = dma.done [#allocation6], 16384
    $region29: #{tpu_custom_call.1} parent=1 // pred_fallthru
      _
    // Predicated region
    $region30: #{tpu_custom_call.1} parent=1 // pred_check
      _
    $region31: #{tpu_custom_call.1} parent=1 // pred_check_branch
      %58 = sbr.rel (0) target = $region33
    $region32: #{tpu_custom_call.1} parent=1 // pred_region
      %59 = dma.done [#allocation6], 2048
    $region33: #{tpu_custom_call.1} parent=1 // pred_fallthru
      _
    %v61 = vld [vmem:[#allocation2] sm:$0xff]
    %v62 = vld [vmem:[#allocation2 + $0x8] sm:$0xff]
    %v63 = vld [vmem:[#allocation2 + $0x10] sm:$0xff]
    %v64 = vld [vmem:[#allocation2 + $0x18] sm:$0xff]
    %v65 = vld [vmem:[#allocation5] sm:$0xff]
    %v66 = vld [vmem:[#allocation5 + $0x8] sm:$0xff]
    %v67 = vld [vmem:[#allocation5 + $0x10] sm:$0xff]
    %v68 = vld [vmem:[#allocation5 + $0x18] sm:$0xff]
    %v69 = vld [vmem:[#allocation5 + $0x20] sm:$0xff]
    %v70 = vld [vmem:[#allocation5 + $0x28] sm:$0xff]
    %v71 = vld [vmem:[#allocation5 + $0x30] sm:$0xff]
    %v72 = vld [vmem:[#allocation5 + $0x38] sm:$0xff]
    %v73 = vld [vmem:[#allocation5 + $0x40] sm:$0xff]
    %v74 = vld [vmem:[#allocation5 + $0x48] sm:$0xff]
    %v75 = vld [vmem:[#allocation5 + $0x50] sm:$0xff]
    %v76 = vld [vmem:[#allocation5 + $0x58] sm:$0xff]
    %v77 = vld [vmem:[#allocation5 + $0x60] sm:$0xff]
    %v78 = vld [vmem:[#allocation5 + $0x68] sm:$0xff]
    %v79 = vld [vmem:[#allocation5 + $0x70] sm:$0xff]
    %v80 = vld [vmem:[#allocation5 + $0x78] sm:$0xff]
    %v81 = vld [vmem:[#allocation5 + $0x80] sm:$0xff]
    %v82 = vld [vmem:[#allocation5 + $0x88] sm:$0xff]
    %v83 = vld [vmem:[#allocation5 + $0x90] sm:$0xff]
    %v84 = vld [vmem:[#allocation5 + $0x98] sm:$0xff]
    %v85 = vld [vmem:[#allocation5 + $0xa0] sm:$0xff]
    %v86 = vld [vmem:[#allocation5 + $0xa8] sm:$0xff]
    %v87 = vld [vmem:[#allocation5 + $0xb0] sm:$0xff]
    %v88 = vld [vmem:[#allocation5 + $0xb8] sm:$0xff]
    %v89 = vld [vmem:[#allocation5 + $0xc0] sm:$0xff]
    %v90 = vld [vmem:[#allocation5 + $0xc8] sm:$0xff]
    %v91 = vld [vmem:[#allocation5 + $0xd0] sm:$0xff]
    %v92 = vld [vmem:[#allocation5 + $0xd8] sm:$0xff]
    %v93 = vld [vmem:[#allocation5 + $0xe0] sm:$0xff]
    %v94 = vld [vmem:[#allocation5 + $0xe8] sm:$0xff]
    %v95 = vld [vmem:[#allocation5 + $0xf0] sm:$0xff]
    %v96 = vld [vmem:[#allocation5 + $0xf8] sm:$0xff]
    %v97 = vld [vmem:[#allocation5 + $0x100] sm:$0xff]
    %v98 = vld [vmem:[#allocation5 + $0x108] sm:$0xff]
    %v99 = vld [vmem:[#allocation5 + $0x110] sm:$0xff]
    %v100 = vld [vmem:[#allocation5 + $0x118] sm:$0xff]
    %v101 = vld [vmem:[#allocation5 + $0x120] sm:$0xff]
    %v102 = vld [vmem:[#allocation5 + $0x128] sm:$0xff]
    %v103 = vld [vmem:[#allocation5 + $0x130] sm:$0xff]
    %v104 = vld [vmem:[#allocation5 + $0x138] sm:$0xff]
    %v105 = vld [vmem:[#allocation5 + $0x140] sm:$0xff]
    %v106 = vld [vmem:[#allocation5 + $0x148] sm:$0xff]
    %v107 = vld [vmem:[#allocation5 + $0x150] sm:$0xff]
    %v108 = vld [vmem:[#allocation5 + $0x158] sm:$0xff]
    %v109 = vld [vmem:[#allocation5 + $0x160] sm:$0xff]
    %v110 = vld [vmem:[#allocation5 + $0x168] sm:$0xff]
    %v111 = vld [vmem:[#allocation5 + $0x170] sm:$0xff]
    %v112 = vld [vmem:[#allocation5 + $0x178] sm:$0xff]
    %v113 = vld [vmem:[#allocation5 + $0x180] sm:$0xff]
    %v114 = vld [vmem:[#allocation5 + $0x188] sm:$0xff]
    %v115 = vld [vmem:[#allocation5 + $0x190] sm:$0xff]
    %v116 = vld [vmem:[#allocation5 + $0x198] sm:$0xff]
    %v117 = vld [vmem:[#allocation5 + $0x1a0] sm:$0xff]
    %v118 = vld [vmem:[#allocation5 + $0x1a8] sm:$0xff]
    %v119 = vld [vmem:[#allocation5 + $0x1b0] sm:$0xff]
    %v120 = vld [vmem:[#allocation5 + $0x1b8] sm:$0xff]
    %v121 = vld [vmem:[#allocation5 + $0x1c0] sm:$0xff]
    %v122 = vld [vmem:[#allocation5 + $0x1c8] sm:$0xff]
    %v123 = vld [vmem:[#allocation5 + $0x1d0] sm:$0xff]
    %v124 = vld [vmem:[#allocation5 + $0x1d8] sm:$0xff]
    %v125 = vld [vmem:[#allocation5 + $0x1e0] sm:$0xff]
    %v126 = vld [vmem:[#allocation5 + $0x1e8] sm:$0xff]
    %v127 = vld [vmem:[#allocation5 + $0x1f0] sm:$0xff]
    %v128 = vld [vmem:[#allocation5 + $0x1f8] sm:$0xff]
    %v129 = vld [vmem:[#allocation5 + $0x200] sm:$0xff]
    %v130 = vld [vmem:[#allocation5 + $0x208] sm:$0xff]
    %v131 = vld [vmem:[#allocation5 + $0x210] sm:$0xff]
    %v132 = vld [vmem:[#allocation5 + $0x218] sm:$0xff]
    %v133 = vld [vmem:[#allocation5 + $0x220] sm:$0xff]
    %v134 = vld [vmem:[#allocation5 + $0x228] sm:$0xff]
    %v135 = vld [vmem:[#allocation5 + $0x230] sm:$0xff]
    %v136 = vld [vmem:[#allocation5 + $0x238] sm:$0xff]
    %v137 = vld [vmem:[#allocation5 + $0x240] sm:$0xff]
    %v138 = vld [vmem:[#allocation5 + $0x248] sm:$0xff]
    %v139 = vld [vmem:[#allocation5 + $0x250] sm:$0xff]
    %v140 = vld [vmem:[#allocation5 + $0x258] sm:$0xff]
    %v141 = vld [vmem:[#allocation5 + $0x260] sm:$0xff]
    %v142 = vld [vmem:[#allocation5 + $0x268] sm:$0xff]
    %v143 = vld [vmem:[#allocation5 + $0x270] sm:$0xff]
    %v144 = vld [vmem:[#allocation5 + $0x278] sm:$0xff]
    %v145 = vld [vmem:[#allocation5 + $0x280] sm:$0xff]
    %v146 = vld [vmem:[#allocation5 + $0x288] sm:$0xff]
    %v147 = vld [vmem:[#allocation5 + $0x290] sm:$0xff]
    %v148 = vld [vmem:[#allocation5 + $0x298] sm:$0xff]
    %v149 = vld [vmem:[#allocation5 + $0x2a0] sm:$0xff]
    %v150 = vld [vmem:[#allocation5 + $0x2a8] sm:$0xff]
    %v151 = vld [vmem:[#allocation5 + $0x2b0] sm:$0xff]
    %v152 = vld [vmem:[#allocation5 + $0x2b8] sm:$0xff]
    %v153 = vld [vmem:[#allocation5 + $0x2c0] sm:$0xff]
    %v154 = vld [vmem:[#allocation5 + $0x2c8] sm:$0xff]
    %v155 = vld [vmem:[#allocation5 + $0x2d0] sm:$0xff]
    %v156 = vld [vmem:[#allocation5 + $0x2d8] sm:$0xff]
    %v157 = vld [vmem:[#allocation5 + $0x2e0] sm:$0xff]
    %v158 = vld [vmem:[#allocation5 + $0x2e8] sm:$0xff]
    %v159 = vld [vmem:[#allocation5 + $0x2f0] sm:$0xff]
    %v160 = vld [vmem:[#allocation5 + $0x2f8] sm:$0xff]
    %v161 = vld [vmem:[#allocation5 + $0x300] sm:$0xff]
    %v162 = vld [vmem:[#allocation5 + $0x308] sm:$0xff]
    %v163 = vld [vmem:[#allocation5 + $0x310] sm:$0xff]
    %v164 = vld [vmem:[#allocation5 + $0x318] sm:$0xff]
    %v165 = vld [vmem:[#allocation5 + $0x320] sm:$0xff]
    %v166 = vld [vmem:[#allocation5 + $0x328] sm:$0xff]
    %v167 = vld [vmem:[#allocation5 + $0x330] sm:$0xff]
    %v168 = vld [vmem:[#allocation5 + $0x338] sm:$0xff]
    %v169 = vld [vmem:[#allocation5 + $0x340] sm:$0xff]
    %v170 = vld [vmem:[#allocation5 + $0x348] sm:$0xff]
    %v171 = vld [vmem:[#allocation5 + $0x350] sm:$0xff]
    %v172 = vld [vmem:[#allocation5 + $0x358] sm:$0xff]
    %v173 = vld [vmem:[#allocation5 + $0x360] sm:$0xff]
    %v174 = vld [vmem:[#allocation5 + $0x368] sm:$0xff]
    %v175 = vld [vmem:[#allocation5 + $0x370] sm:$0xff]
    %v176 = vld [vmem:[#allocation5 + $0x378] sm:$0xff]
    %v177 = vld [vmem:[#allocation5 + $0x380] sm:$0xff]
    %v178 = vld [vmem:[#allocation5 + $0x388] sm:$0xff]
    %v179 = vld [vmem:[#allocation5 + $0x390] sm:$0xff]
    %v180 = vld [vmem:[#allocation5 + $0x398] sm:$0xff]
    %v181 = vld [vmem:[#allocation5 + $0x3a0] sm:$0xff]
    %v182 = vld [vmem:[#allocation5 + $0x3a8] sm:$0xff]
    %v183 = vld [vmem:[#allocation5 + $0x3b0] sm:$0xff]
    %v184 = vld [vmem:[#allocation5 + $0x3b8] sm:$0xff]
    %v185 = vld [vmem:[#allocation5 + $0x3c0] sm:$0xff]
    %v186 = vld [vmem:[#allocation5 + $0x3c8] sm:$0xff]
    %v187 = vld [vmem:[#allocation5 + $0x3d0] sm:$0xff]
    %v188 = vld [vmem:[#allocation5 + $0x3d8] sm:$0xff]
    %v189 = vld [vmem:[#allocation5 + $0x3e0] sm:$0xff]
    %v190 = vld [vmem:[#allocation5 + $0x3e8] sm:$0xff]
    %v191 = vld [vmem:[#allocation5 + $0x3f0] sm:$0xff]
    %v192 = vld [vmem:[#allocation5 + $0x3f8] sm:$0xff]
    %v193 = vld [vmem:[%s2] sm:$0x3]
    %v194 = vunpack.c.l.bf16 %v193
    %v196 = vlaneseq
    %v197 = vshrl.u32 %v196, 7
    %v198 = vsub.s32 0, %v197
    %v199 = vrot.slane %v194, %v198
    %v200 = vlaneseq
    %v201 = vshrl.u32 %v200, 7
    %v202 = vsub.s32 2, %v201
    %v203 = vrot.slane %v194, %v202
    %v206 = vlaneseq
    %v207 = vshrl.u32 %v206, 7
    %v208 = vsub.s32 0, %v207
    %v209 = vrot.slane %v199, %v208
    %v210 = vlaneseq
    %v211 = vshrl.u32 %v210, 7
    %v212 = vsub.s32 0, %v211
    %v213 = vrot.slane %v203, %v212
    %v218 = vunpack.c.l.b16 %v61
    %v219 = vunpack.c.h.b16 %v61
    %v220 = vunpack.c.l.b16 %v62
    %v221 = vunpack.c.h.b16 %v62
    %v222 = vunpack.c.l.b16 %v63
    %v223 = vunpack.c.h.b16 %v63
    %v224 = vunpack.c.l.b16 %v64
    %v225 = vunpack.c.h.b16 %v64
    %v226 = vpack.c.b16 %v218, %v218
    %v227 = vpack.c.b16 %v219, %v219
    %v228 = vpack.c.b16 %v220, %v220
    %v229 = vpack.c.b16 %v221, %v221
    %v230 = vpack.c.b16 %v222, %v222
    %v231 = vpack.c.b16 %v223, %v223
    %v232 = vpack.c.b16 %v224, %v224
    %v233 = vpack.c.b16 %v225, %v225
    %v370 = vunpack.c.l.b16 %v65
    %v371 = vunpack.c.h.b16 %v65
    %v372 = vunpack.c.l.b16 %v66
    %v373 = vunpack.c.h.b16 %v66
    %v374 = vunpack.c.l.b16 %v67
    %v375 = vunpack.c.h.b16 %v67
    %v376 = vunpack.c.l.b16 %v68
    %v377 = vunpack.c.h.b16 %v68
    %v378 = vunpack.c.l.b16 %v69
    %v379 = vunpack.c.h.b16 %v69
    %v380 = vunpack.c.l.b16 %v70
    %v381 = vunpack.c.h.b16 %v70
    %v382 = vunpack.c.l.b16 %v71
    %v383 = vunpack.c.h.b16 %v71
    %v384 = vunpack.c.l.b16 %v72
    %v385 = vunpack.c.h.b16 %v72
    %v386 = vunpack.c.l.b16 %v73
    %v387 = vunpack.c.h.b16 %v73
    %v388 = vunpack.c.l.b16 %v74
    %v389 = vunpack.c.h.b16 %v74
    %v390 = vunpack.c.l.b16 %v75
    %v391 = vunpack.c.h.b16 %v75
    %v392 = vunpack.c.l.b16 %v76
    %v393 = vunpack.c.h.b16 %v76
    %v394 = vunpack.c.l.b16 %v77
    %v395 = vunpack.c.h.b16 %v77
    %v396 = vunpack.c.l.b16 %v78
    %v397 = vunpack.c.h.b16 %v78
    %v398 = vunpack.c.l.b16 %v79
    %v399 = vunpack.c.h.b16 %v79
    %v400 = vunpack.c.l.b16 %v80
    %v401 = vunpack.c.h.b16 %v80
    %v402 = vunpack.c.l.b16 %v81
    %v403 = vunpack.c.h.b16 %v81
    %v404 = vunpack.c.l.b16 %v82
    %v405 = vunpack.c.h.b16 %v82
    %v406 = vunpack.c.l.b16 %v83
    %v407 = vunpack.c.h.b16 %v83
    %v408 = vunpack.c.l.b16 %v84
    %v409 = vunpack.c.h.b16 %v84
    %v410 = vunpack.c.l.b16 %v85
    %v411 = vunpack.c.h.b16 %v85
    %v412 = vunpack.c.l.b16 %v86
    %v413 = vunpack.c.h.b16 %v86
    %v414 = vunpack.c.l.b16 %v87
    %v415 = vunpack.c.h.b16 %v87
    %v416 = vunpack.c.l.b16 %v88
    %v417 = vunpack.c.h.b16 %v88
    %v418 = vunpack.c.l.b16 %v89
    %v419 = vunpack.c.h.b16 %v89
    %v420 = vunpack.c.l.b16 %v90
    %v421 = vunpack.c.h.b16 %v90
    %v422 = vunpack.c.l.b16 %v91
    %v423 = vunpack.c.h.b16 %v91
    %v424 = vunpack.c.l.b16 %v92
    %v425 = vunpack.c.h.b16 %v92
    %v426 = vunpack.c.l.b16 %v93
    %v427 = vunpack.c.h.b16 %v93
    %v428 = vunpack.c.l.b16 %v94
    %v429 = vunpack.c.h.b16 %v94
    %v430 = vunpack.c.l.b16 %v95
    %v431 = vunpack.c.h.b16 %v95
    %v432 = vunpack.c.l.b16 %v96
    %v433 = vunpack.c.h.b16 %v96
    %v434 = vunpack.c.l.b16 %v97
    %v435 = vunpack.c.h.b16 %v97
    %v436 = vunpack.c.l.b16 %v98
    %v437 = vunpack.c.h.b16 %v98
    %v438 = vunpack.c.l.b16 %v99
    %v439 = vunpack.c.h.b16 %v99
    %v440 = vunpack.c.l.b16 %v100
    %v441 = vunpack.c.h.b16 %v100
    %v442 = vunpack.c.l.b16 %v101
    %v443 = vunpack.c.h.b16 %v101
    %v444 = vunpack.c.l.b16 %v102
    %v445 = vunpack.c.h.b16 %v102
    %v446 = vunpack.c.l.b16 %v103
    %v447 = vunpack.c.h.b16 %v103
    %v448 = vunpack.c.l.b16 %v104
    %v449 = vunpack.c.h.b16 %v104
    %v450 = vunpack.c.l.b16 %v105
    %v451 = vunpack.c.h.b16 %v105
    %v452 = vunpack.c.l.b16 %v106
    %v453 = vunpack.c.h.b16 %v106
    %v454 = vunpack.c.l.b16 %v107
    %v455 = vunpack.c.h.b16 %v107
    %v456 = vunpack.c.l.b16 %v108
    %v457 = vunpack.c.h.b16 %v108
    %v458 = vunpack.c.l.b16 %v109
    %v459 = vunpack.c.h.b16 %v109
    %v460 = vunpack.c.l.b16 %v110
    %v461 = vunpack.c.h.b16 %v110
    %v462 = vunpack.c.l.b16 %v111
    %v463 = vunpack.c.h.b16 %v111
    %v464 = vunpack.c.l.b16 %v112
    %v465 = vunpack.c.h.b16 %v112
    %v466 = vunpack.c.l.b16 %v113
    %v467 = vunpack.c.h.b16 %v113
    %v468 = vunpack.c.l.b16 %v114
    %v469 = vunpack.c.h.b16 %v114
    %v470 = vunpack.c.l.b16 %v115
    %v471 = vunpack.c.h.b16 %v115
    %v472 = vunpack.c.l.b16 %v116
    %v473 = vunpack.c.h.b16 %v116
    %v474 = vunpack.c.l.b16 %v117
    %v475 = vunpack.c.h.b16 %v117
    %v476 = vunpack.c.l.b16 %v118
    %v477 = vunpack.c.h.b16 %v118
    %v478 = vunpack.c.l.b16 %v119
    %v479 = vunpack.c.h.b16 %v119
    %v480 = vunpack.c.l.b16 %v120
    %v481 = vunpack.c.h.b16 %v120
    %v482 = vunpack.c.l.b16 %v121
    %v483 = vunpack.c.h.b16 %v121
    %v484 = vunpack.c.l.b16 %v122
    %v485 = vunpack.c.h.b16 %v122
    %v486 = vunpack.c.l.b16 %v123
    %v487 = vunpack.c.h.b16 %v123
    %v488 = vunpack.c.l.b16 %v124
    %v489 = vunpack.c.h.b16 %v124
    %v490 = vunpack.c.l.b16 %v125
    %v491 = vunpack.c.h.b16 %v125
    %v492 = vunpack.c.l.b16 %v126
    %v493 = vunpack.c.h.b16 %v126
    %v494 = vunpack.c.l.b16 %v127
    %v495 = vunpack.c.h.b16 %v127
    %v496 = vunpack.c.l.b16 %v128
    %v497 = vunpack.c.h.b16 %v128
    %v498 = vunpack.c.l.b16 %v129
    %v499 = vunpack.c.h.b16 %v129
    %v500 = vunpack.c.l.b16 %v130
    %v501 = vunpack.c.h.b16 %v130
    %v502 = vunpack.c.l.b16 %v131
    %v503 = vunpack.c.h.b16 %v131
    %v504 = vunpack.c.l.b16 %v132
    %v505 = vunpack.c.h.b16 %v132
    %v506 = vunpack.c.l.b16 %v133
    %v507 = vunpack.c.h.b16 %v133
    %v508 = vunpack.c.l.b16 %v134
    %v509 = vunpack.c.h.b16 %v134
    %v510 = vunpack.c.l.b16 %v135
    %v511 = vunpack.c.h.b16 %v135
    %v512 = vunpack.c.l.b16 %v136
    %v513 = vunpack.c.h.b16 %v136
    %v514 = vunpack.c.l.b16 %v137
    %v515 = vunpack.c.h.b16 %v137
    %v516 = vunpack.c.l.b16 %v138
    %v517 = vunpack.c.h.b16 %v138
    %v518 = vunpack.c.l.b16 %v139
    %v519 = vunpack.c.h.b16 %v139
    %v520 = vunpack.c.l.b16 %v140
    %v521 = vunpack.c.h.b16 %v140
    %v522 = vunpack.c.l.b16 %v141
    %v523 = vunpack.c.h.b16 %v141
    %v524 = vunpack.c.l.b16 %v142
    %v525 = vunpack.c.h.b16 %v142
    %v526 = vunpack.c.l.b16 %v143
    %v527 = vunpack.c.h.b16 %v143
    %v528 = vunpack.c.l.b16 %v144
    %v529 = vunpack.c.h.b16 %v144
    %v530 = vunpack.c.l.b16 %v145
    %v531 = vunpack.c.h.b16 %v145
    %v532 = vunpack.c.l.b16 %v146
    %v533 = vunpack.c.h.b16 %v146
    %v534 = vunpack.c.l.b16 %v147
    %v535 = vunpack.c.h.b16 %v147
    %v536 = vunpack.c.l.b16 %v148
    %v537 = vunpack.c.h.b16 %v148
    %v538 = vunpack.c.l.b16 %v149
    %v539 = vunpack.c.h.b16 %v149
    %v540 = vunpack.c.l.b16 %v150
    %v541 = vunpack.c.h.b16 %v150
    %v542 = vunpack.c.l.b16 %v151
    %v543 = vunpack.c.h.b16 %v151
    %v544 = vunpack.c.l.b16 %v152
    %v545 = vunpack.c.h.b16 %v152
    %v546 = vunpack.c.l.b16 %v153
    %v547 = vunpack.c.h.b16 %v153
    %v548 = vunpack.c.l.b16 %v154
    %v549 = vunpack.c.h.b16 %v154
    %v550 = vunpack.c.l.b16 %v155
    %v551 = vunpack.c.h.b16 %v155
    %v552 = vunpack.c.l.b16 %v156
    %v553 = vunpack.c.h.b16 %v156
    %v554 = vunpack.c.l.b16 %v157
    %v555 = vunpack.c.h.b16 %v157
    %v556 = vunpack.c.l.b16 %v158
    %v557 = vunpack.c.h.b16 %v158
    %v558 = vunpack.c.l.b16 %v159
    %v559 = vunpack.c.h.b16 %v159
    %v560 = vunpack.c.l.b16 %v160
    %v561 = vunpack.c.h.b16 %v160
    %v562 = vunpack.c.l.b16 %v161
    %v563 = vunpack.c.h.b16 %v161
    %v564 = vunpack.c.l.b16 %v162
    %v565 = vunpack.c.h.b16 %v162
    %v566 = vunpack.c.l.b16 %v163
    %v567 = vunpack.c.h.b16 %v163
    %v568 = vunpack.c.l.b16 %v164
    %v569 = vunpack.c.h.b16 %v164
    %v570 = vunpack.c.l.b16 %v165
    %v571 = vunpack.c.h.b16 %v165
    %v572 = vunpack.c.l.b16 %v166
    %v573 = vunpack.c.h.b16 %v166
    %v574 = vunpack.c.l.b16 %v167
    %v575 = vunpack.c.h.b16 %v167
    %v576 = vunpack.c.l.b16 %v168
    %v577 = vunpack.c.h.b16 %v168
    %v578 = vunpack.c.l.b16 %v169
    %v579 = vunpack.c.h.b16 %v169
    %v580 = vunpack.c.l.b16 %v170
    %v581 = vunpack.c.h.b16 %v170
    %v582 = vunpack.c.l.b16 %v171
    %v583 = vunpack.c.h.b16 %v171
    %v584 = vunpack.c.l.b16 %v172
    %v585 = vunpack.c.h.b16 %v172
    %v586 = vunpack.c.l.b16 %v173
    %v587 = vunpack.c.h.b16 %v173
    %v588 = vunpack.c.l.b16 %v174
    %v589 = vunpack.c.h.b16 %v174
    %v590 = vunpack.c.l.b16 %v175
    %v591 = vunpack.c.h.b16 %v175
    %v592 = vunpack.c.l.b16 %v176
    %v593 = vunpack.c.h.b16 %v176
    %v594 = vunpack.c.l.b16 %v177
    %v595 = vunpack.c.h.b16 %v177
    %v596 = vunpack.c.l.b16 %v178
    %v597 = vunpack.c.h.b16 %v178
    %v598 = vunpack.c.l.b16 %v179
    %v599 = vunpack.c.h.b16 %v179
    %v600 = vunpack.c.l.b16 %v180
    %v601 = vunpack.c.h.b16 %v180
    %v602 = vunpack.c.l.b16 %v181
    %v603 = vunpack.c.h.b16 %v181
    %v604 = vunpack.c.l.b16 %v182
    %v605 = vunpack.c.h.b16 %v182
    %v606 = vunpack.c.l.b16 %v183
    %v607 = vunpack.c.h.b16 %v183
    %v608 = vunpack.c.l.b16 %v184
    %v609 = vunpack.c.h.b16 %v184
    %v610 = vunpack.c.l.b16 %v185
    %v611 = vunpack.c.h.b16 %v185
    %v612 = vunpack.c.l.b16 %v186
    %v613 = vunpack.c.h.b16 %v186
    %v614 = vunpack.c.l.b16 %v187
    %v615 = vunpack.c.h.b16 %v187
    %v616 = vunpack.c.l.b16 %v188
    %v617 = vunpack.c.h.b16 %v188
    %v618 = vunpack.c.l.b16 %v189
    %v619 = vunpack.c.h.b16 %v189
    %v620 = vunpack.c.l.b16 %v190
    %v621 = vunpack.c.h.b16 %v190
    %v622 = vunpack.c.l.b16 %v191
    %v623 = vunpack.c.h.b16 %v191
    %v624 = vunpack.c.l.b16 %v192
    %v625 = vunpack.c.h.b16 %v192
    %v626 = vpack.c.b16 %v372, %v370
    %v627 = vpack.c.b16 %v373, %v371
    %v628 = vpack.c.b16 %v376, %v374
    %v629 = vpack.c.b16 %v377, %v375
    %v630 = vpack.c.b16 %v380, %v378
    %v631 = vpack.c.b16 %v381, %v379
    %v632 = vpack.c.b16 %v384, %v382
    %v633 = vpack.c.b16 %v385, %v383
    %v634 = vpack.c.b16 %v388, %v386
    %v635 = vpack.c.b16 %v389, %v387
    %v636 = vpack.c.b16 %v392, %v390
    %v637 = vpack.c.b16 %v393, %v391
    %v638 = vpack.c.b16 %v396, %v394
    %v639 = vpack.c.b16 %v397, %v395
    %v640 = vpack.c.b16 %v400, %v398
    %v641 = vpack.c.b16 %v401, %v399
    %v642 = vpack.c.b16 %v404, %v402
    %v643 = vpack.c.b16 %v405, %v403
    %v644 = vpack.c.b16 %v408, %v406
    %v645 = vpack.c.b16 %v409, %v407
    %v646 = vpack.c.b16 %v412, %v410
    %v647 = vpack.c.b16 %v413, %v411
    %v648 = vpack.c.b16 %v416, %v414
    %v649 = vpack.c.b16 %v417, %v415
    %v650 = vpack.c.b16 %v420, %v418
    %v651 = vpack.c.b16 %v421, %v419
    %v652 = vpack.c.b16 %v424, %v422
    %v653 = vpack.c.b16 %v425, %v423
    %v654 = vpack.c.b16 %v428, %v426
    %v655 = vpack.c.b16 %v429, %v427
    %v656 = vpack.c.b16 %v432, %v430
    %v657 = vpack.c.b16 %v433, %v431
    %v658 = vpack.c.b16 %v436, %v434
    %v659 = vpack.c.b16 %v437, %v435
    %v660 = vpack.c.b16 %v440, %v438
    %v661 = vpack.c.b16 %v441, %v439
    %v662 = vpack.c.b16 %v444, %v442
    %v663 = vpack.c.b16 %v445, %v443
    %v664 = vpack.c.b16 %v448, %v446
    %v665 = vpack.c.b16 %v449, %v447
    %v666 = vpack.c.b16 %v452, %v450
    %v667 = vpack.c.b16 %v453, %v451
    %v668 = vpack.c.b16 %v456, %v454
    %v669 = vpack.c.b16 %v457, %v455
    %v670 = vpack.c.b16 %v460, %v458
    %v671 = vpack.c.b16 %v461, %v459
    %v672 = vpack.c.b16 %v464, %v462
    %v673 = vpack.c.b16 %v465, %v463
    %v674 = vpack.c.b16 %v468, %v466
    %v675 = vpack.c.b16 %v469, %v467
    %v676 = vpack.c.b16 %v472, %v470
    %v677 = vpack.c.b16 %v473, %v471
    %v678 = vpack.c.b16 %v476, %v474
    %v679 = vpack.c.b16 %v477, %v475
    %v680 = vpack.c.b16 %v480, %v478
    %v681 = vpack.c.b16 %v481, %v479
    %v682 = vpack.c.b16 %v484, %v482
    %v683 = vpack.c.b16 %v485, %v483
    %v684 = vpack.c.b16 %v488, %v486
    %v685 = vpack.c.b16 %v489, %v487
    %v686 = vpack.c.b16 %v492, %v490
    %v687 = vpack.c.b16 %v493, %v491
    %v688 = vpack.c.b16 %v496, %v494
    %v689 = vpack.c.b16 %v497, %v495
    %v690 = vpack.c.b16 %v500, %v498
    %v691 = vpack.c.b16 %v501, %v499
    %v692 = vpack.c.b16 %v504, %v502
    %v693 = vpack.c.b16 %v505, %v503
    %v694 = vpack.c.b16 %v508, %v506
    %v695 = vpack.c.b16 %v509, %v507
    %v696 = vpack.c.b16 %v512, %v510
    %v697 = vpack.c.b16 %v513, %v511
    %v698 = vpack.c.b16 %v516, %v514
    %v699 = vpack.c.b16 %v517, %v515
    %v700 = vpack.c.b16 %v520, %v518
    %v701 = vpack.c.b16 %v521, %v519
    %v702 = vpack.c.b16 %v524, %v522
    %v703 = vpack.c.b16 %v525, %v523
    %v704 = vpack.c.b16 %v528, %v526
    %v705 = vpack.c.b16 %v529, %v527
    %v706 = vpack.c.b16 %v532, %v530
    %v707 = vpack.c.b16 %v533, %v531
    %v708 = vpack.c.b16 %v536, %v534
    %v709 = vpack.c.b16 %v537, %v535
    %v710 = vpack.c.b16 %v540, %v538
    %v711 = vpack.c.b16 %v541, %v539
    %v712 = vpack.c.b16 %v544, %v542
    %v713 = vpack.c.b16 %v545, %v543
    %v714 = vpack.c.b16 %v548, %v546
    %v715 = vpack.c.b16 %v549, %v547
    %v716 = vpack.c.b16 %v552, %v550
    %v717 = vpack.c.b16 %v553, %v551
    %v718 = vpack.c.b16 %v556, %v554
    %v719 = vpack.c.b16 %v557, %v555
    %v720 = vpack.c.b16 %v560, %v558
    %v721 = vpack.c.b16 %v561, %v559
    %v722 = vpack.c.b16 %v564, %v562
    %v723 = vpack.c.b16 %v565, %v563
    %v724 = vpack.c.b16 %v568, %v566
    %v725 = vpack.c.b16 %v569, %v567
    %v726 = vpack.c.b16 %v572, %v570
    %v727 = vpack.c.b16 %v573, %v571
    %v728 = vpack.c.b16 %v576, %v574
    %v729 = vpack.c.b16 %v577, %v575
    %v730 = vpack.c.b16 %v580, %v578
    %v731 = vpack.c.b16 %v581, %v579
    %v732 = vpack.c.b16 %v584, %v582
    %v733 = vpack.c.b16 %v585, %v583
    %v734 = vpack.c.b16 %v588, %v586
    %v735 = vpack.c.b16 %v589, %v587
    %v736 = vpack.c.b16 %v592, %v590
    %v737 = vpack.c.b16 %v593, %v591
    %v738 = vpack.c.b16 %v596, %v594
    %v739 = vpack.c.b16 %v597, %v595
    %v740 = vpack.c.b16 %v600, %v598
    %v741 = vpack.c.b16 %v601, %v599
    %v742 = vpack.c.b16 %v604, %v602
    %v743 = vpack.c.b16 %v605, %v603
    %v744 = vpack.c.b16 %v608, %v606
    %v745 = vpack.c.b16 %v609, %v607
    %v746 = vpack.c.b16 %v612, %v610
    %v747 = vpack.c.b16 %v613, %v611
    %v748 = vpack.c.b16 %v616, %v614
    %v749 = vpack.c.b16 %v617, %v615
    %v750 = vpack.c.b16 %v620, %v618
    %v751 = vpack.c.b16 %v621, %v619
    %v752 = vpack.c.b16 %v624, %v622
    %v753 = vpack.c.b16 %v625, %v623
    %882 = vmatprep.subr.bf16.mxu0 %v627
    %883 = vmatpush1.bf16.msra.mxu0 %v626
    %884 = vmatprep.subr.bf16.mxu0 %v629
    %885 = vmatpush1.bf16.msra.mxu0 %v628
    %886 = vmatprep.subr.bf16.mxu0 %v631
    %887 = vmatpush1.bf16.msra.mxu0 %v630
    %888 = vmatprep.subr.bf16.mxu0 %v633
    %889 = vmatpush1.bf16.msra.mxu0 %v632
    %890 = vmatprep.subr.bf16.mxu0 %v635
    %891 = vmatpush1.bf16.msra.mxu0 %v634
    %892 = vmatprep.subr.bf16.mxu0 %v637
    %893 = vmatpush1.bf16.msra.mxu0 %v636
    %894 = vmatprep.subr.bf16.mxu0 %v639
    %895 = vmatpush1.bf16.msra.mxu0 %v638
    %896 = vmatprep.subr.bf16.mxu0 %v641
    %897 = vmatpush1.bf16.msra.mxu0 %v640
    %898 = vmatprep.subr.bf16.mxu0 %v643
    %899 = vmatpush1.bf16.msra.mxu0 %v642
    %900 = vmatprep.subr.bf16.mxu0 %v645
    %901 = vmatpush1.bf16.msra.mxu0 %v644
    %902 = vmatprep.subr.bf16.mxu0 %v647
    %903 = vmatpush1.bf16.msra.mxu0 %v646
    %904 = vmatprep.subr.bf16.mxu0 %v649
    %905 = vmatpush1.bf16.msra.mxu0 %v648
    %906 = vmatprep.subr.bf16.mxu0 %v651
    %907 = vmatpush1.bf16.msra.mxu0 %v650
    %908 = vmatprep.subr.bf16.mxu0 %v653
    %909 = vmatpush1.bf16.msra.mxu0 %v652
    %910 = vmatprep.subr.bf16.mxu0 %v655
    %911 = vmatpush1.bf16.msra.mxu0 %v654
    %912 = vmatprep.subr.bf16.mxu0 %v657
    %913 = vmatpush1.bf16.msra.mxu0 %v656
    %914 = vmatprep.mubr.bf16.mxu0 %v227
    %915 = vmatmul.mubr.bf16.gmra.mrb[0].mxu0 %v226
    %v916 = vpop.f32.mrb[0].mxu0
    %v917 = vadd.f32 %v209, %v916
    %v918 = vpop.f32.mrb[0].mxu0
    %v919 = vadd.f32 %v213, %v918
    %v920 = vpop.f32.mrb[0].mxu0
    %v921 = vpop.f32.mrb[0].mxu0
    %922 = vdwg.mxu0
    %923 = vmatprep.subr.bf16.mxu0 %v659
    %924 = vmatpush1.bf16.msra.mxu0 %v658
    %925 = vmatprep.subr.bf16.mxu0 %v661
    %926 = vmatpush1.bf16.msra.mxu0 %v660
    %927 = vmatprep.subr.bf16.mxu0 %v663
    %928 = vmatpush1.bf16.msra.mxu0 %v662
    %929 = vmatprep.subr.bf16.mxu0 %v665
    %930 = vmatpush1.bf16.msra.mxu0 %v664
    %931 = vmatprep.subr.bf16.mxu0 %v667
    %932 = vmatpush1.bf16.msra.mxu0 %v666
    %933 = vmatprep.subr.bf16.mxu0 %v669
    %934 = vmatpush1.bf16.msra.mxu0 %v668
    %935 = vmatprep.subr.bf16.mxu0 %v671
    %936 = vmatpush1.bf16.msra.mxu0 %v670
    %937 = vmatprep.subr.bf16.mxu0 %v673
    %938 = vmatpush1.bf16.msra.mxu0 %v672
    %939 = vmatprep.subr.bf16.mxu0 %v675
    %940 = vmatpush1.bf16.msra.mxu0 %v674
    %941 = vmatprep.subr.bf16.mxu0 %v677
    %942 = vmatpush1.bf16.msra.mxu0 %v676
    %943 = vmatprep.subr.bf16.mxu0 %v679
    %944 = vmatpush1.bf16.msra.mxu0 %v678
    %945 = vmatprep.subr.bf16.mxu0 %v681
    %946 = vmatpush1.bf16.msra.mxu0 %v680
    %947 = vmatprep.subr.bf16.mxu0 %v683
    %948 = vmatpush1.bf16.msra.mxu0 %v682
    %949 = vmatprep.subr.bf16.mxu0 %v685
    %950 = vmatpush1.bf16.msra.mxu0 %v684
    %951 = vmatprep.subr.bf16.mxu0 %v687
    %952 = vmatpush1.bf16.msra.mxu0 %v686
    %953 = vmatprep.subr.bf16.mxu0 %v689
    %954 = vmatpush1.bf16.msra.mxu0 %v688
    %955 = vmatprep.mubr.bf16.mxu0 %v229
    %956 = vmatmul.mubr.bf16.gmra.mrb[0].mxu0 %v228
    %v957 = vpop.f32.mrb[0].mxu0
    %v958 = vadd.f32 %v917, %v957
    %v959 = vpop.f32.mrb[0].mxu0
    %v960 = vadd.f32 %v919, %v959
    %v961 = vpop.f32.mrb[0].mxu0
    %v962 = vpop.f32.mrb[0].mxu0
    %963 = vdwg.mxu0
    %964 = vmatprep.subr.bf16.mxu0 %v691
    %965 = vmatpush1.bf16.msra.mxu0 %v690
    %966 = vmatprep.subr.bf16.mxu0 %v693
    %967 = vmatpush1.bf16.msra.mxu0 %v692
    %968 = vmatprep.subr.bf16.mxu0 %v695
    %969 = vmatpush1.bf16.msra.mxu0 %v694
    %970 = vmatprep.subr.bf16.mxu0 %v697
    %971 = vmatpush1.bf16.msra.mxu0 %v696
    %972 = vmatprep.subr.bf16.mxu0 %v699
    %973 = vmatpush1.bf16.msra.mxu0 %v698
    %974 = vmatprep.subr.bf16.mxu0 %v701
    %975 = vmatpush1.bf16.msra.mxu0 %v700
    %976 = vmatprep.subr.bf16.mxu0 %v703
    %977 = vmatpush1.bf16.msra.mxu0 %v702
    %978 = vmatprep.subr.bf16.mxu0 %v705
    %979 = vmatpush1.bf16.msra.mxu0 %v704
    %980 = vmatprep.subr.bf16.mxu0 %v707
    %981 = vmatpush1.bf16.msra.mxu0 %v706
    %982 = vmatprep.subr.bf16.mxu0 %v709
    %983 = vmatpush1.bf16.msra.mxu0 %v708
    %984 = vmatprep.subr.bf16.mxu0 %v711
    %985 = vmatpush1.bf16.msra.mxu0 %v710
    %986 = vmatprep.subr.bf16.mxu0 %v713
    %987 = vmatpush1.bf16.msra.mxu0 %v712
    %988 = vmatprep.subr.bf16.mxu0 %v715
    %989 = vmatpush1.bf16.msra.mxu0 %v714
    %990 = vmatprep.subr.bf16.mxu0 %v717
    %991 = vmatpush1.bf16.msra.mxu0 %v716
    %992 = vmatprep.subr.bf16.mxu0 %v719
    %993 = vmatpush1.bf16.msra.mxu0 %v718
    %994 = vmatprep.subr.bf16.mxu0 %v721
    %995 = vmatpush1.bf16.msra.mxu0 %v720
    %996 = vmatprep.mubr.bf16.mxu0 %v231
    %997 = vmatmul.mubr.bf16.gmra.mrb[0].mxu0 %v230
    %v998 = vpop.f32.mrb[0].mxu0
    %v999 = vadd.f32 %v958, %v998
    %v1000 = vpop.f32.mrb[0].mxu0
    %v1001 = vadd.f32 %v960, %v1000
    %v1002 = vpop.f32.mrb[0].mxu0
    %v1003 = vpop.f32.mrb[0].mxu0
    %1004 = vdwg.mxu0
    %1005 = vmatprep.subr.bf16.mxu0 %v723
    %1006 = vmatpush1.bf16.msra.mxu0 %v722
    %1007 = vmatprep.subr.bf16.mxu0 %v725
    %1008 = vmatpush1.bf16.msra.mxu0 %v724
    %1009 = vmatprep.subr.bf16.mxu0 %v727
    %1010 = vmatpush1.bf16.msra.mxu0 %v726
    %1011 = vmatprep.subr.bf16.mxu0 %v729
    %1012 = vmatpush1.bf16.msra.mxu0 %v728
    %1013 = vmatprep.subr.bf16.mxu0 %v731
    %1014 = vmatpush1.bf16.msra.mxu0 %v730
    %1015 = vmatprep.subr.bf16.mxu0 %v733
    %1016 = vmatpush1.bf16.msra.mxu0 %v732
    %1017 = vmatprep.subr.bf16.mxu0 %v735
    %1018 = vmatpush1.bf16.msra.mxu0 %v734
    %1019 = vmatprep.subr.bf16.mxu0 %v737
    %1020 = vmatpush1.bf16.msra.mxu0 %v736
    %1021 = vmatprep.subr.bf16.mxu0 %v739
    %1022 = vmatpush1.bf16.msra.mxu0 %v738
    %1023 = vmatprep.subr.bf16.mxu0 %v741
    %1024 = vmatpush1.bf16.msra.mxu0 %v740
    %1025 = vmatprep.subr.bf16.mxu0 %v743
    %1026 = vmatpush1.bf16.msra.mxu0 %v742
    %1027 = vmatprep.subr.bf16.mxu0 %v745
    %1028 = vmatpush1.bf16.msra.mxu0 %v744
    %1029 = vmatprep.subr.bf16.mxu0 %v747
    %1030 = vmatpush1.bf16.msra.mxu0 %v746
    %1031 = vmatprep.subr.bf16.mxu0 %v749
    %1032 = vmatpush1.bf16.msra.mxu0 %v748
    %1033 = vmatprep.subr.bf16.mxu0 %v751
    %1034 = vmatpush1.bf16.msra.mxu0 %v750
    %1035 = vmatprep.subr.bf16.mxu0 %v753
    %1036 = vmatpush1.bf16.msra.mxu0 %v752
    %1037 = vmatprep.mubr.bf16.mxu0 %v233
    %1038 = vmatmul.mubr.bf16.gmra.mrb[0].mxu0 %v232
    %v1039 = vpop.f32.mrb[0].mxu0
    %v1040 = vadd.f32 %v999, %v1039
    %v1041 = vpop.f32.mrb[0].mxu0
    %v1042 = vadd.f32 %v1001, %v1041
    %v1043 = vpop.f32.mrb[0].mxu0
    %v1044 = vpop.f32.mrb[0].mxu0
    %1045 = vdwg.mxu0
    %v1046 = vxor.u32 %v1040, 2147483648
    %v1047 = vxor.u32 %v1042, 2147483648
    %v1048 = vmul.f32 %v1046, 1.442695
    %v1049 = vpow.pop %v1048
    %v1050 = vmul.f32 %v1047, 1.442695
    %v1051 = vpow.pop %v1050
    %v1052 = vadd.f32 %v1049, 1.0
    %v1053 = vadd.f32 %v1051, 1.0
    %v1054 = vrcp.pop %v1052
    %v1055 = vmul.f32 1.0, %v1054
    %v1056 = vrcp.pop %v1053
    %v1057 = vmul.f32 1.0, %v1056
    %v1058 = vpack.c.bf16 %v1055, %v1055
    %v1059 = vpack.c.bf16 %v1057, %v1057
    %v1060 = vld [vmem:[#allocation7] sm:$0xf]
    %v1061 = vld [vmem:[#allocation7 + $0x4] sm:$0xf]
    %v1062 = vld [vmem:[#allocation7 + $0x8] sm:$0xf]
    %v1063 = vld [vmem:[#allocation7 + $0xc] sm:$0xf]
    %v1064 = vld [vmem:[#allocation7 + $0x10] sm:$0xf]
    %v1065 = vld [vmem:[#allocation7 + $0x14] sm:$0xf]
    %v1066 = vld [vmem:[#allocation7 + $0x18] sm:$0xf]
    %v1067 = vld [vmem:[#allocation7 + $0x1c] sm:$0xf]
    %v1068 = vld [vmem:[#allocation7 + $0x20] sm:$0xf]
    %v1069 = vld [vmem:[#allocation7 + $0x24] sm:$0xf]
    %v1070 = vld [vmem:[#allocation7 + $0x28] sm:$0xf]
    %v1071 = vld [vmem:[#allocation7 + $0x2c] sm:$0xf]
    %v1072 = vld [vmem:[#allocation7 + $0x30] sm:$0xf]
    %v1073 = vld [vmem:[#allocation7 + $0x34] sm:$0xf]
    %v1074 = vld [vmem:[#allocation7 + $0x38] sm:$0xf]
    %v1075 = vld [vmem:[#allocation7 + $0x3c] sm:$0xf]
    %v1076 = vld [vmem:[#allocation7 + $0x40] sm:$0xf]
    %v1077 = vld [vmem:[#allocation7 + $0x44] sm:$0xf]
    %v1078 = vld [vmem:[#allocation7 + $0x48] sm:$0xf]
    %v1079 = vld [vmem:[#allocation7 + $0x4c] sm:$0xf]
    %v1080 = vld [vmem:[#allocation7 + $0x50] sm:$0xf]
    %v1081 = vld [vmem:[#allocation7 + $0x54] sm:$0xf]
    %v1082 = vld [vmem:[#allocation7 + $0x58] sm:$0xf]
    %v1083 = vld [vmem:[#allocation7 + $0x5c] sm:$0xf]
    %v1084 = vld [vmem:[#allocation7 + $0x60] sm:$0xf]
    %v1085 = vld [vmem:[#allocation7 + $0x64] sm:$0xf]
    %v1086 = vld [vmem:[#allocation7 + $0x68] sm:$0xf]
    %v1087 = vld [vmem:[#allocation7 + $0x6c] sm:$0xf]
    %v1088 = vld [vmem:[#allocation7 + $0x70] sm:$0xf]
    %v1089 = vld [vmem:[#allocation7 + $0x74] sm:$0xf]
    %v1090 = vld [vmem:[#allocation7 + $0x78] sm:$0xf]
    %v1091 = vld [vmem:[#allocation7 + $0x7c] sm:$0xf]
    %v1092 = vld [vmem:[%s4] sm:$0x1]
    %v1093 = vunpack.c.l.bf16 %v1092
    %v1094 = vlaneseq
    %v1095 = vshrl.u32 %v1094, 7
    %v1096 = vsub.s32 0, %v1095
    %v1097 = vrot.slane %v1093, %v1096
    %v1130 = vunpack.c.l.b16 %v1060
    %v1131 = vunpack.c.l.b16 %v1061
    %v1132 = vunpack.c.l.b16 %v1062
    %v1133 = vunpack.c.l.b16 %v1063
    %v1134 = vunpack.c.l.b16 %v1064
    %v1135 = vunpack.c.l.b16 %v1065
    %v1136 = vunpack.c.l.b16 %v1066
    %v1137 = vunpack.c.l.b16 %v1067
    %v1138 = vunpack.c.l.b16 %v1068
    %v1139 = vunpack.c.l.b16 %v1069
    %v1140 = vunpack.c.l.b16 %v1070
    %v1141 = vunpack.c.l.b16 %v1071
    %v1142 = vunpack.c.l.b16 %v1072
    %v1143 = vunpack.c.l.b16 %v1073
    %v1144 = vunpack.c.l.b16 %v1074
    %v1145 = vunpack.c.l.b16 %v1075
    %v1146 = vunpack.c.l.b16 %v1076
    %v1147 = vunpack.c.l.b16 %v1077
    %v1148 = vunpack.c.l.b16 %v1078
    %v1149 = vunpack.c.l.b16 %v1079
    %v1150 = vunpack.c.l.b16 %v1080
    %v1151 = vunpack.c.l.b16 %v1081
    %v1152 = vunpack.c.l.b16 %v1082
    %v1153 = vunpack.c.l.b16 %v1083
    %v1154 = vunpack.c.l.b16 %v1084
    %v1155 = vunpack.c.l.b16 %v1085
    %v1156 = vunpack.c.l.b16 %v1086
    %v1157 = vunpack.c.l.b16 %v1087
    %v1158 = vunpack.c.l.b16 %v1088
    %v1159 = vunpack.c.l.b16 %v1089
    %v1160 = vunpack.c.l.b16 %v1090
    %v1161 = vunpack.c.l.b16 %v1091
    %v1162 = vpack.c.b16 %v1131, %v1130
    %v1163 = vpack.c.b16 %v1133, %v1132
    %v1164 = vpack.c.b16 %v1135, %v1134
    %v1165 = vpack.c.b16 %v1137, %v1136
    %v1166 = vpack.c.b16 %v1139, %v1138
    %v1167 = vpack.c.b16 %v1141, %v1140
    %v1168 = vpack.c.b16 %v1143, %v1142
    %v1169 = vpack.c.b16 %v1145, %v1144
    %v1170 = vpack.c.b16 %v1147, %v1146
    %v1171 = vpack.c.b16 %v1149, %v1148
    %v1172 = vpack.c.b16 %v1151, %v1150
    %v1173 = vpack.c.b16 %v1153, %v1152
    %v1174 = vpack.c.b16 %v1155, %v1154
    %v1175 = vpack.c.b16 %v1157, %v1156
    %v1176 = vpack.c.b16 %v1159, %v1158
    %v1177 = vpack.c.b16 %v1161, %v1160
    %1194 = vmatprep.subr.bf16.mxu0 0
    %1195 = vmatpush1.bf16.msra.mxu0 %v1162
    %1196 = vmatprep.subr.bf16.mxu0 0
    %1197 = vmatpush1.bf16.msra.mxu0 %v1163
    %1198 = vmatprep.subr.bf16.mxu0 0
    %1199 = vmatpush1.bf16.msra.mxu0 %v1164
    %1200 = vmatprep.subr.bf16.mxu0 0
    %1201 = vmatpush1.bf16.msra.mxu0 %v1165
    %1202 = vmatprep.subr.bf16.mxu0 0
    %1203 = vmatpush1.bf16.msra.mxu0 %v1166
    %1204 = vmatprep.subr.bf16.mxu0 0
    %1205 = vmatpush1.bf16.msra.mxu0 %v1167
    %1206 = vmatprep.subr.bf16.mxu0 0
    %1207 = vmatpush1.bf16.msra.mxu0 %v1168
    %1208 = vmatprep.subr.bf16.mxu0 0
    %1209 = vmatpush1.bf16.msra.mxu0 %v1169
    %1210 = vmatprep.subr.bf16.mxu0 0
    %1211 = vmatpush1.bf16.msra.mxu0 %v1170
    %1212 = vmatprep.subr.bf16.mxu0 0
    %1213 = vmatpush1.bf16.msra.mxu0 %v1171
    %1214 = vmatprep.subr.bf16.mxu0 0
    %1215 = vmatpush1.bf16.msra.mxu0 %v1172
    %1216 = vmatprep.subr.bf16.mxu0 0
    %1217 = vmatpush1.bf16.msra.mxu0 %v1173
    %1218 = vmatprep.subr.bf16.mxu0 0
    %1219 = vmatpush1.bf16.msra.mxu0 %v1174
    %1220 = vmatprep.subr.bf16.mxu0 0
    %1221 = vmatpush1.bf16.msra.mxu0 %v1175
    %1222 = vmatprep.subr.bf16.mxu0 0
    %1223 = vmatpush1.bf16.msra.mxu0 %v1176
    %1224 = vmatprep.subr.bf16.mxu0 0
    %1225 = vmatpush1.bf16.msra.mxu0 %v1177
    %1226 = vmatprep.mubr.bf16.mxu0 %v1059
    %1227 = vmatmul.mubr.bf16.gmra.mrb[0].mxu0 %v1058
    %v1228 = vpop.f32.mrb[0].mxu0
    %v1229 = vadd.f32 %v1097, %v1228
    %v1230 = vpop.f32.mrb[0].mxu0
    %v1231 = vpop.f32.mrb[0].mxu0
    %v1232 = vpop.f32.mrb[0].mxu0
    %1233 = vdwg.mxu0
    %v1234 = vxor.u32 %v1229, 2147483648
    %v1235 = vmul.f32 %v1234, 1.442695
    %v1236 = vpow.pop %v1235
    %v1237 = vadd.f32 %v1236, 1.0
    %v1238 = vrcp.pop %v1237
    %v1239 = vmul.f32 1.0, %v1238
    %1240 = vst [vmem:[#allocation8] sm:$0xff] %v1239
    // Predicated region
    $region34: #{tpu_custom_call.1} parent=1 // pred_check
      _
    $region35: #{tpu_custom_call.1} parent=1 // pred_check_branch
      %1242 = sbr.rel (0) target = $region37
    $region36: #{tpu_custom_call.1} parent=1 // pred_region
      %s1244 = ssub.s32 128, 128
      %1245 = vsyncadd [#allocation4], %s1244
      %s1247 = sshll.u32 [#allocation8], 4
      %s1248 = int_to_ptr.vmem [resolvable:$true] %s1247
      %1250 = dma.vmem_to_hbm [thread:$0]  %s1248, 128, %s5, [#allocation4]
    $region37: #{tpu_custom_call.1} parent=1 // pred_fallthru
      _
    // Predicated region
    $region38: #{tpu_custom_call.1} parent=1 // pred_check
      _
    $region39: #{tpu_custom_call.1} parent=1 // pred_check_branch
      %1252 = sbr.rel (0) target = $region41
    $region40: #{tpu_custom_call.1} parent=1 // pred_region
      %1253 = dma.done [#allocation4], 128
    $region41: #{tpu_custom_call.1} parent=1 // pred_fallthru
      _
    %1254 = vsyncpa [#allocation3], 1
    %1255 = vsyncpa [#allocation6], 1
    %1256 = vsyncpa [#allocation4], 1

// kernel: tpu_custom_call.1
$region0: #{tpu_custom_call.1}
  #allocation0 [shape = 'u32[]', space=smem, size = 0x4, offset = 0x4, fixed_abs, tag = 'smem constant byte address 0x4 - core index']
  #allocation1 [shape = 'u32[144,128]{1,0:T(1,128)}', space=vmem, size = 0x12000, scoped, tag = 'internal scratch']
  %s0 = inlined_call_operand.hbm [shape: bf16[8,1024], index: 0, kind: input, shape index: {}]
  %s1 = inlined_call_operand.hbm [shape: bf16[1024,256], index: 1, kind: input, shape index: {}]
  %s2 = inlined_call_operand.vmem [shape: bf16[1,256], index: 2, kind: input, shape index: {}]
  %s3 = inlined_call_operand.hbm [shape: bf16[256,128], index: 3, kind: input, shape index: {}]
  %s4 = inlined_call_operand.vmem [shape: bf16[1,128], index: 4, kind: input, shape index: {}]
  %s5 = inlined_call_operand.hbm [shape: f32[8,128], index: 5, kind: output, shape index: {}]
  %s6 = sld [smem:[#allocation0]]
  $region42: #{tpu_custom_call.1} parent=0
    _
  %s8 = ssub.s32 1, %s6
  %s9 = scalar_select 0, %s8, %s6
  $region1: #{tpu_custom_call.1} parent=0
    #allocation2 [shape = 'u8[16384]{0}', space=vmem, size = 0x4000, scoped, tag = 'input window, operand 0, single buffered']
    #allocation3 [shape = 's32[1]{0}', space=sflag, size = 0x4, scoped, tag = 'scoped memory for tpu_custom_call.1']
    #allocation4 [shape = 's32[1]{0}', space=sflag, size = 0x4, scoped, tag = 'scoped memory for tpu_custom_call.1']
    #allocation5 [shape = 'u8[524288]{0}', space=vmem, size = 0x80000, scoped, tag = 'input window, operand 1, single buffered']
    #allocation6 [shape = 's32[1]{0}', space=sflag, size = 0x4, scoped, tag = 'scoped memory for tpu_custom_call.1']
    #allocation7 [shape = 'u8[65536]{0}', space=vmem, size = 0x10000, scoped, tag = 'input window, operand 3, single buffered']
    #allocation8 [shape = 'u8[4096]{0}', space=vmem, size = 0x1000, scoped, tag = 'output window, operand 0, single buffered']
    %10 = vsyncpa [#allocation3], 0
    %11 = vsyncpa [#allocation6], 0
    %12 = vsyncpa [#allocation4], 0
    // Predicated region
    $region2: #{tpu_custom_call.1} parent=1 // pred_check
      _
    $region3: #{tpu_custom_call.1} parent=1 // pred_check_branch
      %14 = sbr.rel (0) target = $region5
    $region4: #{tpu_custom_call.1} parent=1 // pred_region
      %s16 = ssub.s32 512, 512
      %17 = vsyncadd [#allocation3], %s16
      %s19 = sshll.u32 [#allocation2], 4
      %s20 = int_to_ptr.vmem [resolvable:$true] %s19
      %22 = dma.hbm_to_vmem [thread:$0]  %s0, 512, %s20, [#allocation3]
    $region5: #{tpu_custom_call.1} parent=1 // pred_fallthru
      _
    // Predicated region
    $region6: #{tpu_custom_call.1} parent=1 // pred_check
      _
    $region7: #{tpu_custom_call.1} parent=1 // pred_check_branch
      %24 = sbr.rel (0) target = $region9
    $region8: #{tpu_custom_call.1} parent=1 // pred_region
      %s26 = ssub.s32 16384, 16384
      %27 = vsyncadd [#allocation6], %s26
      %s28 = sshll.u32 [#allocation5], 4
      %s29 = int_to_ptr.vmem [resolvable:$true] %s28
      %34 = dma.hbm_to_vmem [thread:$0]  %s1, 16384, %s29, [#allocation6], 128, 128, 8
    $region9: #{tpu_custom_call.1} parent=1 // pred_fallthru
      _
    // Predicated region
    $region10: #{tpu_custom_call.1} parent=1 // pred_check
      _
    $region11: #{tpu_custom_call.1} parent=1 // pred_check_branch
      %36 = sbr.rel (0) target = $region13
    $region12: #{tpu_custom_call.1} parent=1 // pred_region
      _
    $region13: #{tpu_custom_call.1} parent=1 // pred_fallthru
      _
    // Predicated region
    $region14: #{tpu_custom_call.1} parent=1 // pred_check
      _
    $region15: #{tpu_custom_call.1} parent=1 // pred_check_branch
      %38 = sbr.rel (0) target = $region17
    $region16: #{tpu_custom_call.1} parent=1 // pred_region
      %s40 = ssub.s32 2048, 2048
      %41 = vsyncadd [#allocation6], %s40
      %s42 = sshll.u32 [#allocation7], 4
      %s43 = int_to_ptr.vmem [resolvable:$true] %s42
      %48 = dma.hbm_to_vmem [thread:$0]  %s3, 2048, %s43, [#allocation6], 64, 64, 4
    $region17: #{tpu_custom_call.1} parent=1 // pred_fallthru
      _
    // Predicated region
    $region18: #{tpu_custom_call.1} parent=1 // pred_check
      _
    $region19: #{tpu_custom_call.1} parent=1 // pred_check_branch
      %50 = sbr.rel (0) target = $region21
    $region20: #{tpu_custom_call.1} parent=1 // pred_region
      _
    $region21: #{tpu_custom_call.1} parent=1 // pred_fallthru
      _
    // Predicated region
    $region22: #{tpu_custom_call.1} parent=1 // pred_check
      _
    $region23: #{tpu_custom_call.1} parent=1 // pred_check_branch
      %52 = sbr.rel (0) target = $region25
    $region24: #{tpu_custom_call.1} parent=1 // pred_region
      %53 = dma.done [#allocation3], 512
    $region25: #{tpu_custom_call.1} parent=1 // pred_fallthru
      _
    // Predicated region
    $region26: #{tpu_custom_call.1} parent=1 // pred_check
      _
    $region27: #{tpu_custom_call.1} parent=1 // pred_check_branch
      %55 = sbr.rel (0) target = $region29
    $region28: #{tpu_custom_call.1} parent=1 // pred_region
      %56 = dma.done [#allocation6], 16384
    $region29: #{tpu_custom_call.1} parent=1 // pred_fallthru
      _
    // Predicated region
    $region30: #{tpu_custom_call.1} parent=1 // pred_check
      _
    $region31: #{tpu_custom_call.1} parent=1 // pred_check_branch
      %58 = sbr.rel (0) target = $region33
    $region32: #{tpu_custom_call.1} parent=1 // pred_region
      %59 = dma.done [#allocation6], 2048
    $region33: #{tpu_custom_call.1} parent=1 // pred_fallthru
      _
    %v61 = vld [vmem:[#allocation2] sm:$0xff]
    %v62 = vld [vmem:[#allocation2 + $0x8] sm:$0xff]
    %v63 = vld [vmem:[#allocation2 + $0x10] sm:$0xff]
    %v64 = vld [vmem:[#allocation2 + $0x18] sm:$0xff]
    %v65 = vld [vmem:[#allocation5] sm:$0xff]
    %v66 = vld [vmem:[#allocation5 + $0x8] sm:$0xff]
    %v67 = vld [vmem:[#allocation5 + $0x10] sm:$0xff]
    %v68 = vld [vmem:[#allocation5 + $0x18] sm:$0xff]
    %v69 = vld [vmem:[#allocation5 + $0x20] sm:$0xff]
    %v70 = vld [vmem:[#allocation5 + $0x28] sm:$0xff]
    %v71 = vld [vmem:[#allocation5 + $0x30] sm:$0xff]
    %v72 = vld [vmem:[#allocation5 + $0x38] sm:$0xff]
    %v73 = vld [vmem:[#allocation5 + $0x40] sm:$0xff]
    %v74 = vld [vmem:[#allocation5 + $0x48] sm:$0xff]
    %v75 = vld [vmem:[#allocation5 + $0x50] sm:$0xff]
    %v76 = vld [vmem:[#allocation5 + $0x58] sm:$0xff]
    %v77 = vld [vmem:[#allocation5 + $0x60] sm:$0xff]
    %v78 = vld [vmem:[#allocation5 + $0x68] sm:$0xff]
    %v79 = vld [vmem:[#allocation5 + $0x70] sm:$0xff]
    %v80 = vld [vmem:[#allocation5 + $0x78] sm:$0xff]
    %v81 = vld [vmem:[#allocation5 + $0x80] sm:$0xff]
    %v82 = vld [vmem:[#allocation5 + $0x88] sm:$0xff]
    %v83 = vld [vmem:[#allocation5 + $0x90] sm:$0xff]
    %v84 = vld [vmem:[#allocation5 + $0x98] sm:$0xff]
    %v85 = vld [vmem:[#allocation5 + $0xa0] sm:$0xff]
    %v86 = vld [vmem:[#allocation5 + $0xa8] sm:$0xff]
    %v87 = vld [vmem:[#allocation5 + $0xb0] sm:$0xff]
    %v88 = vld [vmem:[#allocation5 + $0xb8] sm:$0xff]
    %v89 = vld [vmem:[#allocation5 + $0xc0] sm:$0xff]
    %v90 = vld [vmem:[#allocation5 + $0xc8] sm:$0xff]
    %v91 = vld [vmem:[#allocation5 + $0xd0] sm:$0xff]
    %v92 = vld [vmem:[#allocation5 + $0xd8] sm:$0xff]
    %v93 = vld [vmem:[#allocation5 + $0xe0] sm:$0xff]
    %v94 = vld [vmem:[#allocation5 + $0xe8] sm:$0xff]
    %v95 = vld [vmem:[#allocation5 + $0xf0] sm:$0xff]
    %v96 = vld [vmem:[#allocation5 + $0xf8] sm:$0xff]
    %v97 = vld [vmem:[#allocation5 + $0x100] sm:$0xff]
    %v98 = vld [vmem:[#allocation5 + $0x108] sm:$0xff]
    %v99 = vld [vmem:[#allocation5 + $0x110] sm:$0xff]
    %v100 = vld [vmem:[#allocation5 + $0x118] sm:$0xff]
    %v101 = vld [vmem:[#allocation5 + $0x120] sm:$0xff]
    %v102 = vld [vmem:[#allocation5 + $0x128] sm:$0xff]
    %v103 = vld [vmem:[#allocation5 + $0x130] sm:$0xff]
    %v104 = vld [vmem:[#allocation5 + $0x138] sm:$0xff]
    %v105 = vld [vmem:[#allocation5 + $0x140] sm:$0xff]
    %v106 = vld [vmem:[#allocation5 + $0x148] sm:$0xff]
    %v107 = vld [vmem:[#allocation5 + $0x150] sm:$0xff]
    %v108 = vld [vmem:[#allocation5 + $0x158] sm:$0xff]
    %v109 = vld [vmem:[#allocation5 + $0x160] sm:$0xff]
    %v110 = vld [vmem:[#allocation5 + $0x168] sm:$0xff]
    %v111 = vld [vmem:[#allocation5 + $0x170] sm:$0xff]
    %v112 = vld [vmem:[#allocation5 + $0x178] sm:$0xff]
    %v113 = vld [vmem:[#allocation5 + $0x180] sm:$0xff]
    %v114 = vld [vmem:[#allocation5 + $0x188] sm:$0xff]
    %v115 = vld [vmem:[#allocation5 + $0x190] sm:$0xff]
    %v116 = vld [vmem:[#allocation5 + $0x198] sm:$0xff]
    %v117 = vld [vmem:[#allocation5 + $0x1a0] sm:$0xff]
    %v118 = vld [vmem:[#allocation5 + $0x1a8] sm:$0xff]
    %v119 = vld [vmem:[#allocation5 + $0x1b0] sm:$0xff]
    %v120 = vld [vmem:[#allocation5 + $0x1b8] sm:$0xff]
    %v121 = vld [vmem:[#allocation5 + $0x1c0] sm:$0xff]
    %v122 = vld [vmem:[#allocation5 + $0x1c8] sm:$0xff]
    %v123 = vld [vmem:[#allocation5 + $0x1d0] sm:$0xff]
    %v124 = vld [vmem:[#allocation5 + $0x1d8] sm:$0xff]
    %v125 = vld [vmem:[#allocation5 + $0x1e0] sm:$0xff]
    %v126 = vld [vmem:[#allocation5 + $0x1e8] sm:$0xff]
    %v127 = vld [vmem:[#allocation5 + $0x1f0] sm:$0xff]
    %v128 = vld [vmem:[#allocation5 + $0x1f8] sm:$0xff]
    %v129 = vld [vmem:[#allocation5 + $0x200] sm:$0xff]
    %v130 = vld [vmem:[#allocation5 + $0x208] sm:$0xff]
    %v131 = vld [vmem:[#allocation5 + $0x210] sm:$0xff]
    %v132 = vld [vmem:[#allocation5 + $0x218] sm:$0xff]
    %v133 = vld [vmem:[#allocation5 + $0x220] sm:$0xff]
    %v134 = vld [vmem:[#allocation5 + $0x228] sm:$0xff]
    %v135 = vld [vmem:[#allocation5 + $0x230] sm:$0xff]
    %v136 = vld [vmem:[#allocation5 + $0x238] sm:$0xff]
    %v137 = vld [vmem:[#allocation5 + $0x240] sm:$0xff]
    %v138 = vld [vmem:[#allocation5 + $0x248] sm:$0xff]
    %v139 = vld [vmem:[#allocation5 + $0x250] sm:$0xff]
    %v140 = vld [vmem:[#allocation5 + $0x258] sm:$0xff]
    %v141 = vld [vmem:[#allocation5 + $0x260] sm:$0xff]
    %v142 = vld [vmem:[#allocation5 + $0x268] sm:$0xff]
    %v143 = vld [vmem:[#allocation5 + $0x270] sm:$0xff]
    %v144 = vld [vmem:[#allocation5 + $0x278] sm:$0xff]
    %v145 = vld [vmem:[#allocation5 + $0x280] sm:$0xff]
    %v146 = vld [vmem:[#allocation5 + $0x288] sm:$0xff]
    %v147 = vld [vmem:[#allocation5 + $0x290] sm:$0xff]
    %v148 = vld [vmem:[#allocation5 + $0x298] sm:$0xff]
    %v149 = vld [vmem:[#allocation5 + $0x2a0] sm:$0xff]
    %v150 = vld [vmem:[#allocation5 + $0x2a8] sm:$0xff]
    %v151 = vld [vmem:[#allocation5 + $0x2b0] sm:$0xff]
    %v152 = vld [vmem:[#allocation5 + $0x2b8] sm:$0xff]
    %v153 = vld [vmem:[#allocation5 + $0x2c0] sm:$0xff]
    %v154 = vld [vmem:[#allocation5 + $0x2c8] sm:$0xff]
    %v155 = vld [vmem:[#allocation5 + $0x2d0] sm:$0xff]
    %v156 = vld [vmem:[#allocation5 + $0x2d8] sm:$0xff]
    %v157 = vld [vmem:[#allocation5 + $0x2e0] sm:$0xff]
    %v158 = vld [vmem:[#allocation5 + $0x2e8] sm:$0xff]
    %v159 = vld [vmem:[#allocation5 + $0x2f0] sm:$0xff]
    %v160 = vld [vmem:[#allocation5 + $0x2f8] sm:$0xff]
    %v161 = vld [vmem:[#allocation5 + $0x300] sm:$0xff]
    %v162 = vld [vmem:[#allocation5 + $0x308] sm:$0xff]
    %v163 = vld [vmem:[#allocation5 + $0x310] sm:$0xff]
    %v164 = vld [vmem:[#allocation5 + $0x318] sm:$0xff]
    %v165 = vld [vmem:[#allocation5 + $0x320] sm:$0xff]
    %v166 = vld [vmem:[#allocation5 + $0x328] sm:$0xff]
    %v167 = vld [vmem:[#allocation5 + $0x330] sm:$0xff]
    %v168 = vld [vmem:[#allocation5 + $0x338] sm:$0xff]
    %v169 = vld [vmem:[#allocation5 + $0x340] sm:$0xff]
    %v170 = vld [vmem:[#allocation5 + $0x348] sm:$0xff]
    %v171 = vld [vmem:[#allocation5 + $0x350] sm:$0xff]
    %v172 = vld [vmem:[#allocation5 + $0x358] sm:$0xff]
    %v173 = vld [vmem:[#allocation5 + $0x360] sm:$0xff]
    %v174 = vld [vmem:[#allocation5 + $0x368] sm:$0xff]
    %v175 = vld [vmem:[#allocation5 + $0x370] sm:$0xff]
    %v176 = vld [vmem:[#allocation5 + $0x378] sm:$0xff]
    %v177 = vld [vmem:[#allocation5 + $0x380] sm:$0xff]
    %v178 = vld [vmem:[#allocation5 + $0x388] sm:$0xff]
    %v179 = vld [vmem:[#allocation5 + $0x390] sm:$0xff]
    %v180 = vld [vmem:[#allocation5 + $0x398] sm:$0xff]
    %v181 = vld [vmem:[#allocation5 + $0x3a0] sm:$0xff]
    %v182 = vld [vmem:[#allocation5 + $0x3a8] sm:$0xff]
    %v183 = vld [vmem:[#allocation5 + $0x3b0] sm:$0xff]
    %v184 = vld [vmem:[#allocation5 + $0x3b8] sm:$0xff]
    %v185 = vld [vmem:[#allocation5 + $0x3c0] sm:$0xff]
    %v186 = vld [vmem:[#allocation5 + $0x3c8] sm:$0xff]
    %v187 = vld [vmem:[#allocation5 + $0x3d0] sm:$0xff]
    %v188 = vld [vmem:[#allocation5 + $0x3d8] sm:$0xff]
    %v189 = vld [vmem:[#allocation5 + $0x3e0] sm:$0xff]
    %v190 = vld [vmem:[#allocation5 + $0x3e8] sm:$0xff]
    %v191 = vld [vmem:[#allocation5 + $0x3f0] sm:$0xff]
    %v192 = vld [vmem:[#allocation5 + $0x3f8] sm:$0xff]
    %v193 = vld [vmem:[%s2] sm:$0x3]
    %v194 = vunpack.c.l.bf16 %v193
    %v196 = vlaneseq
    %v197 = vshrl.u32 %v196, 7
    %v198 = vsub.s32 0, %v197
    %v199 = vrot.slane %v194, %v198
    %v200 = vlaneseq
    %v201 = vshrl.u32 %v200, 7
    %v202 = vsub.s32 2, %v201
    %v203 = vrot.slane %v194, %v202
    %v206 = vlaneseq
    %v207 = vshrl.u32 %v206, 7
    %v208 = vsub.s32 0, %v207
    %v209 = vrot.slane %v199, %v208
    %v210 = vlaneseq
    %v211 = vshrl.u32 %v210, 7
    %v212 = vsub.s32 0, %v211
    %v213 = vrot.slane %v203, %v212
    %v218 = vunpack.c.l.b16 %v61
    %v219 = vunpack.c.h.b16 %v61
    %v220 = vunpack.c.l.b16 %v62
    %v221 = vunpack.c.h.b16 %v62
    %v222 = vunpack.c.l.b16 %v63
    %v223 = vunpack.c.h.b16 %v63
    %v224 = vunpack.c.l.b16 %v64
    %v225 = vunpack.c.h.b16 %v64
    %v226 = vpack.c.b16 %v218, %v218
    %v227 = vpack.c.b16 %v219, %v219
    %v228 = vpack.c.b16 %v220, %v220
    %v229 = vpack.c.b16 %v221, %v221
    %v230 = vpack.c.b16 %v222, %v222
    %v231 = vpack.c.b16 %v223, %v223
    %v232 = vpack.c.b16 %v224, %v224
    %v233 = vpack.c.b16 %v225, %v225
    %v370 = vunpack.c.l.b16 %v65
    %v371 = vunpack.c.h.b16 %v65
    %v372 = vunpack.c.l.b16 %v66
    %v373 = vunpack.c.h.b16 %v66
    %v374 = vunpack.c.l.b16 %v67
    %v375 = vunpack.c.h.b16 %v67
    %v376 = vunpack.c.l.b16 %v68
    %v377 = vunpack.c.h.b16 %v68
    %v378 = vunpack.c.l.b16 %v69
    %v379 = vunpack.c.h.b16 %v69
    %v380 = vunpack.c.l.b16 %v70
    %v381 = vunpack.c.h.b16 %v70
    %v382 = vunpack.c.l.b16 %v71
    %v383 = vunpack.c.h.b16 %v71
    %v384 = vunpack.c.l.b16 %v72
    %v385 = vunpack.c.h.b16 %v72
    %v386 = vunpack.c.l.b16 %v73
    %v387 = vunpack.c.h.b16 %v73
    %v388 = vunpack.c.l.b16 %v74
    %v389 = vunpack.c.h.b16 %v74
    %v390 = vunpack.c.l.b16 %v75
    %v391 = vunpack.c.h.b16 %v75
    %v392 = vunpack.c.l.b16 %v76
    %v393 = vunpack.c.h.b16 %v76
    %v394 = vunpack.c.l.b16 %v77
    %v395 = vunpack.c.h.b16 %v77
    %v396 = vunpack.c.l.b16 %v78
    %v397 = vunpack.c.h.b16 %v78
    %v398 = vunpack.c.l.b16 %v79
    %v399 = vunpack.c.h.b16 %v79
    %v400 = vunpack.c.l.b16 %v80
    %v401 = vunpack.c.h.b16 %v80
    %v402 = vunpack.c.l.b16 %v81
    %v403 = vunpack.c.h.b16 %v81
    %v404 = vunpack.c.l.b16 %v82
    %v405 = vunpack.c.h.b16 %v82
    %v406 = vunpack.c.l.b16 %v83
    %v407 = vunpack.c.h.b16 %v83
    %v408 = vunpack.c.l.b16 %v84
    %v409 = vunpack.c.h.b16 %v84
    %v410 = vunpack.c.l.b16 %v85
    %v411 = vunpack.c.h.b16 %v85
    %v412 = vunpack.c.l.b16 %v86
    %v413 = vunpack.c.h.b16 %v86
    %v414 = vunpack.c.l.b16 %v87
    %v415 = vunpack.c.h.b16 %v87
    %v416 = vunpack.c.l.b16 %v88
    %v417 = vunpack.c.h.b16 %v88
    %v418 = vunpack.c.l.b16 %v89
    %v419 = vunpack.c.h.b16 %v89
    %v420 = vunpack.c.l.b16 %v90
    %v421 = vunpack.c.h.b16 %v90
    %v422 = vunpack.c.l.b16 %v91
    %v423 = vunpack.c.h.b16 %v91
    %v424 = vunpack.c.l.b16 %v92
    %v425 = vunpack.c.h.b16 %v92
    %v426 = vunpack.c.l.b16 %v93
    %v427 = vunpack.c.h.b16 %v93
    %v428 = vunpack.c.l.b16 %v94
    %v429 = vunpack.c.h.b16 %v94
    %v430 = vunpack.c.l.b16 %v95
    %v431 = vunpack.c.h.b16 %v95
    %v432 = vunpack.c.l.b16 %v96
    %v433 = vunpack.c.h.b16 %v96
    %v434 = vunpack.c.l.b16 %v97
    %v435 = vunpack.c.h.b16 %v97
    %v436 = vunpack.c.l.b16 %v98
    %v437 = vunpack.c.h.b16 %v98
    %v438 = vunpack.c.l.b16 %v99
    %v439 = vunpack.c.h.b16 %v99
    %v440 = vunpack.c.l.b16 %v100
    %v441 = vunpack.c.h.b16 %v100
    %v442 = vunpack.c.l.b16 %v101
    %v443 = vunpack.c.h.b16 %v101
    %v444 = vunpack.c.l.b16 %v102
    %v445 = vunpack.c.h.b16 %v102
    %v446 = vunpack.c.l.b16 %v103
    %v447 = vunpack.c.h.b16 %v103
    %v448 = vunpack.c.l.b16 %v104
    %v449 = vunpack.c.h.b16 %v104
    %v450 = vunpack.c.l.b16 %v105
    %v451 = vunpack.c.h.b16 %v105
    %v452 = vunpack.c.l.b16 %v106
    %v453 = vunpack.c.h.b16 %v106
    %v454 = vunpack.c.l.b16 %v107
    %v455 = vunpack.c.h.b16 %v107
    %v456 = vunpack.c.l.b16 %v108
    %v457 = vunpack.c.h.b16 %v108
    %v458 = vunpack.c.l.b16 %v109
    %v459 = vunpack.c.h.b16 %v109
    %v460 = vunpack.c.l.b16 %v110
    %v461 = vunpack.c.h.b16 %v110
    %v462 = vunpack.c.l.b16 %v111
    %v463 = vunpack.c.h.b16 %v111
    %v464 = vunpack.c.l.b16 %v112
    %v465 = vunpack.c.h.b16 %v112
    %v466 = vunpack.c.l.b16 %v113
    %v467 = vunpack.c.h.b16 %v113
    %v468 = vunpack.c.l.b16 %v114
    %v469 = vunpack.c.h.b16 %v114
    %v470 = vunpack.c.l.b16 %v115
    %v471 = vunpack.c.h.b16 %v115
    %v472 = vunpack.c.l.b16 %v116
    %v473 = vunpack.c.h.b16 %v116
    %v474 = vunpack.c.l.b16 %v117
    %v475 = vunpack.c.h.b16 %v117
    %v476 = vunpack.c.l.b16 %v118
    %v477 = vunpack.c.h.b16 %v118
    %v478 = vunpack.c.l.b16 %v119
    %v479 = vunpack.c.h.b16 %v119
    %v480 = vunpack.c.l.b16 %v120
    %v481 = vunpack.c.h.b16 %v120
    %v482 = vunpack.c.l.b16 %v121
    %v483 = vunpack.c.h.b16 %v121
    %v484 = vunpack.c.l.b16 %v122
    %v485 = vunpack.c.h.b16 %v122
    %v486 = vunpack.c.l.b16 %v123
    %v487 = vunpack.c.h.b16 %v123
    %v488 = vunpack.c.l.b16 %v124
    %v489 = vunpack.c.h.b16 %v124
    %v490 = vunpack.c.l.b16 %v125
    %v491 = vunpack.c.h.b16 %v125
    %v492 = vunpack.c.l.b16 %v126
    %v493 = vunpack.c.h.b16 %v126
    %v494 = vunpack.c.l.b16 %v127
    %v495 = vunpack.c.h.b16 %v127
    %v496 = vunpack.c.l.b16 %v128
    %v497 = vunpack.c.h.b16 %v128
    %v498 = vunpack.c.l.b16 %v129
    %v499 = vunpack.c.h.b16 %v129
    %v500 = vunpack.c.l.b16 %v130
    %v501 = vunpack.c.h.b16 %v130
    %v502 = vunpack.c.l.b16 %v131
    %v503 = vunpack.c.h.b16 %v131
    %v504 = vunpack.c.l.b16 %v132
    %v505 = vunpack.c.h.b16 %v132
    %v506 = vunpack.c.l.b16 %v133
    %v507 = vunpack.c.h.b16 %v133
    %v508 = vunpack.c.l.b16 %v134
    %v509 = vunpack.c.h.b16 %v134
    %v510 = vunpack.c.l.b16 %v135
    %v511 = vunpack.c.h.b16 %v135
    %v512 = vunpack.c.l.b16 %v136
    %v513 = vunpack.c.h.b16 %v136
    %v514 = vunpack.c.l.b16 %v137
    %v515 = vunpack.c.h.b16 %v137
    %v516 = vunpack.c.l.b16 %v138
    %v517 = vunpack.c.h.b16 %v138
    %v518 = vunpack.c.l.b16 %v139
    %v519 = vunpack.c.h.b16 %v139
    %v520 = vunpack.c.l.b16 %v140
    %v521 = vunpack.c.h.b16 %v140
    %v522 = vunpack.c.l.b16 %v141
    %v523 = vunpack.c.h.b16 %v141
    %v524 = vunpack.c.l.b16 %v142
    %v525 = vunpack.c.h.b16 %v142
    %v526 = vunpack.c.l.b16 %v143
    %v527 = vunpack.c.h.b16 %v143
    %v528 = vunpack.c.l.b16 %v144
    %v529 = vunpack.c.h.b16 %v144
    %v530 = vunpack.c.l.b16 %v145
    %v531 = vunpack.c.h.b16 %v145
    %v532 = vunpack.c.l.b16 %v146
    %v533 = vunpack.c.h.b16 %v146
    %v534 = vunpack.c.l.b16 %v147
    %v535 = vunpack.c.h.b16 %v147
    %v536 = vunpack.c.l.b16 %v148
    %v537 = vunpack.c.h.b16 %v148
    %v538 = vunpack.c.l.b16 %v149
    %v539 = vunpack.c.h.b16 %v149
    %v540 = vunpack.c.l.b16 %v150
    %v541 = vunpack.c.h.b16 %v150
    %v542 = vunpack.c.l.b16 %v151
    %v543 = vunpack.c.h.b16 %v151
    %v544 = vunpack.c.l.b16 %v152
    %v545 = vunpack.c.h.b16 %v152
    %v546 = vunpack.c.l.b16 %v153
    %v547 = vunpack.c.h.b16 %v153
    %v548 = vunpack.c.l.b16 %v154
    %v549 = vunpack.c.h.b16 %v154
    %v550 = vunpack.c.l.b16 %v155
    %v551 = vunpack.c.h.b16 %v155
    %v552 = vunpack.c.l.b16 %v156
    %v553 = vunpack.c.h.b16 %v156
    %v554 = vunpack.c.l.b16 %v157
    %v555 = vunpack.c.h.b16 %v157
    %v556 = vunpack.c.l.b16 %v158
    %v557 = vunpack.c.h.b16 %v158
    %v558 = vunpack.c.l.b16 %v159
    %v559 = vunpack.c.h.b16 %v159
    %v560 = vunpack.c.l.b16 %v160
    %v561 = vunpack.c.h.b16 %v160
    %v562 = vunpack.c.l.b16 %v161
    %v563 = vunpack.c.h.b16 %v161
    %v564 = vunpack.c.l.b16 %v162
    %v565 = vunpack.c.h.b16 %v162
    %v566 = vunpack.c.l.b16 %v163
    %v567 = vunpack.c.h.b16 %v163
    %v568 = vunpack.c.l.b16 %v164
    %v569 = vunpack.c.h.b16 %v164
    %v570 = vunpack.c.l.b16 %v165
    %v571 = vunpack.c.h.b16 %v165
    %v572 = vunpack.c.l.b16 %v166
    %v573 = vunpack.c.h.b16 %v166
    %v574 = vunpack.c.l.b16 %v167
    %v575 = vunpack.c.h.b16 %v167
    %v576 = vunpack.c.l.b16 %v168
    %v577 = vunpack.c.h.b16 %v168
    %v578 = vunpack.c.l.b16 %v169
    %v579 = vunpack.c.h.b16 %v169
    %v580 = vunpack.c.l.b16 %v170
    %v581 = vunpack.c.h.b16 %v170
    %v582 = vunpack.c.l.b16 %v171
    %v583 = vunpack.c.h.b16 %v171
    %v584 = vunpack.c.l.b16 %v172
    %v585 = vunpack.c.h.b16 %v172
    %v586 = vunpack.c.l.b16 %v173
    %v587 = vunpack.c.h.b16 %v173
    %v588 = vunpack.c.l.b16 %v174
    %v589 = vunpack.c.h.b16 %v174
    %v590 = vunpack.c.l.b16 %v175
    %v591 = vunpack.c.h.b16 %v175
    %v592 = vunpack.c.l.b16 %v176
    %v593 = vunpack.c.h.b16 %v176
    %v594 = vunpack.c.l.b16 %v177
    %v595 = vunpack.c.h.b16 %v177
    %v596 = vunpack.c.l.b16 %v178
    %v597 = vunpack.c.h.b16 %v178
    %v598 = vunpack.c.l.b16 %v179
    %v599 = vunpack.c.h.b16 %v179
    %v600 = vunpack.c.l.b16 %v180
    %v601 = vunpack.c.h.b16 %v180
    %v602 = vunpack.c.l.b16 %v181
    %v603 = vunpack.c.h.b16 %v181
    %v604 = vunpack.c.l.b16 %v182
    %v605 = vunpack.c.h.b16 %v182
    %v606 = vunpack.c.l.b16 %v183
    %v607 = vunpack.c.h.b16 %v183
    %v608 = vunpack.c.l.b16 %v184
    %v609 = vunpack.c.h.b16 %v184
    %v610 = vunpack.c.l.b16 %v185
    %v611 = vunpack.c.h.b16 %v185
    %v612 = vunpack.c.l.b16 %v186
    %v613 = vunpack.c.h.b16 %v186
    %v614 = vunpack.c.l.b16 %v187
    %v615 = vunpack.c.h.b16 %v187
    %v616 = vunpack.c.l.b16 %v188
    %v617 = vunpack.c.h.b16 %v188
    %v618 = vunpack.c.l.b16 %v189
    %v619 = vunpack.c.h.b16 %v189
    %v620 = vunpack.c.l.b16 %v190
    %v621 = vunpack.c.h.b16 %v190
    %v622 = vunpack.c.l.b16 %v191
    %v623 = vunpack.c.h.b16 %v191
    %v624 = vunpack.c.l.b16 %v192
    %v625 = vunpack.c.h.b16 %v192
    %v626 = vpack.c.b16 %v372, %v370
    %v627 = vpack.c.b16 %v373, %v371
    %v628 = vpack.c.b16 %v376, %v374
    %v629 = vpack.c.b16 %v377, %v375
    %v630 = vpack.c.b16 %v380, %v378
    %v631 = vpack.c.b16 %v381, %v379
    %v632 = vpack.c.b16 %v384, %v382
    %v633 = vpack.c.b16 %v385, %v383
    %v634 = vpack.c.b16 %v388, %v386
    %v635 = vpack.c.b16 %v389, %v387
    %v636 = vpack.c.b16 %v392, %v390
    %v637 = vpack.c.b16 %v393, %v391
    %v638 = vpack.c.b16 %v396, %v394
    %v639 = vpack.c.b16 %v397, %v395
    %v640 = vpack.c.b16 %v400, %v398
    %v641 = vpack.c.b16 %v401, %v399
    %v642 = vpack.c.b16 %v404, %v402
    %v643 = vpack.c.b16 %v405, %v403
    %v644 = vpack.c.b16 %v408, %v406
    %v645 = vpack.c.b16 %v409, %v407
    %v646 = vpack.c.b16 %v412, %v410
    %v647 = vpack.c.b16 %v413, %v411
    %v648 = vpack.c.b16 %v416, %v414
    %v649 = vpack.c.b16 %v417, %v415
    %v650 = vpack.c.b16 %v420, %v418
    %v651 = vpack.c.b16 %v421, %v419
    %v652 = vpack.c.b16 %v424, %v422
    %v653 = vpack.c.b16 %v425, %v423
    %v654 = vpack.c.b16 %v428, %v426
    %v655 = vpack.c.b16 %v429, %v427
    %v656 = vpack.c.b16 %v432, %v430
    %v657 = vpack.c.b16 %v433, %v431
    %v658 = vpack.c.b16 %v436, %v434
    %v659 = vpack.c.b16 %v437, %v435
    %v660 = vpack.c.b16 %v440, %v438
    %v661 = vpack.c.b16 %v441, %v439
    %v662 = vpack.c.b16 %v444, %v442
    %v663 = vpack.c.b16 %v445, %v443
    %v664 = vpack.c.b16 %v448, %v446
    %v665 = vpack.c.b16 %v449, %v447
    %v666 = vpack.c.b16 %v452, %v450
    %v667 = vpack.c.b16 %v453, %v451
    %v668 = vpack.c.b16 %v456, %v454
    %v669 = vpack.c.b16 %v457, %v455
    %v670 = vpack.c.b16 %v460, %v458
    %v671 = vpack.c.b16 %v461, %v459
    %v672 = vpack.c.b16 %v464, %v462
    %v673 = vpack.c.b16 %v465, %v463
    %v674 = vpack.c.b16 %v468, %v466
    %v675 = vpack.c.b16 %v469, %v467
    %v676 = vpack.c.b16 %v472, %v470
    %v677 = vpack.c.b16 %v473, %v471
    %v678 = vpack.c.b16 %v476, %v474
    %v679 = vpack.c.b16 %v477, %v475
    %v680 = vpack.c.b16 %v480, %v478
    %v681 = vpack.c.b16 %v481, %v479
    %v682 = vpack.c.b16 %v484, %v482
    %v683 = vpack.c.b16 %v485, %v483
    %v684 = vpack.c.b16 %v488, %v486
    %v685 = vpack.c.b16 %v489, %v487
    %v686 = vpack.c.b16 %v492, %v490
    %v687 = vpack.c.b16 %v493, %v491
    %v688 = vpack.c.b16 %v496, %v494
    %v689 = vpack.c.b16 %v497, %v495
    %v690 = vpack.c.b16 %v500, %v498
    %v691 = vpack.c.b16 %v501, %v499
    %v692 = vpack.c.b16 %v504, %v502
    %v693 = vpack.c.b16 %v505, %v503
    %v694 = vpack.c.b16 %v508, %v506
    %v695 = vpack.c.b16 %v509, %v507
    %v696 = vpack.c.b16 %v512, %v510
    %v697 = vpack.c.b16 %v513, %v511
    %v698 = vpack.c.b16 %v516, %v514
    %v699 = vpack.c.b16 %v517, %v515
    %v700 = vpack.c.b16 %v520, %v518
    %v701 = vpack.c.b16 %v521, %v519
    %v702 = vpack.c.b16 %v524, %v522
    %v703 = vpack.c.b16 %v525, %v523
    %v704 = vpack.c.b16 %v528, %v526
    %v705 = vpack.c.b16 %v529, %v527
    %v706 = vpack.c.b16 %v532, %v530
    %v707 = vpack.c.b16 %v533, %v531
    %v708 = vpack.c.b16 %v536, %v534
    %v709 = vpack.c.b16 %v537, %v535
    %v710 = vpack.c.b16 %v540, %v538
    %v711 = vpack.c.b16 %v541, %v539
    %v712 = vpack.c.b16 %v544, %v542
    %v713 = vpack.c.b16 %v545, %v543
    %v714 = vpack.c.b16 %v548, %v546
    %v715 = vpack.c.b16 %v549, %v547
    %v716 = vpack.c.b16 %v552, %v550
    %v717 = vpack.c.b16 %v553, %v551
    %v718 = vpack.c.b16 %v556, %v554
    %v719 = vpack.c.b16 %v557, %v555
    %v720 = vpack.c.b16 %v560, %v558
    %v721 = vpack.c.b16 %v561, %v559
    %v722 = vpack.c.b16 %v564, %v562
    %v723 = vpack.c.b16 %v565, %v563
    %v724 = vpack.c.b16 %v568, %v566
    %v725 = vpack.c.b16 %v569, %v567
    %v726 = vpack.c.b16 %v572, %v570
    %v727 = vpack.c.b16 %v573, %v571
    %v728 = vpack.c.b16 %v576, %v574
    %v729 = vpack.c.b16 %v577, %v575
    %v730 = vpack.c.b16 %v580, %v578
    %v731 = vpack.c.b16 %v581, %v579
    %v732 = vpack.c.b16 %v584, %v582
    %v733 = vpack.c.b16 %v585, %v583
    %v734 = vpack.c.b16 %v588, %v586
    %v735 = vpack.c.b16 %v589, %v587
    %v736 = vpack.c.b16 %v592, %v590
    %v737 = vpack.c.b16 %v593, %v591
    %v738 = vpack.c.b16 %v596, %v594
    %v739 = vpack.c.b16 %v597, %v595
    %v740 = vpack.c.b16 %v600, %v598
    %v741 = vpack.c.b16 %v601, %v599
    %v742 = vpack.c.b16 %v604, %v602
    %v743 = vpack.c.b16 %v605, %v603
    %v744 = vpack.c.b16 %v608, %v606
    %v745 = vpack.c.b16 %v609, %v607
    %v746 = vpack.c.b16 %v612, %v610
    %v747 = vpack.c.b16 %v613, %v611
    %v748 = vpack.c.b16 %v616, %v614
    %v749 = vpack.c.b16 %v617, %v615
    %v750 = vpack.c.b16 %v620, %v618
    %v751 = vpack.c.b16 %v621, %v619
    %v752 = vpack.c.b16 %v624, %v622
    %v753 = vpack.c.b16 %v625, %v623
    %882 = vmatprep.subr.bf16.mxu0 %v627
    %883 = vmatpush1.bf16.msra.mxu0 %v626
    %884 = vmatprep.subr.bf16.mxu0 %v629
    %885 = vmatpush1.bf16.msra.mxu0 %v628
    %886 = vmatprep.subr.bf16.mxu0 %v631
    %887 = vmatpush1.bf16.msra.mxu0 %v630
    %888 = vmatprep.subr.bf16.mxu0 %v633
    %889 = vmatpush1.bf16.msra.mxu0 %v632
    %890 = vmatprep.subr.bf16.mxu0 %v635
    %891 = vmatpush1.bf16.msra.mxu0 %v634
    %892 = vmatprep.subr.bf16.mxu0 %v637
    %893 = vmatpush1.bf16.msra.mxu0 %v636
    %894 = vmatprep.subr.bf16.mxu0 %v639
    %895 = vmatpush1.bf16.msra.mxu0 %v638
    %896 = vmatprep.subr.bf16.mxu0 %v641
    %897 = vmatpush1.bf16.msra.mxu0 %v640
    %898 = vmatprep.subr.bf16.mxu0 %v643
    %899 = vmatpush1.bf16.msra.mxu0 %v642
    %900 = vmatprep.subr.bf16.mxu0 %v645
    %901 = vmatpush1.bf16.msra.mxu0 %v644
    %902 = vmatprep.subr.bf16.mxu0 %v647
    %903 = vmatpush1.bf16.msra.mxu0 %v646
    %904 = vmatprep.subr.bf16.mxu0 %v649
    %905 = vmatpush1.bf16.msra.mxu0 %v648
    %906 = vmatprep.subr.bf16.mxu0 %v651
    %907 = vmatpush1.bf16.msra.mxu0 %v650
    %908 = vmatprep.subr.bf16.mxu0 %v653
    %909 = vmatpush1.bf16.msra.mxu0 %v652
    %910 = vmatprep.subr.bf16.mxu0 %v655
    %911 = vmatpush1.bf16.msra.mxu0 %v654
    %912 = vmatprep.subr.bf16.mxu0 %v657
    %913 = vmatpush1.bf16.msra.mxu0 %v656
    %914 = vmatprep.mubr.bf16.mxu0 %v227
    %915 = vmatmul.mubr.bf16.gmra.mrb[0].mxu0 %v226
    %v916 = vpop.f32.mrb[0].mxu0
    %v917 = vadd.f32 %v209, %v916
    %v918 = vpop.f32.mrb[0].mxu0
    %v919 = vadd.f32 %v213, %v918
    %v920 = vpop.f32.mrb[0].mxu0
    %v921 = vpop.f32.mrb[0].mxu0
    %922 = vdwg.mxu0
    %923 = vmatprep.subr.bf16.mxu0 %v659
    %924 = vmatpush1.bf16.msra.mxu0 %v658
    %925 = vmatprep.subr.bf16.mxu0 %v661
    %926 = vmatpush1.bf16.msra.mxu0 %v660
    %927 = vmatprep.subr.bf16.mxu0 %v663
    %928 = vmatpush1.bf16.msra.mxu0 %v662
    %929 = vmatprep.subr.bf16.mxu0 %v665
    %930 = vmatpush1.bf16.msra.mxu0 %v664
    %931 = vmatprep.subr.bf16.mxu0 %v667
    %932 = vmatpush1.bf16.msra.mxu0 %v666
    %933 = vmatprep.subr.bf16.mxu0 %v669
    %934 = vmatpush1.bf16.msra.mxu0 %v668
    %935 = vmatprep.subr.bf16.mxu0 %v671
    %936 = vmatpush1.bf16.msra.mxu0 %v670
    %937 = vmatprep.subr.bf16.mxu0 %v673
    %938 = vmatpush1.bf16.msra.mxu0 %v672
    %939 = vmatprep.subr.bf16.mxu0 %v675
    %940 = vmatpush1.bf16.msra.mxu0 %v674
    %941 = vmatprep.subr.bf16.mxu0 %v677
    %942 = vmatpush1.bf16.msra.mxu0 %v676
    %943 = vmatprep.subr.bf16.mxu0 %v679
    %944 = vmatpush1.bf16.msra.mxu0 %v678
    %945 = vmatprep.subr.bf16.mxu0 %v681
    %946 = vmatpush1.bf16.msra.mxu0 %v680
    %947 = vmatprep.subr.bf16.mxu0 %v683
    %948 = vmatpush1.bf16.msra.mxu0 %v682
    %949 = vmatprep.subr.bf16.mxu0 %v685
    %950 = vmatpush1.bf16.msra.mxu0 %v684
    %951 = vmatprep.subr.bf16.mxu0 %v687
    %952 = vmatpush1.bf16.msra.mxu0 %v686
    %953 = vmatprep.subr.bf16.mxu0 %v689
    %954 = vmatpush1.bf16.msra.mxu0 %v688
    %955 = vmatprep.mubr.bf16.mxu0 %v229
    %956 = vmatmul.mubr.bf16.gmra.mrb[0].mxu0 %v228
    %v957 = vpop.f32.mrb[0].mxu0
    %v958 = vadd.f32 %v917, %v957
    %v959 = vpop.f32.mrb[0].mxu0
    %v960 = vadd.f32 %v919, %v959
    %v961 = vpop.f32.mrb[0].mxu0
    %v962 = vpop.f32.mrb[0].mxu0
    %963 = vdwg.mxu0
    %964 = vmatprep.subr.bf16.mxu0 %v691
    %965 = vmatpush1.bf16.msra.mxu0 %v690
    %966 = vmatprep.subr.bf16.mxu0 %v693
    %967 = vmatpush1.bf16.msra.mxu0 %v692
    %968 = vmatprep.subr.bf16.mxu0 %v695
    %969 = vmatpush1.bf16.msra.mxu0 %v694
    %970 = vmatprep.subr.bf16.mxu0 %v697
    %971 = vmatpush1.bf16.msra.mxu0 %v696
    %972 = vmatprep.subr.bf16.mxu0 %v699
    %973 = vmatpush1.bf16.msra.mxu0 %v698
    %974 = vmatprep.subr.bf16.mxu0 %v701
    %975 = vmatpush1.bf16.msra.mxu0 %v700
    %976 = vmatprep.subr.bf16.mxu0 %v703
    %977 = vmatpush1.bf16.msra.mxu0 %v702
    %978 = vmatprep.subr.bf16.mxu0 %v705
    %979 = vmatpush1.bf16.msra.mxu0 %v704
    %980 = vmatprep.subr.bf16.mxu0 %v707
    %981 = vmatpush1.bf16.msra.mxu0 %v706
    %982 = vmatprep.subr.bf16.mxu0 %v709
    %983 = vmatpush1.bf16.msra.mxu0 %v708
    %984 = vmatprep.subr.bf16.mxu0 %v711
    %985 = vmatpush1.bf16.msra.mxu0 %v710
    %986 = vmatprep.subr.bf16.mxu0 %v713
    %987 = vmatpush1.bf16.msra.mxu0 %v712
    %988 = vmatprep.subr.bf16.mxu0 %v715
    %989 = vmatpush1.bf16.msra.mxu0 %v714
    %990 = vmatprep.subr.bf16.mxu0 %v717
    %991 = vmatpush1.bf16.msra.mxu0 %v716
    %992 = vmatprep.subr.bf16.mxu0 %v719
    %993 = vmatpush1.bf16.msra.mxu0 %v718
    %994 = vmatprep.subr.bf16.mxu0 %v721
    %995 = vmatpush1.bf16.msra.mxu0 %v720
    %996 = vmatprep.mubr.bf16.mxu0 %v231
    %997 = vmatmul.mubr.bf16.gmra.mrb[0].mxu0 %v230
    %v998 = vpop.f32.mrb[0].mxu0
    %v999 = vadd.f32 %v958, %v998
    %v1000 = vpop.f32.mrb[0].mxu0
    %v1001 = vadd.f32 %v960, %v1000
    %v1002 = vpop.f32.mrb[0].mxu0
    %v1003 = vpop.f32.mrb[0].mxu0
    %1004 = vdwg.mxu0
    %1005 = vmatprep.subr.bf16.mxu0 %v723
    %1006 = vmatpush1.bf16.msra.mxu0 %v722
    %1007 = vmatprep.subr.bf16.mxu0 %v725
    %1008 = vmatpush1.bf16.msra.mxu0 %v724
    %1009 = vmatprep.subr.bf16.mxu0 %v727
    %1010 = vmatpush1.bf16.msra.mxu0 %v726
    %1011 = vmatprep.subr.bf16.mxu0 %v729
    %1012 = vmatpush1.bf16.msra.mxu0 %v728
    %1013 = vmatprep.subr.bf16.mxu0 %v731
    %1014 = vmatpush1.bf16.msra.mxu0 %v730
    %1015 = vmatprep.subr.bf16.mxu0 %v733
    %1016 = vmatpush1.bf16.msra.mxu0 %v732
    %1017 = vmatprep.subr.bf16.mxu0 %v735
    %1018 = vmatpush1.bf16.msra.mxu0 %v734
    %1019 = vmatprep.subr.bf16.mxu0 %v737
    %1020 = vmatpush1.bf16.msra.mxu0 %v736
    %1021 = vmatprep.subr.bf16.mxu0 %v739
    %1022 = vmatpush1.bf16.msra.mxu0 %v738
    %1023 = vmatprep.subr.bf16.mxu0 %v741
    %1024 = vmatpush1.bf16.msra.mxu0 %v740
    %1025 = vmatprep.subr.bf16.mxu0 %v743
    %1026 = vmatpush1.bf16.msra.mxu0 %v742
    %1027 = vmatprep.subr.bf16.mxu0 %v745
    %1028 = vmatpush1.bf16.msra.mxu0 %v744
    %1029 = vmatprep.subr.bf16.mxu0 %v747
    %1030 = vmatpush1.bf16.msra.mxu0 %v746
    %1031 = vmatprep.subr.bf16.mxu0 %v749
    %1032 = vmatpush1.bf16.msra.mxu0 %v748
    %1033 = vmatprep.subr.bf16.mxu0 %v751
    %1034 = vmatpush1.bf16.msra.mxu0 %v750
    %1035 = vmatprep.subr.bf16.mxu0 %v753
    %1036 = vmatpush1.bf16.msra.mxu0 %v752
    %1037 = vmatprep.mubr.bf16.mxu0 %v233
    %1038 = vmatmul.mubr.bf16.gmra.mrb[0].mxu0 %v232
    %v1039 = vpop.f32.mrb[0].mxu0
    %v1040 = vadd.f32 %v999, %v1039
    %v1041 = vpop.f32.mrb[0].mxu0
    %v1042 = vadd.f32 %v1001, %v1041
    %v1043 = vpop.f32.mrb[0].mxu0
    %v1044 = vpop.f32.mrb[0].mxu0
    %1045 = vdwg.mxu0
    %v1046 = vxor.u32 %v1040, 2147483648
    %v1047 = vxor.u32 %v1042, 2147483648
    %v1048 = vmul.f32 %v1046, 1.442695
    %v1049 = vpow.pop %v1048
    %v1050 = vmul.f32 %v1047, 1.442695
    %v1051 = vpow.pop %v1050
    %v1052 = vadd.f32 %v1049, 1.0
    %v1053 = vadd.f32 %v1051, 1.0
    %v1054 = vrcp.pop %v1052
    %v1055 = vmul.f32 1.0, %v1054
    %v1056 = vrcp.pop %v1053
    %v1057 = vmul.f32 1.0, %v1056
    %v1058 = vpack.c.bf16 %v1055, %v1055
    %v1059 = vpack.c.bf16 %v1057, %v1057
    %v1060 = vld [vmem:[#allocation7] sm:$0xf]
    %v1061 = vld [vmem:[#allocation7 + $0x4] sm:$0xf]
    %v1062 = vld [vmem:[#allocation7 + $0x8] sm:$0xf]
    %v1063 = vld [vmem:[#allocation7 + $0xc] sm:$0xf]
    %v1064 = vld [vmem:[#allocation7 + $0x10] sm:$0xf]
    %v1065 = vld [vmem:[#allocation7 + $0x14] sm:$0xf]
    %v1066 = vld [vmem:[#allocation7 + $0x18] sm:$0xf]
    %v1067 = vld [vmem:[#allocation7 + $0x1c] sm:$0xf]
    %v1068 = vld [vmem:[#allocation7 + $0x20] sm:$0xf]
    %v1069 = vld [vmem:[#allocation7 + $0x24] sm:$0xf]
    %v1070 = vld [vmem:[#allocation7 + $0x28] sm:$0xf]
    %v1071 = vld [vmem:[#allocation7 + $0x2c] sm:$0xf]
    %v1072 = vld [vmem:[#allocation7 + $0x30] sm:$0xf]
    %v1073 = vld [vmem:[#allocation7 + $0x34] sm:$0xf]
    %v1074 = vld [vmem:[#allocation7 + $0x38] sm:$0xf]
    %v1075 = vld [vmem:[#allocation7 + $0x3c] sm:$0xf]
    %v1076 = vld [vmem:[#allocation7 + $0x40] sm:$0xf]
    %v1077 = vld [vmem:[#allocation7 + $0x44] sm:$0xf]
    %v1078 = vld [vmem:[#allocation7 + $0x48] sm:$0xf]
    %v1079 = vld [vmem:[#allocation7 + $0x4c] sm:$0xf]
    %v1080 = vld [vmem:[#allocation7 + $0x50] sm:$0xf]
    %v1081 = vld [vmem:[#allocation7 + $0x54] sm:$0xf]
    %v1082 = vld [vmem:[#allocation7 + $0x58] sm:$0xf]
    %v1083 = vld [vmem:[#allocation7 + $0x5c] sm:$0xf]
    %v1084 = vld [vmem:[#allocation7 + $0x60] sm:$0xf]
    %v1085 = vld [vmem:[#allocation7 + $0x64] sm:$0xf]
    %v1086 = vld [vmem:[#allocation7 + $0x68] sm:$0xf]
    %v1087 = vld [vmem:[#allocation7 + $0x6c] sm:$0xf]
    %v1088 = vld [vmem:[#allocation7 + $0x70] sm:$0xf]
    %v1089 = vld [vmem:[#allocation7 + $0x74] sm:$0xf]
    %v1090 = vld [vmem:[#allocation7 + $0x78] sm:$0xf]
    %v1091 = vld [vmem:[#allocation7 + $0x7c] sm:$0xf]
    %v1092 = vld [vmem:[%s4] sm:$0x1]
    %v1093 = vunpack.c.l.bf16 %v1092
    %v1094 = vlaneseq
    %v1095 = vshrl.u32 %v1094, 7
    %v1096 = vsub.s32 0, %v1095
    %v1097 = vrot.slane %v1093, %v1096
    %v1130 = vunpack.c.l.b16 %v1060
    %v1131 = vunpack.c.l.b16 %v1061
    %v1132 = vunpack.c.l.b16 %v1062
    %v1133 = vunpack.c.l.b16 %v1063
    %v1134 = vunpack.c.l.b16 %v1064
    %v1135 = vunpack.c.l.b16 %v1065
    %v1136 = vunpack.c.l.b16 %v1066
    %v1137 = vunpack.c.l.b16 %v1067
    %v1138 = vunpack.c.l.b16 %v1068
    %v1139 = vunpack.c.l.b16 %v1069
    %v1140 = vunpack.c.l.b16 %v1070
    %v1141 = vunpack.c.l.b16 %v1071
    %v1142 = vunpack.c.l.b16 %v1072
    %v1143 = vunpack.c.l.b16 %v1073
    %v1144 = vunpack.c.l.b16 %v1074
    %v1145 = vunpack.c.l.b16 %v1075
    %v1146 = vunpack.c.l.b16 %v1076
    %v1147 = vunpack.c.l.b16 %v1077
    %v1148 = vunpack.c.l.b16 %v1078
    %v1149 = vunpack.c.l.b16 %v1079
    %v1150 = vunpack.c.l.b16 %v1080
    %v1151 = vunpack.c.l.b16 %v1081
    %v1152 = vunpack.c.l.b16 %v1082
    %v1153 = vunpack.c.l.b16 %v1083
    %v1154 = vunpack.c.l.b16 %v1084
    %v1155 = vunpack.c.l.b16 %v1085
    %v1156 = vunpack.c.l.b16 %v1086
    %v1157 = vunpack.c.l.b16 %v1087
    %v1158 = vunpack.c.l.b16 %v1088
    %v1159 = vunpack.c.l.b16 %v1089
    %v1160 = vunpack.c.l.b16 %v1090
    %v1161 = vunpack.c.l.b16 %v1091
    %v1162 = vpack.c.b16 %v1131, %v1130
    %v1163 = vpack.c.b16 %v1133, %v1132
    %v1164 = vpack.c.b16 %v1135, %v1134
    %v1165 = vpack.c.b16 %v1137, %v1136
    %v1166 = vpack.c.b16 %v1139, %v1138
    %v1167 = vpack.c.b16 %v1141, %v1140
    %v1168 = vpack.c.b16 %v1143, %v1142
    %v1169 = vpack.c.b16 %v1145, %v1144
    %v1170 = vpack.c.b16 %v1147, %v1146
    %v1171 = vpack.c.b16 %v1149, %v1148
    %v1172 = vpack.c.b16 %v1151, %v1150
    %v1173 = vpack.c.b16 %v1153, %v1152
    %v1174 = vpack.c.b16 %v1155, %v1154
    %v1175 = vpack.c.b16 %v1157, %v1156
    %v1176 = vpack.c.b16 %v1159, %v1158
    %v1177 = vpack.c.b16 %v1161, %v1160
    %1194 = vmatprep.subr.bf16.mxu0 0
    %1195 = vmatpush1.bf16.msra.mxu0 %v1162
    %1196 = vmatprep.subr.bf16.mxu0 0
    %1197 = vmatpush1.bf16.msra.mxu0 %v1163
    %1198 = vmatprep.subr.bf16.mxu0 0
    %1199 = vmatpush1.bf16.msra.mxu0 %v1164
    %1200 = vmatprep.subr.bf16.mxu0 0
    %1201 = vmatpush1.bf16.msra.mxu0 %v1165
    %1202 = vmatprep.subr.bf16.mxu0 0
    %1203 = vmatpush1.bf16.msra.mxu0 %v1166
    %1204 = vmatprep.subr.bf16.mxu0 0
    %1205 = vmatpush1.bf16.msra.mxu0 %v1167
    %1206 = vmatprep.subr.bf16.mxu0 0
    %1207 = vmatpush1.bf16.msra.mxu0 %v1168
    %1208 = vmatprep.subr.bf16.mxu0 0
    %1209 = vmatpush1.bf16.msra.mxu0 %v1169
    %1210 = vmatprep.subr.bf16.mxu0 0
    %1211 = vmatpush1.bf16.msra.mxu0 %v1170
    %1212 = vmatprep.subr.bf16.mxu0 0
    %1213 = vmatpush1.bf16.msra.mxu0 %v1171
    %1214 = vmatprep.subr.bf16.mxu0 0
    %1215 = vmatpush1.bf16.msra.mxu0 %v1172
    %1216 = vmatprep.subr.bf16.mxu0 0
    %1217 = vmatpush1.bf16.msra.mxu0 %v1173
    %1218 = vmatprep.subr.bf16.mxu0 0
    %1219 = vmatpush1.bf16.msra.mxu0 %v1174
    %1220 = vmatprep.subr.bf16.mxu0 0
    %1221 = vmatpush1.bf16.msra.mxu0 %v1175
    %1222 = vmatprep.subr.bf16.mxu0 0
    %1223 = vmatpush1.bf16.msra.mxu0 %v1176
    %1224 = vmatprep.subr.bf16.mxu0 0
    %1225 = vmatpush1.bf16.msra.mxu0 %v1177
    %1226 = vmatprep.mubr.bf16.mxu0 %v1059
    %1227 = vmatmul.mubr.bf16.gmra.mrb[0].mxu0 %v1058
    %v1228 = vpop.f32.mrb[0].mxu0
    %v1229 = vadd.f32 %v1097, %v1228
    %v1230 = vpop.f32.mrb[0].mxu0
    %v1231 = vpop.f32.mrb[0].mxu0
    %v1232 = vpop.f32.mrb[0].mxu0
    %1233 = vdwg.mxu0
    %v1234 = vxor.u32 %v1229, 2147483648
    %v1235 = vmul.f32 %v1234, 1.442695
    %v1236 = vpow.pop %v1235
    %v1237 = vadd.f32 %v1236, 1.0
    %v1238 = vrcp.pop %v1237
    %v1239 = vmul.f32 1.0, %v1238
    %1240 = vst [vmem:[#allocation8] sm:$0xff] %v1239
    // Predicated region
    $region34: #{tpu_custom_call.1} parent=1 // pred_check
      _
    $region35: #{tpu_custom_call.1} parent=1 // pred_check_branch
      %1242 = sbr.rel (0) target = $region37
    $region36: #{tpu_custom_call.1} parent=1 // pred_region
      %s1244 = ssub.s32 128, 128
      %1245 = vsyncadd [#allocation4], %s1244
      %s1247 = sshll.u32 [#allocation8], 4
      %s1248 = int_to_ptr.vmem [resolvable:$true] %s1247
      %1250 = dma.vmem_to_hbm [thread:$0]  %s1248, 128, %s5, [#allocation4]
    $region37: #{tpu_custom_call.1} parent=1 // pred_fallthru
      _
    // Predicated region
    $region38: #{tpu_custom_call.1} parent=1 // pred_check
      _
    $region39: #{tpu_custom_call.1} parent=1 // pred_check_branch
      %1252 = sbr.rel (0) target = $region41
    $region40: #{tpu_custom_call.1} parent=1 // pred_region
      %1253 = dma.done [#allocation4], 128
    $region41: #{tpu_custom_call.1} parent=1 // pred_fallthru
      _
    %1254 = vsyncpa [#allocation3], 1
    %1255 = vsyncpa [#allocation6], 1
    %1256 = vsyncpa [#allocation4], 1

</llo_original>
